<compile_context>
chip_gen: v6e
topology: v6e:2x2x1
jax: 0.10.0
libtpu: 0.0.40
codegen_flags: <defaults>
</compile_context>

<pallas_src>
import functools

import jax
import jax.numpy as jnp
import numpy as np
from jax import lax
from jax.experimental import pallas as pl

# ---------------- model hyper-parameters (small, consistent with the module) ----
INPUT_SIZE = 16
D_MODEL = 32
NHEAD = 4
NUM_LAYERS = 2
DIM_FF = 64
OUTPUT_SIZE = 8
BATCH = 2
SEQ = 8
LN_EPS = 1e-5  # PyTorch LayerNorm default

# ---- packed-bias table layout (one (rows, 128) f32 table for the whole model) --
BIAS_LANES = 128
ROW_B_IN, ROW_B_OUT = 0, 1
ROWS_PER_LAYER = 8
R_BQKV, R_BO, R_B1, R_B2, R_G1, R_BE1, R_G2, R_BE2 = range(ROWS_PER_LAYER)


# ---------------- fused Pallas kernel -------------------------------------------
def _layernorm(t, g, b):
    mu = jnp.mean(t, axis=-1, keepdims=True)
    var = jnp.mean((t - mu) ** 2, axis=-1, keepdims=True)
    return (t - mu) * lax.rsqrt(var + LN_EPS) * g + b


def fused_transformer_kernel(x_ref, pos_ref, w_in_ref, w_out_ref, wqkv_ref,
                             wo_ref, w1_ref, w2_ref, b_ref, o_ref,
                             *, num_layers, nhead, bsz, seq):
    f32 = jnp.float32
    rows = bsz * seq
    d_model = w_in_ref.shape[1]
    d_ff = w1_ref.shape[1]
    out_dim = w_out_ref.shape[1]
    hd = d_model // nhead
    hb = nhead * bsz

    def brow(i, width):                 # one bias / LN-param row, kept 2-D (1, width)
        return b_ref[i:i + 1, :width]

    # ---- input linear + positional encoding (x and pos pre-flattened to 2-D) ----
    h = (jnp.dot(x_ref[...], w_in_ref[...], preferred_element_type=f32)
         + brow(ROW_B_IN, d_model) + pos_ref[...])

    # ---- encoder layers (post-norm, ReLU), unrolled in Python -------------------
    for l in range(num_layers):
        base = 2 + ROWS_PER_LAYER * l
        wqkv = wqkv_ref[l * d_model:(l + 1) * d_model, :]        # (D, 3D)
        wo_h = wo_ref[l * nhead:(l + 1) * nhead]                 # (nhead, hd, D)
        w1 = w1_ref[l * d_model:(l + 1) * d_model, :]            # (D, FF)
        w2 = w2_ref[l * d_ff:(l + 1) * d_ff, :]                  # (FF, D)

        # Fused q|k|v projection: ONE matmul + ONE bias add per layer.
        # (1/sqrt(hd) is already folded into the q columns / q bias.)
        qkv = (jnp.dot(h, wqkv, preferred_element_type=f32)
               + brow(base + R_BQKV, 3 * d_model))

        # Head-major stacks (nhead*bsz, seq, hd): leading-axis concat + leading
        # reshapes only (no 4-D transposes, no multi-batch-dim dot_general).
        def split_heads(off):
            pieces = [qkv[:, off + i * hd: off + (i + 1) * hd] for i in range(nhead)]
            return jnp.concatenate(pieces, axis=0).reshape(hb, seq, hd)

        qh = split_heads(0)
        kh = split_heads(d_model)
        vh = split_heads(2 * d_model)

        # ONE batched score dot, ONE softmax, ONE batched PV dot for all heads.
        s = jnp.einsum('bqd,bkd->bqk', qh, kh, preferred_element_type=f32)
        s = s - jnp.max(s, axis=-1, keepdims=True)
        p = jnp.exp(s)
        p = p / jnp.sum(p, axis=-1, keepdims=True)        # exact divide (parity)
        pv = jnp.einsum('bqk,bkd->bqd', p, vh, preferred_element_type=f32)

        # Out-projection: ONE batched dot over heads + leading-axis reduce
        # (mathematically identical to concat(heads) @ Wo.T, no minor-dim concat).
        pv_h = pv.reshape(nhead, rows, hd)
        attn = jnp.sum(
            jnp.einsum('hrd,hde->hre', pv_h, wo_h, preferred_element_type=f32),
            axis=0) + brow(base + R_BO, d_model)

        # residual + LayerNorm 1 (post-norm)
        y = _layernorm(h + attn, brow(base + R_G1, d_model), brow(base + R_BE1, d_model))

        # feed-forward (ReLU) + residual + LayerNorm 2
        h1 = jnp.maximum(
            jnp.dot(y, w1, preferred_element_type=f32) + brow(base + R_B1, d_ff), 0.0)
        h2 = jnp.dot(h1, w2, preferred_element_type=f32) + brow(base + R_B2, d_model)
        h = _layernorm(y + h2, brow(base + R_G2, d_model), brow(base + R_BE2, d_model))

    # ---- output head on all rows (free at this size); emit last token per batch.
    # Dropout on the last-token features -> identity (eval semantics).
    out_all = (jnp.dot(h, w_out_ref[...], preferred_element_type=f32)
               + brow(ROW_B_OUT, out_dim))
    o_ref[...] = out_all.reshape(bsz, seq, out_dim)[:, seq - 1, :]


# ---------------- one-time parameter packing -------------------------------------
def prepare_params(params, *, batch=BATCH, seq=SEQ, nhead=NHEAD):
    """Pack PyTorch-convention params into a few lane/sublane-dense slabs."""
    f32 = jnp.float32
    d_model = params["input_w"].shape[0]
    hd = d_model // nhead
    scale = 1.0 / float(np.sqrt(hd))
    layers = params["layers"]
    num_layers = len(layers)
    d_ff = layers[0]["w1"].shape[0]

    def t(w):                    # (out, in) -> (in, out)
        return jnp.asarray(w, f32).T

    # positional encoding pre-sliced to seq and pre-tiled over batch -> (B*S, D)
    pos2d = jnp.tile(jnp.asarray(params["pos"], f32)[0, :seq, :], (batch, 1))

    w_in_t = t(params["input_w"])                                   # (in, D)
    w_out_t = t(params["fc_w"])                                     # (D, out)

    # fused Wq|Wk|Wv, stacked across layers along sublanes -> (L*D, 3D)
    # attention scale folded into the q columns.
    wqkv = jnp.concatenate(
        [jnp.concatenate([t(lp["wq"]) * scale, t(lp["wk"]), t(lp["wv"])], axis=1)
         for lp in layers], axis=0)
    # Wo.T split per head (head, hd, D), stacked across layers -> (L*nhead, hd, D)
    wo_heads = jnp.concatenate(
        [t(lp["wo"]).reshape(nhead, hd, d_model) for lp in layers], axis=0)
    w1 = jnp.concatenate([t(lp["w1"]) for lp in layers], axis=0)    # (L*D,  FF)
    w2 = jnp.concatenate([t(lp["w2"]) for lp in layers], axis=0)    # (L*FF, D)

    # one bias / LayerNorm-param table: one row per vector, zero-padded to 128 lanes
    nrows = 2 + ROWS_PER_LAYER * num_layers
    bias = np.zeros((nrows, BIAS_LANES), np.float32)

    def put(row, vec):
        v = np.asarray(vec, np.float32).reshape(-1)
        bias[row, :v.size] = v

    put(ROW_B_IN, params["input_b"])
    put(ROW_B_OUT, params["fc_b"])
    for l, lp in enumerate(layers):
        base = 2 + ROWS_PER_LAYER * l
        put(base + R_BQKV, np.concatenate([np.asarray(lp["bq"]) * scale,
                                           np.asarray(lp["bk"]),
                                           np.asarray(lp["bv"])]))
        put(base + R_BO, lp["bo"])
        put(base + R_B1, lp["b1"])
        put(base + R_B2, lp["b2"])
        put(base + R_G1, lp["g1"])
        put(base + R_BE1, lp["be1"])
        put(base + R_G2, lp["g2"])
        put(base + R_BE2, lp["be2"])

    return {
        "pos2d": pos2d, "w_in_t": w_in_t, "w_out_t": w_out_t,
        "wqkv": wqkv, "wo_heads": wo_heads, "w1": w1, "w2": w2,
        "bias": jnp.asarray(bias),
        "num_layers": num_layers, "nhead": nhead, "batch": batch, "seq": seq,
        "d_ff": d_ff,
    }


# ---------------- per-forward wrapper --------------------------------------------
def transformer_forward(x, prep):
    """x: (B, S, input_size) -> (B, output_size) via a single fused pallas_call."""
    b_, s_, d_in = x.shape
    assert b_ == prep["batch"] and s_ == prep["seq"]
    rows = b_ * s_
    d_model = prep["w_in_t"].shape[1]
    d_ff = prep["d_ff"]
    out_dim = prep["w_out_t"].shape[1]
    nhead = prep["nhead"]
    num_layers = prep["num_layers"]
    hd = d_model // nhead

    operands = (x.reshape(rows, d_in), prep["pos2d"], prep["w_in_t"],
                prep["w_out_t"], prep["wqkv"], prep["wo_heads"],
                prep["w1"], prep["w2"], prep["bias"])

    # advisory cost estimate so XLA schedules around the opaque custom call
    per_layer_flops = (2 * rows * d_model * 3 * d_model
                       + 2 * nhead * b_ * s_ * s_ * hd * 2
                       + 2 * nhead * rows * hd * d_model
                       + 2 * rows * d_model * d_ff * 2)
    flops = (2 * rows * d_in * d_model + num_layers * per_layer_flops
             + 2 * rows * d_model * out_dim)
    transcendentals = num_layers * (nhead * b_ * s_ * s_ + 2 * rows)
    bytes_accessed = (sum(int(np.prod(a.shape)) * 4 for a in operands)
                      + b_ * out_dim * 4)

    kernel = functools.partial(
        fused_transformer_kernel,
        num_layers=num_layers, nhead=nhead, bsz=b_, seq=s_)

    # No grid: the whole problem (weights + activations, <<1 MiB) is one VMEM-
    # resident step; every operand is a full-array block (single prologue DMA each).
    return pl.pallas_call(
        kernel,
        out_shape=jax.ShapeDtypeStruct((b_, out_dim), jnp.float32),
        cost_estimate=pl.CostEstimate(flops=flops,
                                      transcendentals=transcendentals,
                                      bytes_accessed=bytes_accessed),
    )(*operands)


# ---------------- pure-JAX reference (for numerical check) ----------------------
def ref_forward(x, params, nhead):
    def lin(t, w, b):
        return t @ w.T + b

    def layernorm(t, g, b):
        mu = jnp.mean(t, axis=-1, keepdims=True)
        var = jnp.mean((t - mu) ** 2, axis=-1, keepdims=True)
        return (t - mu) * jax.lax.rsqrt(var + LN_EPS) * g + b

    h = lin(x, params["input_w"], params["input_b"])
    h = h + params["pos"][:, : x.shape[1], :]
    for lp in params["layers"]:
        B, S, D = h.shape
        hd = D // nhead
        q = lin(h, lp["wq"], lp["bq"]).reshape(B, S, nhead, hd).transpose(0, 2, 1, 3)
        k = lin(h, lp["wk"], lp["bk"]).reshape(B, S, nhead, hd).transpose(0, 2, 1, 3)
        v = lin(h, lp["wv"], lp["bv"]).reshape(B, S, nhead, hd).transpose(0, 2, 1, 3)
        s = jnp.einsum("bhqd,bhkd->bhqk", q, k) / np.sqrt(hd)
        p = jax.nn.softmax(s, axis=-1)
        o = jnp.einsum("bhqk,bhkd->bhqd", p, v).transpose(0, 2, 1, 3).reshape(B, S, D)
        attn = lin(o, lp["wo"], lp["bo"])
        y = layernorm(h + attn, lp["g1"], lp["be1"])
        f = lin(jnp.maximum(lin(y, lp["w1"], lp["b1"]), 0.0), lp["w2"], lp["b2"])
        h = layernorm(y + f, lp["g2"], lp["be2"])
    return lin(h[:, -1, :], params["fc_w"], params["fc_b"])


# ---------------- deterministic parameter init ----------------------------------
def init_params(key):
    def nrm(k, shape, scale=0.05):
        return (scale * jax.random.normal(k, shape)).astype(jnp.float32)

    keys = jax.random.split(key, 8 + NUM_LAYERS)
    params = {
        "input_w": nrm(keys[0], (D_MODEL, INPUT_SIZE)),
        "input_b": nrm(keys[1], (D_MODEL,)),
        "pos": nrm(keys[2], (1, 500, D_MODEL)),  # nn.Parameter(zeros) -> synthetic values
        "fc_w": nrm(keys[3], (OUTPUT_SIZE, D_MODEL)),
        "fc_b": nrm(keys[4], (OUTPUT_SIZE,)),
        "layers": [],
    }
    for li in range(NUM_LAYERS):
        lk = jax.random.split(keys[8 + li], 16)
        params["layers"].append(
            {
                "wq": nrm(lk[0], (D_MODEL, D_MODEL)),
                "wk": nrm(lk[1], (D_MODEL, D_MODEL)),
                "wv": nrm(lk[2], (D_MODEL, D_MODEL)),
                "bq": nrm(lk[3], (D_MODEL,)),
                "bk": nrm(lk[4], (D_MODEL,)),
                "bv": nrm(lk[5], (D_MODEL,)),
                "wo": nrm(lk[6], (D_MODEL, D_MODEL)),
                "bo": nrm(lk[7], (D_MODEL,)),
                "w1": nrm(lk[8], (DIM_FF, D_MODEL)),
                "b1": nrm(lk[9], (DIM_FF,)),
                "w2": nrm(lk[10], (D_MODEL, DIM_FF)),
                "b2": nrm(lk[11], (D_MODEL,)),
                "g1": jnp.ones((D_MODEL,), jnp.float32),
                "be1": jnp.zeros((D_MODEL,), jnp.float32),
                "g2": jnp.ones((D_MODEL,), jnp.float32),
                "be2": jnp.zeros((D_MODEL,), jnp.float32),
            }
        )
    return params


if __name__ == "__main__":
    root = jax.random.PRNGKey(0)
    kx, kp = jax.random.split(root)
    x = jax.random.normal(kx, (BATCH, SEQ, INPUT_SIZE), dtype=jnp.float32)
    params = init_params(kp)
    prep = prepare_params(params)   # one-time weight packing / bias-table build

    out = transformer_forward(x, prep)
    out = jax.block_until_ready(out)

    ref = jax.block_until_ready(ref_forward(x, params, NHEAD))
    assert out.shape == (BATCH, OUTPUT_SIZE), out.shape
    # Softmax now uses an exact divide; remaining slack vs. the pure-XLA reference
    # is default TPU matmul precision / contraction-order rounding, so keep a
    # conservative tolerance.
    np.testing.assert_allclose(np.asarray(out), np.asarray(ref), rtol=2e-3, atol=2e-3)

    print("KERNEL_OK")
</pallas_src>

<mosaic_0001>
module attributes {stable_mosaic.version = 11 : i64} {
  func.func @fused_transformer_kernel(%arg0: memref<16x16xf32, #tpu.memory_space<vmem>>, %arg1: memref<16x32xf32, #tpu.memory_space<vmem>>, %arg2: memref<16x32xf32, #tpu.memory_space<vmem>>, %arg3: memref<32x8xf32, #tpu.memory_space<vmem>>, %arg4: memref<64x96xf32, #tpu.memory_space<vmem>>, %arg5: memref<8x8x32xf32, #tpu.memory_space<vmem>>, %arg6: memref<64x64xf32, #tpu.memory_space<vmem>>, %arg7: memref<128x32xf32, #tpu.memory_space<vmem>>, %arg8: memref<18x128xf32, #tpu.memory_space<vmem>>, %arg9: memref<2x8xf32, #tpu.memory_space<vmem>>) attributes {dimension_semantics = [], scalar_prefetch = 0 : i64, scratch_operands = 0 : i64, tpu.core_type = #tpu.core_type<tc>} {
    %c0 = arith.constant 0 : index
    %c0_0 = arith.constant 0 : index
    %0 = vector.load %arg0[%c0, %c0_0] : memref<16x16xf32, #tpu.memory_space<vmem>>, vector<16x16xf32>
    %c0_1 = arith.constant 0 : index
    %c0_2 = arith.constant 0 : index
    %1 = vector.load %arg2[%c0_1, %c0_2] : memref<16x32xf32, #tpu.memory_space<vmem>>, vector<16x32xf32>
    %cst = arith.constant dense<0.000000e+00> : vector<16x32xf32>
    %2 = tpu.matmul %0, %1, %cst {dimension_numbers = #tpu.dot_dimension_numbers<[1], [0], [0], [1], [0, 0, 1, 1], [], []>} : vector<16x16xf32>, vector<16x32xf32>, vector<16x32xf32> -> vector<16x32xf32>
    %c0_3 = arith.constant 0 : index
    %c0_4 = arith.constant 0 : index
    %3 = vector.load %arg8[%c0_3, %c0_4] : memref<18x128xf32, #tpu.memory_space<vmem>>, vector<1x32xf32>
    %4 = vector.broadcast %3 : vector<1x32xf32> to vector<16x32xf32>
    %5 = arith.addf %2, %4 : vector<16x32xf32>
    %c0_5 = arith.constant 0 : index
    %c0_6 = arith.constant 0 : index
    %6 = vector.load %arg1[%c0_5, %c0_6] : memref<16x32xf32, #tpu.memory_space<vmem>>, vector<16x32xf32>
    %7 = arith.addf %5, %6 : vector<16x32xf32>
    %c0_7 = arith.constant 0 : index
    %c0_8 = arith.constant 0 : index
    %8 = vector.load %arg4[%c0_7, %c0_8] : memref<64x96xf32, #tpu.memory_space<vmem>>, vector<32x96xf32>
    %c0_9 = arith.constant 0 : index
    %c0_10 = arith.constant 0 : index
    %c0_11 = arith.constant 0 : index
    %9 = vector.load %arg5[%c0_9, %c0_10, %c0_11] : memref<8x8x32xf32, #tpu.memory_space<vmem>>, vector<4x8x32xf32>
    %c0_12 = arith.constant 0 : index
    %c0_13 = arith.constant 0 : index
    %10 = vector.load %arg6[%c0_12, %c0_13] : memref<64x64xf32, #tpu.memory_space<vmem>>, vector<32x64xf32>
    %c0_14 = arith.constant 0 : index
    %c0_15 = arith.constant 0 : index
    %11 = vector.load %arg7[%c0_14, %c0_15] : memref<128x32xf32, #tpu.memory_space<vmem>>, vector<64x32xf32>
    %cst_16 = arith.constant dense<0.000000e+00> : vector<16x96xf32>
    %12 = tpu.matmul %7, %8, %cst_16 {dimension_numbers = #tpu.dot_dimension_numbers<[1], [0], [0], [1], [0, 0, 1, 1], [], []>} : vector<16x32xf32>, vector<32x96xf32>, vector<16x96xf32> -> vector<16x96xf32>
    %c2 = arith.constant 2 : index
    %c0_17 = arith.constant 0 : index
    %13 = vector.load %arg8[%c2, %c0_17] : memref<18x128xf32, #tpu.memory_space<vmem>>, vector<1x96xf32>
    %14 = vector.broadcast %13 : vector<1x96xf32> to vector<16x96xf32>
    %15 = arith.addf %12, %14 : vector<16x96xf32>
    %16 = vector.extract_strided_slice %15 {offsets = [0, 0], sizes = [16, 8], strides = [1, 1]} : vector<16x96xf32> to vector<16x8xf32>
    %17 = vector.extract_strided_slice %15 {offsets = [0, 8], sizes = [16, 8], strides = [1, 1]} : vector<16x96xf32> to vector<16x8xf32>
    %18 = vector.extract_strided_slice %15 {offsets = [0, 16], sizes = [16, 8], strides = [1, 1]} : vector<16x96xf32> to vector<16x8xf32>
    %19 = vector.extract_strided_slice %15 {offsets = [0, 24], sizes = [16, 8], strides = [1, 1]} : vector<16x96xf32> to vector<16x8xf32>
    %20 = tpu.concatenate %16, %17, %18, %19 in 0 : vector<16x8xf32>, vector<16x8xf32>, vector<16x8xf32>, vector<16x8xf32> -> vector<64x8xf32>
    %21 = vector.shape_cast %20 : vector<64x8xf32> to vector<8x8x8xf32>
    %22 = vector.extract_strided_slice %15 {offsets = [0, 32], sizes = [16, 8], strides = [1, 1]} : vector<16x96xf32> to vector<16x8xf32>
    %23 = vector.extract_strided_slice %15 {offsets = [0, 40], sizes = [16, 8], strides = [1, 1]} : vector<16x96xf32> to vector<16x8xf32>
    %24 = vector.extract_strided_slice %15 {offsets = [0, 48], sizes = [16, 8], strides = [1, 1]} : vector<16x96xf32> to vector<16x8xf32>
    %25 = vector.extract_strided_slice %15 {offsets = [0, 56], sizes = [16, 8], strides = [1, 1]} : vector<16x96xf32> to vector<16x8xf32>
    %26 = tpu.concatenate %22, %23, %24, %25 in 0 : vector<16x8xf32>, vector<16x8xf32>, vector<16x8xf32>, vector<16x8xf32> -> vector<64x8xf32>
    %27 = vector.shape_cast %26 : vector<64x8xf32> to vector<8x8x8xf32>
    %28 = vector.extract_strided_slice %15 {offsets = [0, 64], sizes = [16, 8], strides = [1, 1]} : vector<16x96xf32> to vector<16x8xf32>
    %29 = vector.extract_strided_slice %15 {offsets = [0, 72], sizes = [16, 8], strides = [1, 1]} : vector<16x96xf32> to vector<16x8xf32>
    %30 = vector.extract_strided_slice %15 {offsets = [0, 80], sizes = [16, 8], strides = [1, 1]} : vector<16x96xf32> to vector<16x8xf32>
    %31 = vector.extract_strided_slice %15 {offsets = [0, 88], sizes = [16, 8], strides = [1, 1]} : vector<16x96xf32> to vector<16x8xf32>
    %32 = tpu.concatenate %28, %29, %30, %31 in 0 : vector<16x8xf32>, vector<16x8xf32>, vector<16x8xf32>, vector<16x8xf32> -> vector<64x8xf32>
    %33 = vector.shape_cast %32 : vector<64x8xf32> to vector<8x8x8xf32>
    "tpu.trace_start"() <{level = 10 : i32, message = "bqd,bkd->bqk"}> : () -> ()
    %cst_18 = arith.constant dense<0.000000e+00> : vector<8x8x8xf32>
    %34 = tpu.matmul %21, %27, %cst_18 {dimension_numbers = #tpu.dot_dimension_numbers<[2], [2], [1], [1], [0, 0, 0, 1, 1, 1], [0], [0]>} : vector<8x8x8xf32>, vector<8x8x8xf32>, vector<8x8x8xf32> -> vector<8x8x8xf32>
    "tpu.trace_stop"() : () -> ()
    %cst_19 = arith.constant dense<0xFF800000> : vector<8x8xf32>
    %35 = vector.multi_reduction <maximumf>, %34, %cst_19 [2] : vector<8x8x8xf32> to vector<8x8xf32>
    %36 = vector.shape_cast %35 : vector<8x8xf32> to vector<8x8x1xf32>
    %37 = vector.broadcast %36 : vector<8x8x1xf32> to vector<8x8x8xf32>
    %38 = arith.subf %34, %37 : vector<8x8x8xf32>
    %39 = math.exp %38 : vector<8x8x8xf32>
    %cst_20 = arith.constant dense<0.000000e+00> : vector<8x8xf32>
    %40 = vector.multi_reduction <add>, %39, %cst_20 [2] : vector<8x8x8xf32> to vector<8x8xf32>
    %41 = vector.shape_cast %40 : vector<8x8xf32> to vector<8x8x1xf32>
    %42 = vector.broadcast %41 : vector<8x8x1xf32> to vector<8x8x8xf32>
    %43 = arith.divf %39, %42 : vector<8x8x8xf32>
    "tpu.trace_start"() <{level = 10 : i32, message = "bqk,bkd->bqd"}> : () -> ()
    %cst_21 = arith.constant dense<0.000000e+00> : vector<8x8x8xf32>
    %44 = tpu.matmul %43, %33, %cst_21 {dimension_numbers = #tpu.dot_dimension_numbers<[2], [1], [1], [2], [0, 0, 0, 1, 1, 2], [0], [0]>} : vector<8x8x8xf32>, vector<8x8x8xf32>, vector<8x8x8xf32> -> vector<8x8x8xf32>
    "tpu.trace_stop"() : () -> ()
    %45 = vector.shape_cast %44 : vector<8x8x8xf32> to vector<4x16x8xf32>
    "tpu.trace_start"() <{level = 10 : i32, message = "hrd,hde->hre"}> : () -> ()
    %cst_22 = arith.constant dense<0.000000e+00> : vector<4x16x32xf32>
    %46 = tpu.matmul %45, %9, %cst_22 {dimension_numbers = #tpu.dot_dimension_numbers<[2], [1], [1], [2], [0, 0, 0, 1, 1, 2], [0], [0]>} : vector<4x16x8xf32>, vector<4x8x32xf32>, vector<4x16x32xf32> -> vector<4x16x32xf32>
    "tpu.trace_stop"() : () -> ()
    %cst_23 = arith.constant dense<0.000000e+00> : vector<16x32xf32>
    %47 = vector.multi_reduction <add>, %46, %cst_23 [0] : vector<4x16x32xf32> to vector<16x32xf32>
    %c3 = arith.constant 3 : index
    %c0_24 = arith.constant 0 : index
    %48 = vector.load %arg8[%c3, %c0_24] : memref<18x128xf32, #tpu.memory_space<vmem>>, vector<1x32xf32>
    %49 = vector.broadcast %48 : vector<1x32xf32> to vector<16x32xf32>
    %50 = arith.addf %47, %49 : vector<16x32xf32>
    %51 = arith.addf %7, %50 : vector<16x32xf32>
    %c6 = arith.constant 6 : index
    %c0_25 = arith.constant 0 : index
    %52 = vector.load %arg8[%c6, %c0_25] : memref<18x128xf32, #tpu.memory_space<vmem>>, vector<1x32xf32>
    %c7 = arith.constant 7 : index
    %c0_26 = arith.constant 0 : index
    %53 = vector.load %arg8[%c7, %c0_26] : memref<18x128xf32, #tpu.memory_space<vmem>>, vector<1x32xf32>
    %cst_27 = arith.constant dense<0.000000e+00> : vector<16xf32>
    %54 = vector.multi_reduction <add>, %51, %cst_27 [1] : vector<16x32xf32> to vector<16xf32>
    %55 = vector.shape_cast %54 : vector<16xf32> to vector<16x1xf32>
    %cst_28 = arith.constant 3.200000e+01 : f32
    %56 = vector.broadcast %cst_28 : f32 to vector<16x1xf32>
    %57 = arith.divf %55, %56 : vector<16x1xf32>
    %58 = vector.broadcast %57 : vector<16x1xf32> to vector<16x32xf32>
    %59 = arith.subf %51, %58 : vector<16x32xf32>
    %60 = arith.mulf %59, %59 : vector<16x32xf32>
    %cst_29 = arith.constant dense<0.000000e+00> : vector<16xf32>
    %61 = vector.multi_reduction <add>, %60, %cst_29 [1] : vector<16x32xf32> to vector<16xf32>
    %62 = vector.shape_cast %61 : vector<16xf32> to vector<16x1xf32>
    %cst_30 = arith.constant 3.200000e+01 : f32
    %63 = vector.broadcast %cst_30 : f32 to vector<16x1xf32>
    %64 = arith.divf %62, %63 : vector<16x1xf32>
    %65 = vector.broadcast %57 : vector<16x1xf32> to vector<16x32xf32>
    %66 = arith.subf %51, %65 : vector<16x32xf32>
    %cst_31 = arith.constant 9.99999974E-6 : f32
    %67 = vector.broadcast %cst_31 : f32 to vector<16x1xf32>
    %68 = arith.addf %64, %67 : vector<16x1xf32>
    %69 = math.rsqrt %68 : vector<16x1xf32>
    %70 = vector.broadcast %69 : vector<16x1xf32> to vector<16x32xf32>
    %71 = arith.mulf %66, %70 : vector<16x32xf32>
    %72 = vector.broadcast %52 : vector<1x32xf32> to vector<16x32xf32>
    %73 = arith.mulf %71, %72 : vector<16x32xf32>
    %74 = vector.broadcast %53 : vector<1x32xf32> to vector<16x32xf32>
    %75 = arith.addf %73, %74 : vector<16x32xf32>
    %cst_32 = arith.constant dense<0.000000e+00> : vector<16x64xf32>
    %76 = tpu.matmul %75, %10, %cst_32 {dimension_numbers = #tpu.dot_dimension_numbers<[1], [0], [0], [1], [0, 0, 1, 1], [], []>} : vector<16x32xf32>, vector<32x64xf32>, vector<16x64xf32> -> vector<16x64xf32>
    %c4 = arith.constant 4 : index
    %c0_33 = arith.constant 0 : index
    %77 = vector.load %arg8[%c4, %c0_33] : memref<18x128xf32, #tpu.memory_space<vmem>>, vector<1x64xf32>
    %78 = vector.broadcast %77 : vector<1x64xf32> to vector<16x64xf32>
    %79 = arith.addf %76, %78 : vector<16x64xf32>
    %cst_34 = arith.constant 0.000000e+00 : f32
    %80 = vector.broadcast %cst_34 : f32 to vector<16x64xf32>
    %81 = arith.maximumf %79, %80 : vector<16x64xf32>
    %cst_35 = arith.constant dense<0.000000e+00> : vector<16x32xf32>
    %82 = tpu.matmul %81, %11, %cst_35 {dimension_numbers = #tpu.dot_dimension_numbers<[1], [0], [0], [1], [0, 0, 1, 1], [], []>} : vector<16x64xf32>, vector<64x32xf32>, vector<16x32xf32> -> vector<16x32xf32>
    %c5 = arith.constant 5 : index
    %c0_36 = arith.constant 0 : index
    %83 = vector.load %arg8[%c5, %c0_36] : memref<18x128xf32, #tpu.memory_space<vmem>>, vector<1x32xf32>
    %84 = vector.broadcast %83 : vector<1x32xf32> to vector<16x32xf32>
    %85 = arith.addf %82, %84 : vector<16x32xf32>
    %86 = arith.addf %75, %85 : vector<16x32xf32>
    %c8 = arith.constant 8 : index
    %c0_37 = arith.constant 0 : index
    %87 = vector.load %arg8[%c8, %c0_37] : memref<18x128xf32, #tpu.memory_space<vmem>>, vector<1x32xf32>
    %c9 = arith.constant 9 : index
    %c0_38 = arith.constant 0 : index
    %88 = vector.load %arg8[%c9, %c0_38] : memref<18x128xf32, #tpu.memory_space<vmem>>, vector<1x32xf32>
    %cst_39 = arith.constant dense<0.000000e+00> : vector<16xf32>
    %89 = vector.multi_reduction <add>, %86, %cst_39 [1] : vector<16x32xf32> to vector<16xf32>
    %90 = vector.shape_cast %89 : vector<16xf32> to vector<16x1xf32>
    %cst_40 = arith.constant 3.200000e+01 : f32
    %91 = vector.broadcast %cst_40 : f32 to vector<16x1xf32>
    %92 = arith.divf %90, %91 : vector<16x1xf32>
    %93 = vector.broadcast %92 : vector<16x1xf32> to vector<16x32xf32>
    %94 = arith.subf %86, %93 : vector<16x32xf32>
    %95 = arith.mulf %94, %94 : vector<16x32xf32>
    %cst_41 = arith.constant dense<0.000000e+00> : vector<16xf32>
    %96 = vector.multi_reduction <add>, %95, %cst_41 [1] : vector<16x32xf32> to vector<16xf32>
    %97 = vector.shape_cast %96 : vector<16xf32> to vector<16x1xf32>
    %cst_42 = arith.constant 3.200000e+01 : f32
    %98 = vector.broadcast %cst_42 : f32 to vector<16x1xf32>
    %99 = arith.divf %97, %98 : vector<16x1xf32>
    %100 = vector.broadcast %92 : vector<16x1xf32> to vector<16x32xf32>
    %101 = arith.subf %86, %100 : vector<16x32xf32>
    %cst_43 = arith.constant 9.99999974E-6 : f32
    %102 = vector.broadcast %cst_43 : f32 to vector<16x1xf32>
    %103 = arith.addf %99, %102 : vector<16x1xf32>
    %104 = math.rsqrt %103 : vector<16x1xf32>
    %105 = vector.broadcast %104 : vector<16x1xf32> to vector<16x32xf32>
    %106 = arith.mulf %101, %105 : vector<16x32xf32>
    %107 = vector.broadcast %87 : vector<1x32xf32> to vector<16x32xf32>
    %108 = arith.mulf %106, %107 : vector<16x32xf32>
    %109 = vector.broadcast %88 : vector<1x32xf32> to vector<16x32xf32>
    %110 = arith.addf %108, %109 : vector<16x32xf32>
    %c32 = arith.constant 32 : index
    %c0_44 = arith.constant 0 : index
    %111 = vector.load %arg4[%c32, %c0_44] : memref<64x96xf32, #tpu.memory_space<vmem>>, vector<32x96xf32>
    %c4_45 = arith.constant 4 : index
    %c0_46 = arith.constant 0 : index
    %c0_47 = arith.constant 0 : index
    %112 = vector.load %arg5[%c4_45, %c0_46, %c0_47] : memref<8x8x32xf32, #tpu.memory_space<vmem>>, vector<4x8x32xf32>
    %c32_48 = arith.constant 32 : index
    %c0_49 = arith.constant 0 : index
    %113 = vector.load %arg6[%c32_48, %c0_49] : memref<64x64xf32, #tpu.memory_space<vmem>>, vector<32x64xf32>
    %c64 = arith.constant 64 : index
    %c0_50 = arith.constant 0 : index
    %114 = vector.load %arg7[%c64, %c0_50] : memref<128x32xf32, #tpu.memory_space<vmem>>, vector<64x32xf32>
    %cst_51 = arith.constant dense<0.000000e+00> : vector<16x96xf32>
    %115 = tpu.matmul %110, %111, %cst_51 {dimension_numbers = #tpu.dot_dimension_numbers<[1], [0], [0], [1], [0, 0, 1, 1], [], []>} : vector<16x32xf32>, vector<32x96xf32>, vector<16x96xf32> -> vector<16x96xf32>
    %c10 = arith.constant 10 : index
    %c0_52 = arith.constant 0 : index
    %116 = vector.load %arg8[%c10, %c0_52] : memref<18x128xf32, #tpu.memory_space<vmem>>, vector<1x96xf32>
    %117 = vector.broadcast %116 : vector<1x96xf32> to vector<16x96xf32>
    %118 = arith.addf %115, %117 : vector<16x96xf32>
    %119 = vector.extract_strided_slice %118 {offsets = [0, 0], sizes = [16, 8], strides = [1, 1]} : vector<16x96xf32> to vector<16x8xf32>
    %120 = vector.extract_strided_slice %118 {offsets = [0, 8], sizes = [16, 8], strides = [1, 1]} : vector<16x96xf32> to vector<16x8xf32>
    %121 = vector.extract_strided_slice %118 {offsets = [0, 16], sizes = [16, 8], strides = [1, 1]} : vector<16x96xf32> to vector<16x8xf32>
    %122 = vector.extract_strided_slice %118 {offsets = [0, 24], sizes = [16, 8], strides = [1, 1]} : vector<16x96xf32> to vector<16x8xf32>
    %123 = tpu.concatenate %119, %120, %121, %122 in 0 : vector<16x8xf32>, vector<16x8xf32>, vector<16x8xf32>, vector<16x8xf32> -> vector<64x8xf32>
    %124 = vector.shape_cast %123 : vector<64x8xf32> to vector<8x8x8xf32>
    %125 = vector.extract_strided_slice %118 {offsets = [0, 32], sizes = [16, 8], strides = [1, 1]} : vector<16x96xf32> to vector<16x8xf32>
    %126 = vector.extract_strided_slice %118 {offsets = [0, 40], sizes = [16, 8], strides = [1, 1]} : vector<16x96xf32> to vector<16x8xf32>
    %127 = vector.extract_strided_slice %118 {offsets = [0, 48], sizes = [16, 8], strides = [1, 1]} : vector<16x96xf32> to vector<16x8xf32>
    %128 = vector.extract_strided_slice %118 {offsets = [0, 56], sizes = [16, 8], strides = [1, 1]} : vector<16x96xf32> to vector<16x8xf32>
    %129 = tpu.concatenate %125, %126, %127, %128 in 0 : vector<16x8xf32>, vector<16x8xf32>, vector<16x8xf32>, vector<16x8xf32> -> vector<64x8xf32>
    %130 = vector.shape_cast %129 : vector<64x8xf32> to vector<8x8x8xf32>
    %131 = vector.extract_strided_slice %118 {offsets = [0, 64], sizes = [16, 8], strides = [1, 1]} : vector<16x96xf32> to vector<16x8xf32>
    %132 = vector.extract_strided_slice %118 {offsets = [0, 72], sizes = [16, 8], strides = [1, 1]} : vector<16x96xf32> to vector<16x8xf32>
    %133 = vector.extract_strided_slice %118 {offsets = [0, 80], sizes = [16, 8], strides = [1, 1]} : vector<16x96xf32> to vector<16x8xf32>
    %134 = vector.extract_strided_slice %118 {offsets = [0, 88], sizes = [16, 8], strides = [1, 1]} : vector<16x96xf32> to vector<16x8xf32>
    %135 = tpu.concatenate %131, %132, %133, %134 in 0 : vector<16x8xf32>, vector<16x8xf32>, vector<16x8xf32>, vector<16x8xf32> -> vector<64x8xf32>
    %136 = vector.shape_cast %135 : vector<64x8xf32> to vector<8x8x8xf32>
    "tpu.trace_start"() <{level = 10 : i32, message = "bqd,bkd->bqk"}> : () -> ()
    %cst_53 = arith.constant dense<0.000000e+00> : vector<8x8x8xf32>
    %137 = tpu.matmul %124, %130, %cst_53 {dimension_numbers = #tpu.dot_dimension_numbers<[2], [2], [1], [1], [0, 0, 0, 1, 1, 1], [0], [0]>} : vector<8x8x8xf32>, vector<8x8x8xf32>, vector<8x8x8xf32> -> vector<8x8x8xf32>
    "tpu.trace_stop"() : () -> ()
    %cst_54 = arith.constant dense<0xFF800000> : vector<8x8xf32>
    %138 = vector.multi_reduction <maximumf>, %137, %cst_54 [2] : vector<8x8x8xf32> to vector<8x8xf32>
    %139 = vector.shape_cast %138 : vector<8x8xf32> to vector<8x8x1xf32>
    %140 = vector.broadcast %139 : vector<8x8x1xf32> to vector<8x8x8xf32>
    %141 = arith.subf %137, %140 : vector<8x8x8xf32>
    %142 = math.exp %141 : vector<8x8x8xf32>
    %cst_55 = arith.constant dense<0.000000e+00> : vector<8x8xf32>
    %143 = vector.multi_reduction <add>, %142, %cst_55 [2] : vector<8x8x8xf32> to vector<8x8xf32>
    %144 = vector.shape_cast %143 : vector<8x8xf32> to vector<8x8x1xf32>
    %145 = vector.broadcast %144 : vector<8x8x1xf32> to vector<8x8x8xf32>
    %146 = arith.divf %142, %145 : vector<8x8x8xf32>
    "tpu.trace_start"() <{level = 10 : i32, message = "bqk,bkd->bqd"}> : () -> ()
    %cst_56 = arith.constant dense<0.000000e+00> : vector<8x8x8xf32>
    %147 = tpu.matmul %146, %136, %cst_56 {dimension_numbers = #tpu.dot_dimension_numbers<[2], [1], [1], [2], [0, 0, 0, 1, 1, 2], [0], [0]>} : vector<8x8x8xf32>, vector<8x8x8xf32>, vector<8x8x8xf32> -> vector<8x8x8xf32>
    "tpu.trace_stop"() : () -> ()
    %148 = vector.shape_cast %147 : vector<8x8x8xf32> to vector<4x16x8xf32>
    "tpu.trace_start"() <{level = 10 : i32, message = "hrd,hde->hre"}> : () -> ()
    %cst_57 = arith.constant dense<0.000000e+00> : vector<4x16x32xf32>
    %149 = tpu.matmul %148, %112, %cst_57 {dimension_numbers = #tpu.dot_dimension_numbers<[2], [1], [1], [2], [0, 0, 0, 1, 1, 2], [0], [0]>} : vector<4x16x8xf32>, vector<4x8x32xf32>, vector<4x16x32xf32> -> vector<4x16x32xf32>
    "tpu.trace_stop"() : () -> ()
    %cst_58 = arith.constant dense<0.000000e+00> : vector<16x32xf32>
    %150 = vector.multi_reduction <add>, %149, %cst_58 [0] : vector<4x16x32xf32> to vector<16x32xf32>
    %c11 = arith.constant 11 : index
    %c0_59 = arith.constant 0 : index
    %151 = vector.load %arg8[%c11, %c0_59] : memref<18x128xf32, #tpu.memory_space<vmem>>, vector<1x32xf32>
    %152 = vector.broadcast %151 : vector<1x32xf32> to vector<16x32xf32>
    %153 = arith.addf %150, %152 : vector<16x32xf32>
    %154 = arith.addf %110, %153 : vector<16x32xf32>
    %c14 = arith.constant 14 : index
    %c0_60 = arith.constant 0 : index
    %155 = vector.load %arg8[%c14, %c0_60] : memref<18x128xf32, #tpu.memory_space<vmem>>, vector<1x32xf32>
    %c15 = arith.constant 15 : index
    %c0_61 = arith.constant 0 : index
    %156 = vector.load %arg8[%c15, %c0_61] : memref<18x128xf32, #tpu.memory_space<vmem>>, vector<1x32xf32>
    %cst_62 = arith.constant dense<0.000000e+00> : vector<16xf32>
    %157 = vector.multi_reduction <add>, %154, %cst_62 [1] : vector<16x32xf32> to vector<16xf32>
    %158 = vector.shape_cast %157 : vector<16xf32> to vector<16x1xf32>
    %cst_63 = arith.constant 3.200000e+01 : f32
    %159 = vector.broadcast %cst_63 : f32 to vector<16x1xf32>
    %160 = arith.divf %158, %159 : vector<16x1xf32>
    %161 = vector.broadcast %160 : vector<16x1xf32> to vector<16x32xf32>
    %162 = arith.subf %154, %161 : vector<16x32xf32>
    %163 = arith.mulf %162, %162 : vector<16x32xf32>
    %cst_64 = arith.constant dense<0.000000e+00> : vector<16xf32>
    %164 = vector.multi_reduction <add>, %163, %cst_64 [1] : vector<16x32xf32> to vector<16xf32>
    %165 = vector.shape_cast %164 : vector<16xf32> to vector<16x1xf32>
    %cst_65 = arith.constant 3.200000e+01 : f32
    %166 = vector.broadcast %cst_65 : f32 to vector<16x1xf32>
    %167 = arith.divf %165, %166 : vector<16x1xf32>
    %168 = vector.broadcast %160 : vector<16x1xf32> to vector<16x32xf32>
    %169 = arith.subf %154, %168 : vector<16x32xf32>
    %cst_66 = arith.constant 9.99999974E-6 : f32
    %170 = vector.broadcast %cst_66 : f32 to vector<16x1xf32>
    %171 = arith.addf %167, %170 : vector<16x1xf32>
    %172 = math.rsqrt %171 : vector<16x1xf32>
    %173 = vector.broadcast %172 : vector<16x1xf32> to vector<16x32xf32>
    %174 = arith.mulf %169, %173 : vector<16x32xf32>
    %175 = vector.broadcast %155 : vector<1x32xf32> to vector<16x32xf32>
    %176 = arith.mulf %174, %175 : vector<16x32xf32>
    %177 = vector.broadcast %156 : vector<1x32xf32> to vector<16x32xf32>
    %178 = arith.addf %176, %177 : vector<16x32xf32>
    %cst_67 = arith.constant dense<0.000000e+00> : vector<16x64xf32>
    %179 = tpu.matmul %178, %113, %cst_67 {dimension_numbers = #tpu.dot_dimension_numbers<[1], [0], [0], [1], [0, 0, 1, 1], [], []>} : vector<16x32xf32>, vector<32x64xf32>, vector<16x64xf32> -> vector<16x64xf32>
    %c12 = arith.constant 12 : index
    %c0_68 = arith.constant 0 : index
    %180 = vector.load %arg8[%c12, %c0_68] : memref<18x128xf32, #tpu.memory_space<vmem>>, vector<1x64xf32>
    %181 = vector.broadcast %180 : vector<1x64xf32> to vector<16x64xf32>
    %182 = arith.addf %179, %181 : vector<16x64xf32>
    %cst_69 = arith.constant 0.000000e+00 : f32
    %183 = vector.broadcast %cst_69 : f32 to vector<16x64xf32>
    %184 = arith.maximumf %182, %183 : vector<16x64xf32>
    %cst_70 = arith.constant dense<0.000000e+00> : vector<16x32xf32>
    %185 = tpu.matmul %184, %114, %cst_70 {dimension_numbers = #tpu.dot_dimension_numbers<[1], [0], [0], [1], [0, 0, 1, 1], [], []>} : vector<16x64xf32>, vector<64x32xf32>, vector<16x32xf32> -> vector<16x32xf32>
    %c13 = arith.constant 13 : index
    %c0_71 = arith.constant 0 : index
    %186 = vector.load %arg8[%c13, %c0_71] : memref<18x128xf32, #tpu.memory_space<vmem>>, vector<1x32xf32>
    %187 = vector.broadcast %186 : vector<1x32xf32> to vector<16x32xf32>
    %188 = arith.addf %185, %187 : vector<16x32xf32>
    %189 = arith.addf %178, %188 : vector<16x32xf32>
    %c16 = arith.constant 16 : index
    %c0_72 = arith.constant 0 : index
    %190 = vector.load %arg8[%c16, %c0_72] : memref<18x128xf32, #tpu.memory_space<vmem>>, vector<1x32xf32>
    %c17 = arith.constant 17 : index
    %c0_73 = arith.constant 0 : index
    %191 = vector.load %arg8[%c17, %c0_73] : memref<18x128xf32, #tpu.memory_space<vmem>>, vector<1x32xf32>
    %cst_74 = arith.constant dense<0.000000e+00> : vector<16xf32>
    %192 = vector.multi_reduction <add>, %189, %cst_74 [1] : vector<16x32xf32> to vector<16xf32>
    %193 = vector.shape_cast %192 : vector<16xf32> to vector<16x1xf32>
    %cst_75 = arith.constant 3.200000e+01 : f32
    %194 = vector.broadcast %cst_75 : f32 to vector<16x1xf32>
    %195 = arith.divf %193, %194 : vector<16x1xf32>
    %196 = vector.broadcast %195 : vector<16x1xf32> to vector<16x32xf32>
    %197 = arith.subf %189, %196 : vector<16x32xf32>
    %198 = arith.mulf %197, %197 : vector<16x32xf32>
    %cst_76 = arith.constant dense<0.000000e+00> : vector<16xf32>
    %199 = vector.multi_reduction <add>, %198, %cst_76 [1] : vector<16x32xf32> to vector<16xf32>
    %200 = vector.shape_cast %199 : vector<16xf32> to vector<16x1xf32>
    %cst_77 = arith.constant 3.200000e+01 : f32
    %201 = vector.broadcast %cst_77 : f32 to vector<16x1xf32>
    %202 = arith.divf %200, %201 : vector<16x1xf32>
    %203 = vector.broadcast %195 : vector<16x1xf32> to vector<16x32xf32>
    %204 = arith.subf %189, %203 : vector<16x32xf32>
    %cst_78 = arith.constant 9.99999974E-6 : f32
    %205 = vector.broadcast %cst_78 : f32 to vector<16x1xf32>
    %206 = arith.addf %202, %205 : vector<16x1xf32>
    %207 = math.rsqrt %206 : vector<16x1xf32>
    %208 = vector.broadcast %207 : vector<16x1xf32> to vector<16x32xf32>
    %209 = arith.mulf %204, %208 : vector<16x32xf32>
    %210 = vector.broadcast %190 : vector<1x32xf32> to vector<16x32xf32>
    %211 = arith.mulf %209, %210 : vector<16x32xf32>
    %212 = vector.broadcast %191 : vector<1x32xf32> to vector<16x32xf32>
    %213 = arith.addf %211, %212 : vector<16x32xf32>
    %c0_79 = arith.constant 0 : index
    %c0_80 = arith.constant 0 : index
    %214 = vector.load %arg3[%c0_79, %c0_80] : memref<32x8xf32, #tpu.memory_space<vmem>>, vector<32x8xf32>
    %cst_81 = arith.constant dense<0.000000e+00> : vector<16x8xf32>
    %215 = tpu.matmul %213, %214, %cst_81 {dimension_numbers = #tpu.dot_dimension_numbers<[1], [0], [0], [1], [0, 0, 1, 1], [], []>} : vector<16x32xf32>, vector<32x8xf32>, vector<16x8xf32> -> vector<16x8xf32>
    %c1 = arith.constant 1 : index
    %c0_82 = arith.constant 0 : index
    %216 = vector.load %arg8[%c1, %c0_82] : memref<18x128xf32, #tpu.memory_space<vmem>>, vector<1x8xf32>
    %217 = vector.broadcast %216 : vector<1x8xf32> to vector<16x8xf32>
    %218 = arith.addf %215, %217 : vector<16x8xf32>
    %219 = vector.shape_cast %218 : vector<16x8xf32> to vector<2x8x8xf32>
    %220 = vector.extract_strided_slice %219 {offsets = [0, 7, 0], sizes = [2, 1, 8], strides = [1, 1, 1]} : vector<2x8x8xf32> to vector<2x1x8xf32>
    %221 = vector.shape_cast %220 : vector<2x1x8xf32> to vector<2x8xf32>
    %c0_83 = arith.constant 0 : index
    %c0_84 = arith.constant 0 : index
    %222 = vector.load %arg9[%c0_83, %c0_84] : memref<2x8xf32, #tpu.memory_space<vmem>>, vector<2x8xf32>
    tpu.vector_store %arg9[%c0_83, %c0_84], %221 {strides = array<i32>} : memref<2x8xf32, #tpu.memory_space<vmem>>, vector<2x8xf32>,
    return
  }
}

</mosaic_0001>

<llo_original>
// kernel: tpu_custom_call.1
$region0: #{tpu_custom_call.1}
  #allocation0 [shape = 'u32[]', space=smem, size = 0x4, offset = 0x4, fixed_abs, tag = 'smem constant byte address 0x4 - core index']
  #allocation1 [shape = 'u32[144,128]{1,0:T(1,128)}', space=vmem, size = 0x12000, scoped, tag = 'internal scratch']
  %s0 = inlined_call_operand.hbm [shape: f32[16,16], index: 0, kind: input, shape index: {}]
  %s1 = inlined_call_operand.hbm [shape: f32[16,32], index: 1, kind: input, shape index: {}]
  %s2 = inlined_call_operand.hbm [shape: f32[16,32], index: 2, kind: input, shape index: {}]
  %s3 = inlined_call_operand.vmem [shape: f32[32,8], index: 3, kind: input, shape index: {}]
  %s4 = inlined_call_operand.vmem [shape: f32[64,96], index: 4, kind: input, shape index: {}]
  %s5 = inlined_call_operand.vmem [shape: f32[8,8,32], index: 5, kind: input, shape index: {}]
  %s6 = inlined_call_operand.vmem [shape: f32[64,64], index: 6, kind: input, shape index: {}]
  %s7 = inlined_call_operand.vmem [shape: f32[128,32], index: 7, kind: input, shape index: {}]
  %s8 = inlined_call_operand.hbm [shape: f32[18,128], index: 8, kind: input, shape index: {}]
  %s9 = inlined_call_operand.hbm [shape: f32[2,8], index: 9, kind: output, shape index: {}]
  %s10 = sld [smem:[#allocation0]]
  $region62: #{tpu_custom_call.1} parent=0
    _
  %s12 = ssub.s32 1, %s10
  %s13 = scalar_select 0, %s12, %s10
  $region1: #{tpu_custom_call.1} parent=0
    #allocation2 [shape = 'u8[8192]{0}', space=vmem, size = 0x2000, scoped, tag = 'input window, operand 0, single buffered']
    #allocation3 [shape = 's32[1]{0}', space=sflag, size = 0x4, scoped, tag = 'scoped memory for tpu_custom_call.1']
    #allocation4 [shape = 's32[1]{0}', space=sflag, size = 0x4, scoped, tag = 'scoped memory for tpu_custom_call.1']
    #allocation5 [shape = 'u8[8192]{0}', space=vmem, size = 0x2000, scoped, tag = 'input window, operand 1, single buffered']
    #allocation6 [shape = 's32[1]{0}', space=sflag, size = 0x4, scoped, tag = 'scoped memory for tpu_custom_call.1']
    #allocation7 [shape = 'u8[8192]{0}', space=vmem, size = 0x2000, scoped, tag = 'input window, operand 2, single buffered']
    #allocation8 [shape = 'u8[12288]{0}', space=vmem, size = 0x3000, scoped, tag = 'input window, operand 8, single buffered']
    #allocation9 [shape = 's32[1]{0}', space=sflag, size = 0x4, scoped, tag = 'scoped memory for tpu_custom_call.1']
    #allocation10 [shape = 'u8[1024]{0}', space=vmem, size = 0x400, scoped, tag = 'output window, operand 0, single buffered']
    %14 = vsyncpa [#allocation3], 0
    %15 = vsyncpa [#allocation6], 0
    %16 = vsyncpa [#allocation9], 0
    %17 = vsyncpa [#allocation4], 0
    // Predicated region
    $region2: #{tpu_custom_call.1} parent=1 // pred_check
      _
    $region3: #{tpu_custom_call.1} parent=1 // pred_check_branch
      %19 = sbr.rel (0) target = $region5
    $region4: #{tpu_custom_call.1} parent=1 // pred_region
      %s21 = ssub.s32 256, 256
      %22 = vsyncadd [#allocation3], %s21
      %s23 = sshll.u32 [#allocation2], 4
      %s24 = int_to_ptr.vmem [resolvable:$true] %s23
      %29 = dma.hbm_to_vmem [thread:$0]  %s0, 256, %s24, [#allocation3], 128, 128, 8
    $region5: #{tpu_custom_call.1} parent=1 // pred_fallthru
      _
    // Predicated region
    $region6: #{tpu_custom_call.1} parent=1 // pred_check
      _
    $region7: #{tpu_custom_call.1} parent=1 // pred_check_branch
      %31 = sbr.rel (0) target = $region9
    $region8: #{tpu_custom_call.1} parent=1 // pred_region
      %s33 = ssub.s32 256, 256
      %34 = vsyncadd [#allocation6], %s33
      %s35 = sshll.u32 [#allocation5], 4
      %s36 = int_to_ptr.vmem [resolvable:$true] %s35
      %41 = dma.hbm_to_vmem [thread:$0]  %s1, 256, %s36, [#allocation6], 128, 128, 8
    $region9: #{tpu_custom_call.1} parent=1 // pred_fallthru
      _
    // Predicated region
    $region10: #{tpu_custom_call.1} parent=1 // pred_check
      _
    $region11: #{tpu_custom_call.1} parent=1 // pred_check_branch
      %43 = sbr.rel (0) target = $region13
    $region12: #{tpu_custom_call.1} parent=1 // pred_region
      %s45 = ssub.s32 256, 256
      %46 = vsyncadd [#allocation6], %s45
      %s47 = sshll.u32 [#allocation7], 4
      %s48 = int_to_ptr.vmem [resolvable:$true] %s47
      %53 = dma.hbm_to_vmem [thread:$0]  %s2, 256, %s48, [#allocation6], 128, 128, 8
    $region13: #{tpu_custom_call.1} parent=1 // pred_fallthru
      _
    // Predicated region
    $region14: #{tpu_custom_call.1} parent=1 // pred_check
      _
    $region15: #{tpu_custom_call.1} parent=1 // pred_check_branch
      %55 = sbr.rel (0) target = $region17
    $region16: #{tpu_custom_call.1} parent=1 // pred_region
      _
    $region17: #{tpu_custom_call.1} parent=1 // pred_fallthru
      _
    // Predicated region
    $region18: #{tpu_custom_call.1} parent=1 // pred_check
      _
    $region19: #{tpu_custom_call.1} parent=1 // pred_check_branch
      %57 = sbr.rel (0) target = $region21
    $region20: #{tpu_custom_call.1} parent=1 // pred_region
      _
    $region21: #{tpu_custom_call.1} parent=1 // pred_fallthru
      _
    // Predicated region
    $region22: #{tpu_custom_call.1} parent=1 // pred_check
      _
    $region23: #{tpu_custom_call.1} parent=1 // pred_check_branch
      %59 = sbr.rel (0) target = $region25
    $region24: #{tpu_custom_call.1} parent=1 // pred_region
      _
    $region25: #{tpu_custom_call.1} parent=1 // pred_fallthru
      _
    // Predicated region
    $region26: #{tpu_custom_call.1} parent=1 // pred_check
      _
    $region27: #{tpu_custom_call.1} parent=1 // pred_check_branch
      %61 = sbr.rel (0) target = $region29
    $region28: #{tpu_custom_call.1} parent=1 // pred_region
      _
    $region29: #{tpu_custom_call.1} parent=1 // pred_fallthru
      _
    // Predicated region
    $region30: #{tpu_custom_call.1} parent=1 // pred_check
      _
    $region31: #{tpu_custom_call.1} parent=1 // pred_check_branch
      %63 = sbr.rel (0) target = $region33
    $region32: #{tpu_custom_call.1} parent=1 // pred_region
      _
    $region33: #{tpu_custom_call.1} parent=1 // pred_fallthru
      _
    // Predicated region
    $region34: #{tpu_custom_call.1} parent=1 // pred_check
      _
    $region35: #{tpu_custom_call.1} parent=1 // pred_check_branch
      %65 = sbr.rel (0) target = $region37
    $region36: #{tpu_custom_call.1} parent=1 // pred_region
      %s67 = ssub.s32 384, 384
      %68 = vsyncadd [#allocation9], %s67
      %s69 = sshll.u32 [#allocation8], 4
      %s70 = int_to_ptr.vmem [resolvable:$true] %s69
      %75 = dma.hbm_to_vmem [thread:$0]  %s8, 384, %s70, [#allocation9], 128, 128, 8
    $region37: #{tpu_custom_call.1} parent=1 // pred_fallthru
      _
    // Predicated region
    $region38: #{tpu_custom_call.1} parent=1 // pred_check
      _
    $region39: #{tpu_custom_call.1} parent=1 // pred_check_branch
      %77 = sbr.rel (0) target = $region41
    $region40: #{tpu_custom_call.1} parent=1 // pred_region
      %78 = dma.done [#allocation3], 256
    $region41: #{tpu_custom_call.1} parent=1 // pred_fallthru
      _
    // Predicated region
    $region42: #{tpu_custom_call.1} parent=1 // pred_check
      _
    $region43: #{tpu_custom_call.1} parent=1 // pred_check_branch
      %80 = sbr.rel (0) target = $region45
    $region44: #{tpu_custom_call.1} parent=1 // pred_region
      %81 = dma.done [#allocation6], 256
    $region45: #{tpu_custom_call.1} parent=1 // pred_fallthru
      _
    // Predicated region
    $region46: #{tpu_custom_call.1} parent=1 // pred_check
      _
    $region47: #{tpu_custom_call.1} parent=1 // pred_check_branch
      %83 = sbr.rel (0) target = $region49
    $region48: #{tpu_custom_call.1} parent=1 // pred_region
      %84 = dma.done [#allocation6], 256
    $region49: #{tpu_custom_call.1} parent=1 // pred_fallthru
      _
    // Predicated region
    $region50: #{tpu_custom_call.1} parent=1 // pred_check
      _
    $region51: #{tpu_custom_call.1} parent=1 // pred_check_branch
      %86 = sbr.rel (0) target = $region53
    $region52: #{tpu_custom_call.1} parent=1 // pred_region
      %87 = dma.done [#allocation9], 384
    $region53: #{tpu_custom_call.1} parent=1 // pred_fallthru
      _
    %v88 = vld [vmem:[#allocation2] sm:$0xff]
    %v89 = vld [vmem:[#allocation2 + $0x8] sm:$0xff]
    %v90 = vld [vmem:[#allocation7] sm:$0xff]
    %v91 = vld [vmem:[#allocation7 + $0x8] sm:$0xff]
    %v92 = vld [vmem:[#allocation8] sm:$0x1]
    %v93 = vlaneseq
    %v94 = vshrl.u32 %v93, 7
    %v95 = vsub.s32 0, %v94
    %v96 = vrot.slane %v92, %v95
    %vm97 = vcmask 130048
    %v99 = vsel %vm97, %v88, 0
    %v102 = vsel %vm97, %v89, 0
    %104 = vmatprep.subr.mxu0 0.0
    %105 = vmatpush1.msra.mxu0 0.0
    %106 = vmatprep.subr.mxu0 0.0
    %107 = vmatpush1.msra.mxu0 0.0
    %108 = vmatprep.subr.mxu0 0.0
    %109 = vmatpush1.msra.mxu0 0.0
    %110 = vmatprep.subr.mxu0 0.0
    %111 = vmatpush1.msra.mxu0 0.0
    %112 = vmatprep.subr.mxu0 0.0
    %113 = vmatpush1.msra.mxu0 0.0
    %114 = vmatprep.subr.mxu0 0.0
    %115 = vmatpush1.msra.mxu0 0.0
    %116 = vmatprep.subr.mxu0 0.0
    %117 = vmatpush1.msra.mxu0 0.0
    %118 = vmatprep.subr.mxu0 0.0
    %119 = vmatpush1.msra.mxu0 0.0
    %120 = vmatprep.subr.mxu0 0.0
    %121 = vmatpush1.msra.mxu0 0.0
    %122 = vmatprep.subr.mxu0 0.0
    %123 = vmatpush1.msra.mxu0 0.0
    %124 = vmatprep.subr.mxu0 0.0
    %125 = vmatpush1.msra.mxu0 0.0
    %126 = vmatprep.subr.mxu0 0.0
    %127 = vmatpush1.msra.mxu0 0.0
    %128 = vmatprep.subr.mxu0 0.0
    %129 = vmatpush1.msra.mxu0 0.0
    %130 = vmatprep.subr.mxu0 0.0
    %131 = vmatpush1.msra.mxu0 0.0
    %132 = vmatprep.subr.mxu0 0.0
    %133 = vmatpush1.msra.mxu0 %v91
    %134 = vmatprep.subr.mxu0 0.0
    %135 = vmatpush1.msra.mxu0 %v90
    %136 = vmatprep.subr.mxu0 0.0
    %137 = vmatpush2.msra.mxu0 0.0
    %138 = vmatprep.subr.mxu0 0.0
    %139 = vmatpush2.msra.mxu0 0.0
    %140 = vmatprep.subr.mxu0 0.0
    %141 = vmatpush2.msra.mxu0 0.0
    %142 = vmatprep.subr.mxu0 0.0
    %143 = vmatpush2.msra.mxu0 0.0
    %144 = vmatprep.subr.mxu0 0.0
    %145 = vmatpush2.msra.mxu0 0.0
    %146 = vmatprep.subr.mxu0 0.0
    %147 = vmatpush2.msra.mxu0 0.0
    %148 = vmatprep.subr.mxu0 0.0
    %149 = vmatpush2.msra.mxu0 0.0
    %150 = vmatprep.subr.mxu0 0.0
    %151 = vmatpush2.msra.mxu0 0.0
    %152 = vmatprep.subr.mxu0 0.0
    %153 = vmatpush2.msra.mxu0 0.0
    %154 = vmatprep.subr.mxu0 0.0
    %155 = vmatpush2.msra.mxu0 0.0
    %156 = vmatprep.subr.mxu0 0.0
    %157 = vmatpush2.msra.mxu0 0.0
    %158 = vmatprep.subr.mxu0 0.0
    %159 = vmatpush2.msra.mxu0 0.0
    %160 = vmatprep.subr.mxu0 0.0
    %161 = vmatpush2.msra.mxu0 0.0
    %162 = vmatprep.subr.mxu0 0.0
    %163 = vmatpush2.msra.mxu0 0.0
    %164 = vmatprep.subr.mxu0 0.0
    %165 = vmatpush2.msra.mxu0 0.0
    %166 = vmatprep.subr.mxu0 0.0
    %167 = vmatpush2.msra.mxu0 0.0
    %168 = vmatprep.mubr.f32.mxu0 0.0
    %169 = vmatmul.mubr.f32.gmra.mxu0 %v99
    %v170 = vpop.f32.mrf.mxu0
    %v171 = vadd.f32 %v96, %v170
    %v172 = vpop.f32.mrf.mxu0
    %173 = vmatprep.mubr.f32.mxu0 0.0
    %174 = vmatmul.mubr.f32.gmra.mxu0 %v102
    %v175 = vpop.f32.mrf.mxu0
    %v176 = vadd.f32 %v96, %v175
    %v177 = vpop.f32.mrf.mxu0
    %178 = vdwg.mxu0
    %v179 = vld [vmem:[#allocation5] sm:$0xff]
    %v180 = vld [vmem:[#allocation5 + $0x8] sm:$0xff]
    %v181 = vadd.f32 %v171, %v179
    %v182 = vadd.f32 %v176, %v180
    %v183 = vld [vmem:[%s4] sm:$0xff]
    %v184 = vld [vmem:[%s4 + $0x8] sm:$0xff]
    %v185 = vld [vmem:[%s4 + $0x10] sm:$0xff]
    %v186 = vld [vmem:[%s4 + $0x18] sm:$0xff]
    %v187 = vld [vmem:[%s5] sm:$0xff]
    %v188 = vld [vmem:[%s5 + $0x8] sm:$0xff]
    %v189 = vld [vmem:[%s5 + $0x10] sm:$0xff]
    %v190 = vld [vmem:[%s5 + $0x18] sm:$0xff]
    %v191 = vld [vmem:[%s6] sm:$0xff]
    %v192 = vld [vmem:[%s6 + $0x8] sm:$0xff]
    %v193 = vld [vmem:[%s6 + $0x10] sm:$0xff]
    %v194 = vld [vmem:[%s6 + $0x18] sm:$0xff]
    %v195 = vld [vmem:[%s7] sm:$0xff]
    %v196 = vld [vmem:[%s7 + $0x8] sm:$0xff]
    %v197 = vld [vmem:[%s7 + $0x10] sm:$0xff]
    %v198 = vld [vmem:[%s7 + $0x18] sm:$0xff]
    %v199 = vld [vmem:[%s7 + $0x20] sm:$0xff]
    %v200 = vld [vmem:[%s7 + $0x28] sm:$0xff]
    %v201 = vld [vmem:[%s7 + $0x30] sm:$0xff]
    %v202 = vld [vmem:[%s7 + $0x38] sm:$0xff]
    %v203 = vld [vmem:[#allocation8 + $0x2] sm:$0x1]
    %v204 = vlaneseq
    %v205 = vshrl.u32 %v204, 7
    %v206 = vsub.s32 0, %v205
    %v207 = vrot.slane %v203, %v206
    %vm208 = vcmask 261120
    %v210 = vsel %vm208, %v181, 0
    %v213 = vsel %vm208, %v182, 0
    %215 = vmatprep.subr.mxu0 0.0
    %216 = vmatpush1.msra.mxu0 0.0
    %217 = vmatprep.subr.mxu0 0.0
    %218 = vmatpush1.msra.mxu0 0.0
    %219 = vmatprep.subr.mxu0 0.0
    %220 = vmatpush1.msra.mxu0 0.0
    %221 = vmatprep.subr.mxu0 0.0
    %222 = vmatpush1.msra.mxu0 0.0
    %223 = vmatprep.subr.mxu0 0.0
    %224 = vmatpush1.msra.mxu0 0.0
    %225 = vmatprep.subr.mxu0 0.0
    %226 = vmatpush1.msra.mxu0 0.0
    %227 = vmatprep.subr.mxu0 0.0
    %228 = vmatpush1.msra.mxu0 0.0
    %229 = vmatprep.subr.mxu0 0.0
    %230 = vmatpush1.msra.mxu0 0.0
    %231 = vmatprep.subr.mxu0 0.0
    %232 = vmatpush1.msra.mxu0 0.0
    %233 = vmatprep.subr.mxu0 0.0
    %234 = vmatpush1.msra.mxu0 0.0
    %235 = vmatprep.subr.mxu0 0.0
    %236 = vmatpush1.msra.mxu0 0.0
    %237 = vmatprep.subr.mxu0 0.0
    %238 = vmatpush1.msra.mxu0 0.0
    %239 = vmatprep.subr.mxu0 0.0
    %240 = vmatpush1.msra.mxu0 %v186
    %241 = vmatprep.subr.mxu0 0.0
    %242 = vmatpush1.msra.mxu0 %v185
    %243 = vmatprep.subr.mxu0 0.0
    %244 = vmatpush1.msra.mxu0 %v184
    %245 = vmatprep.subr.mxu0 0.0
    %246 = vmatpush1.msra.mxu0 %v183
    %247 = vmatprep.subr.mxu0 0.0
    %248 = vmatpush2.msra.mxu0 0.0
    %249 = vmatprep.subr.mxu0 0.0
    %250 = vmatpush2.msra.mxu0 0.0
    %251 = vmatprep.subr.mxu0 0.0
    %252 = vmatpush2.msra.mxu0 0.0
    %253 = vmatprep.subr.mxu0 0.0
    %254 = vmatpush2.msra.mxu0 0.0
    %255 = vmatprep.subr.mxu0 0.0
    %256 = vmatpush2.msra.mxu0 0.0
    %257 = vmatprep.subr.mxu0 0.0
    %258 = vmatpush2.msra.mxu0 0.0
    %259 = vmatprep.subr.mxu0 0.0
    %260 = vmatpush2.msra.mxu0 0.0
    %261 = vmatprep.subr.mxu0 0.0
    %262 = vmatpush2.msra.mxu0 0.0
    %263 = vmatprep.subr.mxu0 0.0
    %264 = vmatpush2.msra.mxu0 0.0
    %265 = vmatprep.subr.mxu0 0.0
    %266 = vmatpush2.msra.mxu0 0.0
    %267 = vmatprep.subr.mxu0 0.0
    %268 = vmatpush2.msra.mxu0 0.0
    %269 = vmatprep.subr.mxu0 0.0
    %270 = vmatpush2.msra.mxu0 0.0
    %271 = vmatprep.subr.mxu0 0.0
    %272 = vmatpush2.msra.mxu0 0.0
    %273 = vmatprep.subr.mxu0 0.0
    %274 = vmatpush2.msra.mxu0 0.0
    %275 = vmatprep.subr.mxu0 0.0
    %276 = vmatpush2.msra.mxu0 0.0
    %277 = vmatprep.subr.mxu0 0.0
    %278 = vmatpush2.msra.mxu0 0.0
    %279 = vmatprep.mubr.f32.mxu0 0.0
    %280 = vmatmul.mubr.f32.gmra.mxu0 %v210
    %v281 = vpop.f32.mrf.mxu0
    %v282 = vadd.f32 %v207, %v281
    %v283 = vpop.f32.mrf.mxu0
    %284 = vmatprep.mubr.f32.mxu0 0.0
    %285 = vmatmul.mubr.f32.gmra.mxu0 %v213
    %v286 = vpop.f32.mrf.mxu0
    %v287 = vadd.f32 %v207, %v286
    %v288 = vpop.f32.mrf.mxu0
    %289 = vdwg.mxu0
    %292 = vrot.lane.b32.xlu0 %v282, 120
    %v293 = vpop.permute.xlu0 %292
    %294 = vrot.lane.b32.xlu0 %v287, 120
    %v295 = vpop.permute.xlu0 %294
    %296 = vrot.lane.b32.xlu0 %v282, 112
    %v297 = vpop.permute.xlu0 %296
    %298 = vrot.lane.b32.xlu0 %v287, 112
    %v299 = vpop.permute.xlu0 %298
    %300 = vrot.lane.b32.xlu0 %v282, 104
    %v301 = vpop.permute.xlu0 %300
    %302 = vrot.lane.b32.xlu0 %v287, 104
    %v303 = vpop.permute.xlu0 %302
    %304 = vrot.lane.b32.xlu0 %v282, 96
    %v305 = vpop.permute.xlu0 %304
    %vm306 = vcmask 64512
    %v307 = vsel %vm306, %v282, 0
    %v309 = vsel %vm306, %v305, 0
    %311 = vmatprep.subr.mxu0 0.0
    %312 = vmatpush1.xpose.msra.mxu0 0.0
    %313 = vmatprep.subr.mxu0 0.0
    %314 = vmatpush1.xpose.msra.mxu0 0.0
    %315 = vmatprep.subr.mxu0 0.0
    %316 = vmatpush1.xpose.msra.mxu0 0.0
    %317 = vmatprep.subr.mxu0 0.0
    %318 = vmatpush1.xpose.msra.mxu0 0.0
    %319 = vmatprep.subr.mxu0 0.0
    %320 = vmatpush1.xpose.msra.mxu0 0.0
    %321 = vmatprep.subr.mxu0 0.0
    %322 = vmatpush1.xpose.msra.mxu0 0.0
    %323 = vmatprep.subr.mxu0 0.0
    %324 = vmatpush1.xpose.msra.mxu0 0.0
    %325 = vmatprep.subr.mxu0 0.0
    %326 = vmatpush1.xpose.msra.mxu0 0.0
    %327 = vmatprep.subr.mxu0 0.0
    %328 = vmatpush1.xpose.msra.mxu0 0.0
    %329 = vmatprep.subr.mxu0 0.0
    %330 = vmatpush1.xpose.msra.mxu0 0.0
    %331 = vmatprep.subr.mxu0 0.0
    %332 = vmatpush1.xpose.msra.mxu0 0.0
    %333 = vmatprep.subr.mxu0 0.0
    %334 = vmatpush1.xpose.msra.mxu0 0.0
    %335 = vmatprep.subr.mxu0 0.0
    %336 = vmatpush1.xpose.msra.mxu0 0.0
    %337 = vmatprep.subr.mxu0 0.0
    %338 = vmatpush1.xpose.msra.mxu0 0.0
    %339 = vmatprep.subr.mxu0 0.0
    %340 = vmatpush1.xpose.msra.mxu0 0.0
    %341 = vmatprep.subr.mxu0 0.0
    %342 = vmatpush1.xpose.msra.mxu0 %v309
    %343 = vmatprep.subr.mxu0 0.0
    %344 = vmatpush2.xpose.msra.mxu0 0.0
    %345 = vmatprep.subr.mxu0 0.0
    %346 = vmatpush2.xpose.msra.mxu0 0.0
    %347 = vmatprep.subr.mxu0 0.0
    %348 = vmatpush2.xpose.msra.mxu0 0.0
    %349 = vmatprep.subr.mxu0 0.0
    %350 = vmatpush2.xpose.msra.mxu0 0.0
    %351 = vmatprep.subr.mxu0 0.0
    %352 = vmatpush2.xpose.msra.mxu0 0.0
    %353 = vmatprep.subr.mxu0 0.0
    %354 = vmatpush2.xpose.msra.mxu0 0.0
    %355 = vmatprep.subr.mxu0 0.0
    %356 = vmatpush2.xpose.msra.mxu0 0.0
    %357 = vmatprep.subr.mxu0 0.0
    %358 = vmatpush2.xpose.msra.mxu0 0.0
    %359 = vmatprep.subr.mxu0 0.0
    %360 = vmatpush2.xpose.msra.mxu0 0.0
    %361 = vmatprep.subr.mxu0 0.0
    %362 = vmatpush2.xpose.msra.mxu0 0.0
    %363 = vmatprep.subr.mxu0 0.0
    %364 = vmatpush2.xpose.msra.mxu0 0.0
    %365 = vmatprep.subr.mxu0 0.0
    %366 = vmatpush2.xpose.msra.mxu0 0.0
    %367 = vmatprep.subr.mxu0 0.0
    %368 = vmatpush2.xpose.msra.mxu0 0.0
    %369 = vmatprep.subr.mxu0 0.0
    %370 = vmatpush2.xpose.msra.mxu0 0.0
    %371 = vmatprep.subr.mxu0 0.0
    %372 = vmatpush2.xpose.msra.mxu0 0.0
    %373 = vmatprep.subr.mxu0 0.0
    %374 = vmatpush2.xpose.msra.mxu0 0.0
    %375 = vmatprep.mubr.f32.mxu0 0.0
    %376 = vmatmul.mubr.f32.gmra.mxu0 %v307
    %v377 = vpop.f32.mrf.mxu0
    %v378 = vadd.f32 0.0, %v377
    %v379 = vpop.f32.mrf.mxu0
    %380 = vdwg.mxu0
    %381 = vrot.lane.b32.xlu0 %v287, 96
    %v382 = vpop.permute.xlu0 %381
    %v383 = vsel %vm306, %v287, 0
    %v385 = vsel %vm306, %v382, 0
    %387 = vmatprep.subr.mxu0 0.0
    %388 = vmatpush1.xpose.msra.mxu0 0.0
    %389 = vmatprep.subr.mxu0 0.0
    %390 = vmatpush1.xpose.msra.mxu0 0.0
    %391 = vmatprep.subr.mxu0 0.0
    %392 = vmatpush1.xpose.msra.mxu0 0.0
    %393 = vmatprep.subr.mxu0 0.0
    %394 = vmatpush1.xpose.msra.mxu0 0.0
    %395 = vmatprep.subr.mxu0 0.0
    %396 = vmatpush1.xpose.msra.mxu0 0.0
    %397 = vmatprep.subr.mxu0 0.0
    %398 = vmatpush1.xpose.msra.mxu0 0.0
    %399 = vmatprep.subr.mxu0 0.0
    %400 = vmatpush1.xpose.msra.mxu0 0.0
    %401 = vmatprep.subr.mxu0 0.0
    %402 = vmatpush1.xpose.msra.mxu0 0.0
    %403 = vmatprep.subr.mxu0 0.0
    %404 = vmatpush1.xpose.msra.mxu0 0.0
    %405 = vmatprep.subr.mxu0 0.0
    %406 = vmatpush1.xpose.msra.mxu0 0.0
    %407 = vmatprep.subr.mxu0 0.0
    %408 = vmatpush1.xpose.msra.mxu0 0.0
    %409 = vmatprep.subr.mxu0 0.0
    %410 = vmatpush1.xpose.msra.mxu0 0.0
    %411 = vmatprep.subr.mxu0 0.0
    %412 = vmatpush1.xpose.msra.mxu0 0.0
    %413 = vmatprep.subr.mxu0 0.0
    %414 = vmatpush1.xpose.msra.mxu0 0.0
    %415 = vmatprep.subr.mxu0 0.0
    %416 = vmatpush1.xpose.msra.mxu0 0.0
    %417 = vmatprep.subr.mxu0 0.0
    %418 = vmatpush1.xpose.msra.mxu0 %v385
    %419 = vmatprep.subr.mxu0 0.0
    %420 = vmatpush2.xpose.msra.mxu0 0.0
    %421 = vmatprep.subr.mxu0 0.0
    %422 = vmatpush2.xpose.msra.mxu0 0.0
    %423 = vmatprep.subr.mxu0 0.0
    %424 = vmatpush2.xpose.msra.mxu0 0.0
    %425 = vmatprep.subr.mxu0 0.0
    %426 = vmatpush2.xpose.msra.mxu0 0.0
    %427 = vmatprep.subr.mxu0 0.0
    %428 = vmatpush2.xpose.msra.mxu0 0.0
    %429 = vmatprep.subr.mxu0 0.0
    %430 = vmatpush2.xpose.msra.mxu0 0.0
    %431 = vmatprep.subr.mxu0 0.0
    %432 = vmatpush2.xpose.msra.mxu0 0.0
    %433 = vmatprep.subr.mxu0 0.0
    %434 = vmatpush2.xpose.msra.mxu0 0.0
    %435 = vmatprep.subr.mxu0 0.0
    %436 = vmatpush2.xpose.msra.mxu0 0.0
    %437 = vmatprep.subr.mxu0 0.0
    %438 = vmatpush2.xpose.msra.mxu0 0.0
    %439 = vmatprep.subr.mxu0 0.0
    %440 = vmatpush2.xpose.msra.mxu0 0.0
    %441 = vmatprep.subr.mxu0 0.0
    %442 = vmatpush2.xpose.msra.mxu0 0.0
    %443 = vmatprep.subr.mxu0 0.0
    %444 = vmatpush2.xpose.msra.mxu0 0.0
    %445 = vmatprep.subr.mxu0 0.0
    %446 = vmatpush2.xpose.msra.mxu0 0.0
    %447 = vmatprep.subr.mxu0 0.0
    %448 = vmatpush2.xpose.msra.mxu0 0.0
    %449 = vmatprep.subr.mxu0 0.0
    %450 = vmatpush2.xpose.msra.mxu0 0.0
    %451 = vmatprep.mubr.f32.mxu0 0.0
    %452 = vmatmul.mubr.f32.gmra.mxu0 %v383
    %v453 = vpop.f32.mrf.mxu0
    %v454 = vadd.f32 0.0, %v453
    %v455 = vpop.f32.mrf.mxu0
    %456 = vdwg.mxu0
    %457 = vrot.lane.b32.xlu0 %v293, 96
    %v458 = vpop.permute.xlu0 %457
    %v459 = vsel %vm306, %v293, 0
    %v461 = vsel %vm306, %v458, 0
    %463 = vmatprep.subr.mxu0 0.0
    %464 = vmatpush1.xpose.msra.mxu0 0.0
    %465 = vmatprep.subr.mxu0 0.0
    %466 = vmatpush1.xpose.msra.mxu0 0.0
    %467 = vmatprep.subr.mxu0 0.0
    %468 = vmatpush1.xpose.msra.mxu0 0.0
    %469 = vmatprep.subr.mxu0 0.0
    %470 = vmatpush1.xpose.msra.mxu0 0.0
    %471 = vmatprep.subr.mxu0 0.0
    %472 = vmatpush1.xpose.msra.mxu0 0.0
    %473 = vmatprep.subr.mxu0 0.0
    %474 = vmatpush1.xpose.msra.mxu0 0.0
    %475 = vmatprep.subr.mxu0 0.0
    %476 = vmatpush1.xpose.msra.mxu0 0.0
    %477 = vmatprep.subr.mxu0 0.0
    %478 = vmatpush1.xpose.msra.mxu0 0.0
    %479 = vmatprep.subr.mxu0 0.0
    %480 = vmatpush1.xpose.msra.mxu0 0.0
    %481 = vmatprep.subr.mxu0 0.0
    %482 = vmatpush1.xpose.msra.mxu0 0.0
    %483 = vmatprep.subr.mxu0 0.0
    %484 = vmatpush1.xpose.msra.mxu0 0.0
    %485 = vmatprep.subr.mxu0 0.0
    %486 = vmatpush1.xpose.msra.mxu0 0.0
    %487 = vmatprep.subr.mxu0 0.0
    %488 = vmatpush1.xpose.msra.mxu0 0.0
    %489 = vmatprep.subr.mxu0 0.0
    %490 = vmatpush1.xpose.msra.mxu0 0.0
    %491 = vmatprep.subr.mxu0 0.0
    %492 = vmatpush1.xpose.msra.mxu0 0.0
    %493 = vmatprep.subr.mxu0 0.0
    %494 = vmatpush1.xpose.msra.mxu0 %v461
    %495 = vmatprep.subr.mxu0 0.0
    %496 = vmatpush2.xpose.msra.mxu0 0.0
    %497 = vmatprep.subr.mxu0 0.0
    %498 = vmatpush2.xpose.msra.mxu0 0.0
    %499 = vmatprep.subr.mxu0 0.0
    %500 = vmatpush2.xpose.msra.mxu0 0.0
    %501 = vmatprep.subr.mxu0 0.0
    %502 = vmatpush2.xpose.msra.mxu0 0.0
    %503 = vmatprep.subr.mxu0 0.0
    %504 = vmatpush2.xpose.msra.mxu0 0.0
    %505 = vmatprep.subr.mxu0 0.0
    %506 = vmatpush2.xpose.msra.mxu0 0.0
    %507 = vmatprep.subr.mxu0 0.0
    %508 = vmatpush2.xpose.msra.mxu0 0.0
    %509 = vmatprep.subr.mxu0 0.0
    %510 = vmatpush2.xpose.msra.mxu0 0.0
    %511 = vmatprep.subr.mxu0 0.0
    %512 = vmatpush2.xpose.msra.mxu0 0.0
    %513 = vmatprep.subr.mxu0 0.0
    %514 = vmatpush2.xpose.msra.mxu0 0.0
    %515 = vmatprep.subr.mxu0 0.0
    %516 = vmatpush2.xpose.msra.mxu0 0.0
    %517 = vmatprep.subr.mxu0 0.0
    %518 = vmatpush2.xpose.msra.mxu0 0.0
    %519 = vmatprep.subr.mxu0 0.0
    %520 = vmatpush2.xpose.msra.mxu0 0.0
    %521 = vmatprep.subr.mxu0 0.0
    %522 = vmatpush2.xpose.msra.mxu0 0.0
    %523 = vmatprep.subr.mxu0 0.0
    %524 = vmatpush2.xpose.msra.mxu0 0.0
    %525 = vmatprep.subr.mxu0 0.0
    %526 = vmatpush2.xpose.msra.mxu0 0.0
    %527 = vmatprep.mubr.f32.mxu0 0.0
    %528 = vmatmul.mubr.f32.gmra.mxu0 %v459
    %v529 = vpop.f32.mrf.mxu0
    %v530 = vadd.f32 0.0, %v529
    %v531 = vpop.f32.mrf.mxu0
    %532 = vdwg.mxu0
    %533 = vrot.lane.b32.xlu0 %v295, 96
    %v534 = vpop.permute.xlu0 %533
    %v535 = vsel %vm306, %v295, 0
    %v537 = vsel %vm306, %v534, 0
    %539 = vmatprep.subr.mxu0 0.0
    %540 = vmatpush1.xpose.msra.mxu0 0.0
    %541 = vmatprep.subr.mxu0 0.0
    %542 = vmatpush1.xpose.msra.mxu0 0.0
    %543 = vmatprep.subr.mxu0 0.0
    %544 = vmatpush1.xpose.msra.mxu0 0.0
    %545 = vmatprep.subr.mxu0 0.0
    %546 = vmatpush1.xpose.msra.mxu0 0.0
    %547 = vmatprep.subr.mxu0 0.0
    %548 = vmatpush1.xpose.msra.mxu0 0.0
    %549 = vmatprep.subr.mxu0 0.0
    %550 = vmatpush1.xpose.msra.mxu0 0.0
    %551 = vmatprep.subr.mxu0 0.0
    %552 = vmatpush1.xpose.msra.mxu0 0.0
    %553 = vmatprep.subr.mxu0 0.0
    %554 = vmatpush1.xpose.msra.mxu0 0.0
    %555 = vmatprep.subr.mxu0 0.0
    %556 = vmatpush1.xpose.msra.mxu0 0.0
    %557 = vmatprep.subr.mxu0 0.0
    %558 = vmatpush1.xpose.msra.mxu0 0.0
    %559 = vmatprep.subr.mxu0 0.0
    %560 = vmatpush1.xpose.msra.mxu0 0.0
    %561 = vmatprep.subr.mxu0 0.0
    %562 = vmatpush1.xpose.msra.mxu0 0.0
    %563 = vmatprep.subr.mxu0 0.0
    %564 = vmatpush1.xpose.msra.mxu0 0.0
    %565 = vmatprep.subr.mxu0 0.0
    %566 = vmatpush1.xpose.msra.mxu0 0.0
    %567 = vmatprep.subr.mxu0 0.0
    %568 = vmatpush1.xpose.msra.mxu0 0.0
    %569 = vmatprep.subr.mxu0 0.0
    %570 = vmatpush1.xpose.msra.mxu0 %v537
    %571 = vmatprep.subr.mxu0 0.0
    %572 = vmatpush2.xpose.msra.mxu0 0.0
    %573 = vmatprep.subr.mxu0 0.0
    %574 = vmatpush2.xpose.msra.mxu0 0.0
    %575 = vmatprep.subr.mxu0 0.0
    %576 = vmatpush2.xpose.msra.mxu0 0.0
    %577 = vmatprep.subr.mxu0 0.0
    %578 = vmatpush2.xpose.msra.mxu0 0.0
    %579 = vmatprep.subr.mxu0 0.0
    %580 = vmatpush2.xpose.msra.mxu0 0.0
    %581 = vmatprep.subr.mxu0 0.0
    %582 = vmatpush2.xpose.msra.mxu0 0.0
    %583 = vmatprep.subr.mxu0 0.0
    %584 = vmatpush2.xpose.msra.mxu0 0.0
    %585 = vmatprep.subr.mxu0 0.0
    %586 = vmatpush2.xpose.msra.mxu0 0.0
    %587 = vmatprep.subr.mxu0 0.0
    %588 = vmatpush2.xpose.msra.mxu0 0.0
    %589 = vmatprep.subr.mxu0 0.0
    %590 = vmatpush2.xpose.msra.mxu0 0.0
    %591 = vmatprep.subr.mxu0 0.0
    %592 = vmatpush2.xpose.msra.mxu0 0.0
    %593 = vmatprep.subr.mxu0 0.0
    %594 = vmatpush2.xpose.msra.mxu0 0.0
    %595 = vmatprep.subr.mxu0 0.0
    %596 = vmatpush2.xpose.msra.mxu0 0.0
    %597 = vmatprep.subr.mxu0 0.0
    %598 = vmatpush2.xpose.msra.mxu0 0.0
    %599 = vmatprep.subr.mxu0 0.0
    %600 = vmatpush2.xpose.msra.mxu0 0.0
    %601 = vmatprep.subr.mxu0 0.0
    %602 = vmatpush2.xpose.msra.mxu0 0.0
    %603 = vmatprep.mubr.f32.mxu0 0.0
    %604 = vmatmul.mubr.f32.gmra.mxu0 %v535
    %v605 = vpop.f32.mrf.mxu0
    %v606 = vadd.f32 0.0, %v605
    %v607 = vpop.f32.mrf.mxu0
    %608 = vdwg.mxu0
    %609 = vrot.lane.b32.xlu0 %v297, 96
    %v610 = vpop.permute.xlu0 %609
    %v611 = vsel %vm306, %v297, 0
    %v613 = vsel %vm306, %v610, 0
    %615 = vmatprep.subr.mxu0 0.0
    %616 = vmatpush1.xpose.msra.mxu0 0.0
    %617 = vmatprep.subr.mxu0 0.0
    %618 = vmatpush1.xpose.msra.mxu0 0.0
    %619 = vmatprep.subr.mxu0 0.0
    %620 = vmatpush1.xpose.msra.mxu0 0.0
    %621 = vmatprep.subr.mxu0 0.0
    %622 = vmatpush1.xpose.msra.mxu0 0.0
    %623 = vmatprep.subr.mxu0 0.0
    %624 = vmatpush1.xpose.msra.mxu0 0.0
    %625 = vmatprep.subr.mxu0 0.0
    %626 = vmatpush1.xpose.msra.mxu0 0.0
    %627 = vmatprep.subr.mxu0 0.0
    %628 = vmatpush1.xpose.msra.mxu0 0.0
    %629 = vmatprep.subr.mxu0 0.0
    %630 = vmatpush1.xpose.msra.mxu0 0.0
    %631 = vmatprep.subr.mxu0 0.0
    %632 = vmatpush1.xpose.msra.mxu0 0.0
    %633 = vmatprep.subr.mxu0 0.0
    %634 = vmatpush1.xpose.msra.mxu0 0.0
    %635 = vmatprep.subr.mxu0 0.0
    %636 = vmatpush1.xpose.msra.mxu0 0.0
    %637 = vmatprep.subr.mxu0 0.0
    %638 = vmatpush1.xpose.msra.mxu0 0.0
    %639 = vmatprep.subr.mxu0 0.0
    %640 = vmatpush1.xpose.msra.mxu0 0.0
    %641 = vmatprep.subr.mxu0 0.0
    %642 = vmatpush1.xpose.msra.mxu0 0.0
    %643 = vmatprep.subr.mxu0 0.0
    %644 = vmatpush1.xpose.msra.mxu0 0.0
    %645 = vmatprep.subr.mxu0 0.0
    %646 = vmatpush1.xpose.msra.mxu0 %v613
    %647 = vmatprep.subr.mxu0 0.0
    %648 = vmatpush2.xpose.msra.mxu0 0.0
    %649 = vmatprep.subr.mxu0 0.0
    %650 = vmatpush2.xpose.msra.mxu0 0.0
    %651 = vmatprep.subr.mxu0 0.0
    %652 = vmatpush2.xpose.msra.mxu0 0.0
    %653 = vmatprep.subr.mxu0 0.0
    %654 = vmatpush2.xpose.msra.mxu0 0.0
    %655 = vmatprep.subr.mxu0 0.0
    %656 = vmatpush2.xpose.msra.mxu0 0.0
    %657 = vmatprep.subr.mxu0 0.0
    %658 = vmatpush2.xpose.msra.mxu0 0.0
    %659 = vmatprep.subr.mxu0 0.0
    %660 = vmatpush2.xpose.msra.mxu0 0.0
    %661 = vmatprep.subr.mxu0 0.0
    %662 = vmatpush2.xpose.msra.mxu0 0.0
    %663 = vmatprep.subr.mxu0 0.0
    %664 = vmatpush2.xpose.msra.mxu0 0.0
    %665 = vmatprep.subr.mxu0 0.0
    %666 = vmatpush2.xpose.msra.mxu0 0.0
    %667 = vmatprep.subr.mxu0 0.0
    %668 = vmatpush2.xpose.msra.mxu0 0.0
    %669 = vmatprep.subr.mxu0 0.0
    %670 = vmatpush2.xpose.msra.mxu0 0.0
    %671 = vmatprep.subr.mxu0 0.0
    %672 = vmatpush2.xpose.msra.mxu0 0.0
    %673 = vmatprep.subr.mxu0 0.0
    %674 = vmatpush2.xpose.msra.mxu0 0.0
    %675 = vmatprep.subr.mxu0 0.0
    %676 = vmatpush2.xpose.msra.mxu0 0.0
    %677 = vmatprep.subr.mxu0 0.0
    %678 = vmatpush2.xpose.msra.mxu0 0.0
    %679 = vmatprep.mubr.f32.mxu0 0.0
    %680 = vmatmul.mubr.f32.gmra.mxu0 %v611
    %v681 = vpop.f32.mrf.mxu0
    %v682 = vadd.f32 0.0, %v681
    %v683 = vpop.f32.mrf.mxu0
    %684 = vdwg.mxu0
    %685 = vrot.lane.b32.xlu0 %v299, 96
    %v686 = vpop.permute.xlu0 %685
    %v687 = vsel %vm306, %v299, 0
    %v689 = vsel %vm306, %v686, 0
    %691 = vmatprep.subr.mxu0 0.0
    %692 = vmatpush1.xpose.msra.mxu0 0.0
    %693 = vmatprep.subr.mxu0 0.0
    %694 = vmatpush1.xpose.msra.mxu0 0.0
    %695 = vmatprep.subr.mxu0 0.0
    %696 = vmatpush1.xpose.msra.mxu0 0.0
    %697 = vmatprep.subr.mxu0 0.0
    %698 = vmatpush1.xpose.msra.mxu0 0.0
    %699 = vmatprep.subr.mxu0 0.0
    %700 = vmatpush1.xpose.msra.mxu0 0.0
    %701 = vmatprep.subr.mxu0 0.0
    %702 = vmatpush1.xpose.msra.mxu0 0.0
    %703 = vmatprep.subr.mxu0 0.0
    %704 = vmatpush1.xpose.msra.mxu0 0.0
    %705 = vmatprep.subr.mxu0 0.0
    %706 = vmatpush1.xpose.msra.mxu0 0.0
    %707 = vmatprep.subr.mxu0 0.0
    %708 = vmatpush1.xpose.msra.mxu0 0.0
    %709 = vmatprep.subr.mxu0 0.0
    %710 = vmatpush1.xpose.msra.mxu0 0.0
    %711 = vmatprep.subr.mxu0 0.0
    %712 = vmatpush1.xpose.msra.mxu0 0.0
    %713 = vmatprep.subr.mxu0 0.0
    %714 = vmatpush1.xpose.msra.mxu0 0.0
    %715 = vmatprep.subr.mxu0 0.0
    %716 = vmatpush1.xpose.msra.mxu0 0.0
    %717 = vmatprep.subr.mxu0 0.0
    %718 = vmatpush1.xpose.msra.mxu0 0.0
    %719 = vmatprep.subr.mxu0 0.0
    %720 = vmatpush1.xpose.msra.mxu0 0.0
    %721 = vmatprep.subr.mxu0 0.0
    %722 = vmatpush1.xpose.msra.mxu0 %v689
    %723 = vmatprep.subr.mxu0 0.0
    %724 = vmatpush2.xpose.msra.mxu0 0.0
    %725 = vmatprep.subr.mxu0 0.0
    %726 = vmatpush2.xpose.msra.mxu0 0.0
    %727 = vmatprep.subr.mxu0 0.0
    %728 = vmatpush2.xpose.msra.mxu0 0.0
    %729 = vmatprep.subr.mxu0 0.0
    %730 = vmatpush2.xpose.msra.mxu0 0.0
    %731 = vmatprep.subr.mxu0 0.0
    %732 = vmatpush2.xpose.msra.mxu0 0.0
    %733 = vmatprep.subr.mxu0 0.0
    %734 = vmatpush2.xpose.msra.mxu0 0.0
    %735 = vmatprep.subr.mxu0 0.0
    %736 = vmatpush2.xpose.msra.mxu0 0.0
    %737 = vmatprep.subr.mxu0 0.0
    %738 = vmatpush2.xpose.msra.mxu0 0.0
    %739 = vmatprep.subr.mxu0 0.0
    %740 = vmatpush2.xpose.msra.mxu0 0.0
    %741 = vmatprep.subr.mxu0 0.0
    %742 = vmatpush2.xpose.msra.mxu0 0.0
    %743 = vmatprep.subr.mxu0 0.0
    %744 = vmatpush2.xpose.msra.mxu0 0.0
    %745 = vmatprep.subr.mxu0 0.0
    %746 = vmatpush2.xpose.msra.mxu0 0.0
    %747 = vmatprep.subr.mxu0 0.0
    %748 = vmatpush2.xpose.msra.mxu0 0.0
    %749 = vmatprep.subr.mxu0 0.0
    %750 = vmatpush2.xpose.msra.mxu0 0.0
    %751 = vmatprep.subr.mxu0 0.0
    %752 = vmatpush2.xpose.msra.mxu0 0.0
    %753 = vmatprep.subr.mxu0 0.0
    %754 = vmatpush2.xpose.msra.mxu0 0.0
    %755 = vmatprep.mubr.f32.mxu0 0.0
    %756 = vmatmul.mubr.f32.gmra.mxu0 %v687
    %v757 = vpop.f32.mrf.mxu0
    %v758 = vadd.f32 0.0, %v757
    %v759 = vpop.f32.mrf.mxu0
    %760 = vdwg.mxu0
    %761 = vrot.lane.b32.xlu0 %v301, 96
    %v762 = vpop.permute.xlu0 %761
    %v763 = vsel %vm306, %v301, 0
    %v765 = vsel %vm306, %v762, 0
    %767 = vmatprep.subr.mxu0 0.0
    %768 = vmatpush1.xpose.msra.mxu0 0.0
    %769 = vmatprep.subr.mxu0 0.0
    %770 = vmatpush1.xpose.msra.mxu0 0.0
    %771 = vmatprep.subr.mxu0 0.0
    %772 = vmatpush1.xpose.msra.mxu0 0.0
    %773 = vmatprep.subr.mxu0 0.0
    %774 = vmatpush1.xpose.msra.mxu0 0.0
    %775 = vmatprep.subr.mxu0 0.0
    %776 = vmatpush1.xpose.msra.mxu0 0.0
    %777 = vmatprep.subr.mxu0 0.0
    %778 = vmatpush1.xpose.msra.mxu0 0.0
    %779 = vmatprep.subr.mxu0 0.0
    %780 = vmatpush1.xpose.msra.mxu0 0.0
    %781 = vmatprep.subr.mxu0 0.0
    %782 = vmatpush1.xpose.msra.mxu0 0.0
    %783 = vmatprep.subr.mxu0 0.0
    %784 = vmatpush1.xpose.msra.mxu0 0.0
    %785 = vmatprep.subr.mxu0 0.0
    %786 = vmatpush1.xpose.msra.mxu0 0.0
    %787 = vmatprep.subr.mxu0 0.0
    %788 = vmatpush1.xpose.msra.mxu0 0.0
    %789 = vmatprep.subr.mxu0 0.0
    %790 = vmatpush1.xpose.msra.mxu0 0.0
    %791 = vmatprep.subr.mxu0 0.0
    %792 = vmatpush1.xpose.msra.mxu0 0.0
    %793 = vmatprep.subr.mxu0 0.0
    %794 = vmatpush1.xpose.msra.mxu0 0.0
    %795 = vmatprep.subr.mxu0 0.0
    %796 = vmatpush1.xpose.msra.mxu0 0.0
    %797 = vmatprep.subr.mxu0 0.0
    %798 = vmatpush1.xpose.msra.mxu0 %v765
    %799 = vmatprep.subr.mxu0 0.0
    %800 = vmatpush2.xpose.msra.mxu0 0.0
    %801 = vmatprep.subr.mxu0 0.0
    %802 = vmatpush2.xpose.msra.mxu0 0.0
    %803 = vmatprep.subr.mxu0 0.0
    %804 = vmatpush2.xpose.msra.mxu0 0.0
    %805 = vmatprep.subr.mxu0 0.0
    %806 = vmatpush2.xpose.msra.mxu0 0.0
    %807 = vmatprep.subr.mxu0 0.0
    %808 = vmatpush2.xpose.msra.mxu0 0.0
    %809 = vmatprep.subr.mxu0 0.0
    %810 = vmatpush2.xpose.msra.mxu0 0.0
    %811 = vmatprep.subr.mxu0 0.0
    %812 = vmatpush2.xpose.msra.mxu0 0.0
    %813 = vmatprep.subr.mxu0 0.0
    %814 = vmatpush2.xpose.msra.mxu0 0.0
    %815 = vmatprep.subr.mxu0 0.0
    %816 = vmatpush2.xpose.msra.mxu0 0.0
    %817 = vmatprep.subr.mxu0 0.0
    %818 = vmatpush2.xpose.msra.mxu0 0.0
    %819 = vmatprep.subr.mxu0 0.0
    %820 = vmatpush2.xpose.msra.mxu0 0.0
    %821 = vmatprep.subr.mxu0 0.0
    %822 = vmatpush2.xpose.msra.mxu0 0.0
    %823 = vmatprep.subr.mxu0 0.0
    %824 = vmatpush2.xpose.msra.mxu0 0.0
    %825 = vmatprep.subr.mxu0 0.0
    %826 = vmatpush2.xpose.msra.mxu0 0.0
    %827 = vmatprep.subr.mxu0 0.0
    %828 = vmatpush2.xpose.msra.mxu0 0.0
    %829 = vmatprep.subr.mxu0 0.0
    %830 = vmatpush2.xpose.msra.mxu0 0.0
    %831 = vmatprep.mubr.f32.mxu0 0.0
    %832 = vmatmul.mubr.f32.gmra.mxu0 %v763
    %v833 = vpop.f32.mrf.mxu0
    %v834 = vadd.f32 0.0, %v833
    %v835 = vpop.f32.mrf.mxu0
    %836 = vdwg.mxu0
    %837 = vrot.lane.b32.xlu0 %v303, 96
    %v838 = vpop.permute.xlu0 %837
    %v839 = vsel %vm306, %v303, 0
    %v841 = vsel %vm306, %v838, 0
    %843 = vmatprep.subr.mxu0 0.0
    %844 = vmatpush1.xpose.msra.mxu0 0.0
    %845 = vmatprep.subr.mxu0 0.0
    %846 = vmatpush1.xpose.msra.mxu0 0.0
    %847 = vmatprep.subr.mxu0 0.0
    %848 = vmatpush1.xpose.msra.mxu0 0.0
    %849 = vmatprep.subr.mxu0 0.0
    %850 = vmatpush1.xpose.msra.mxu0 0.0
    %851 = vmatprep.subr.mxu0 0.0
    %852 = vmatpush1.xpose.msra.mxu0 0.0
    %853 = vmatprep.subr.mxu0 0.0
    %854 = vmatpush1.xpose.msra.mxu0 0.0
    %855 = vmatprep.subr.mxu0 0.0
    %856 = vmatpush1.xpose.msra.mxu0 0.0
    %857 = vmatprep.subr.mxu0 0.0
    %858 = vmatpush1.xpose.msra.mxu0 0.0
    %859 = vmatprep.subr.mxu0 0.0
    %860 = vmatpush1.xpose.msra.mxu0 0.0
    %861 = vmatprep.subr.mxu0 0.0
    %862 = vmatpush1.xpose.msra.mxu0 0.0
    %863 = vmatprep.subr.mxu0 0.0
    %864 = vmatpush1.xpose.msra.mxu0 0.0
    %865 = vmatprep.subr.mxu0 0.0
    %866 = vmatpush1.xpose.msra.mxu0 0.0
    %867 = vmatprep.subr.mxu0 0.0
    %868 = vmatpush1.xpose.msra.mxu0 0.0
    %869 = vmatprep.subr.mxu0 0.0
    %870 = vmatpush1.xpose.msra.mxu0 0.0
    %871 = vmatprep.subr.mxu0 0.0
    %872 = vmatpush1.xpose.msra.mxu0 0.0
    %873 = vmatprep.subr.mxu0 0.0
    %874 = vmatpush1.xpose.msra.mxu0 %v841
    %875 = vmatprep.subr.mxu0 0.0
    %876 = vmatpush2.xpose.msra.mxu0 0.0
    %877 = vmatprep.subr.mxu0 0.0
    %878 = vmatpush2.xpose.msra.mxu0 0.0
    %879 = vmatprep.subr.mxu0 0.0
    %880 = vmatpush2.xpose.msra.mxu0 0.0
    %881 = vmatprep.subr.mxu0 0.0
    %882 = vmatpush2.xpose.msra.mxu0 0.0
    %883 = vmatprep.subr.mxu0 0.0
    %884 = vmatpush2.xpose.msra.mxu0 0.0
    %885 = vmatprep.subr.mxu0 0.0
    %886 = vmatpush2.xpose.msra.mxu0 0.0
    %887 = vmatprep.subr.mxu0 0.0
    %888 = vmatpush2.xpose.msra.mxu0 0.0
    %889 = vmatprep.subr.mxu0 0.0
    %890 = vmatpush2.xpose.msra.mxu0 0.0
    %891 = vmatprep.subr.mxu0 0.0
    %892 = vmatpush2.xpose.msra.mxu0 0.0
    %893 = vmatprep.subr.mxu0 0.0
    %894 = vmatpush2.xpose.msra.mxu0 0.0
    %895 = vmatprep.subr.mxu0 0.0
    %896 = vmatpush2.xpose.msra.mxu0 0.0
    %897 = vmatprep.subr.mxu0 0.0
    %898 = vmatpush2.xpose.msra.mxu0 0.0
    %899 = vmatprep.subr.mxu0 0.0
    %900 = vmatpush2.xpose.msra.mxu0 0.0
    %901 = vmatprep.subr.mxu0 0.0
    %902 = vmatpush2.xpose.msra.mxu0 0.0
    %903 = vmatprep.subr.mxu0 0.0
    %904 = vmatpush2.xpose.msra.mxu0 0.0
    %905 = vmatprep.subr.mxu0 0.0
    %906 = vmatpush2.xpose.msra.mxu0 0.0
    %907 = vmatprep.mubr.f32.mxu0 0.0
    %908 = vmatmul.mubr.f32.gmra.mxu0 %v839
    %v909 = vpop.f32.mrf.mxu0
    %v910 = vadd.f32 0.0, %v909
    %v911 = vpop.f32.mrf.mxu0
    %912 = vdwg.mxu0
    %v913 = vsel %vm306, %v378, -inf
    %914 = vmax.xlane.f32.xlu0 %v913
    %v915 = vpop.xlane.xlu0 %914
    %v916 = vsel %vm306, %v454, -inf
    %917 = vmax.xlane.f32.xlu0 %v916
    %v918 = vpop.xlane.xlu0 %917
    %v919 = vsel %vm306, %v530, -inf
    %920 = vmax.xlane.f32.xlu0 %v919
    %v921 = vpop.xlane.xlu0 %920
    %v922 = vsel %vm306, %v606, -inf
    %923 = vmax.xlane.f32.xlu0 %v922
    %v924 = vpop.xlane.xlu0 %923
    %v925 = vsel %vm306, %v682, -inf
    %926 = vmax.xlane.f32.xlu0 %v925
    %v927 = vpop.xlane.xlu0 %926
    %v928 = vsel %vm306, %v758, -inf
    %929 = vmax.xlane.f32.xlu0 %v928
    %v930 = vpop.xlane.xlu0 %929
    %v931 = vsel %vm306, %v834, -inf
    %932 = vmax.xlane.f32.xlu0 %v931
    %v933 = vpop.xlane.xlu0 %932
    %v934 = vsel %vm306, %v910, -inf
    %935 = vmax.xlane.f32.xlu0 %v934
    %v936 = vpop.xlane.xlu0 %935
    %v937 = vsub.f32 %v378, %v915
    %v938 = vsub.f32 %v454, %v918
    %v939 = vsub.f32 %v530, %v921
    %v940 = vsub.f32 %v606, %v924
    %v941 = vsub.f32 %v682, %v927
    %v942 = vsub.f32 %v758, %v930
    %v943 = vsub.f32 %v834, %v933
    %v944 = vsub.f32 %v910, %v936
    %v945 = vmul.f32 %v937, 1.442695
    %v946 = vpow.pop %v945
    %v947 = vmul.f32 %v938, 1.442695
    %v948 = vpow.pop %v947
    %v949 = vmul.f32 %v939, 1.442695
    %v950 = vpow.pop %v949
    %v951 = vmul.f32 %v940, 1.442695
    %v952 = vpow.pop %v951
    %v953 = vmul.f32 %v941, 1.442695
    %v954 = vpow.pop %v953
    %v955 = vmul.f32 %v942, 1.442695
    %v956 = vpow.pop %v955
    %v957 = vmul.f32 %v943, 1.442695
    %v958 = vpow.pop %v957
    %v959 = vmul.f32 %v944, 1.442695
    %v960 = vpow.pop %v959
    %v961 = vsel %vm306, %v946, 0.0
    %962 = vadd.xlane.f32.xlu0 %v961
    %v963 = vpop.xlane.xlu0 %962
    %v964 = vsel %vm306, %v948, 0.0
    %965 = vadd.xlane.f32.xlu0 %v964
    %v966 = vpop.xlane.xlu0 %965
    %v967 = vsel %vm306, %v950, 0.0
    %968 = vadd.xlane.f32.xlu0 %v967
    %v969 = vpop.xlane.xlu0 %968
    %v970 = vsel %vm306, %v952, 0.0
    %971 = vadd.xlane.f32.xlu0 %v970
    %v972 = vpop.xlane.xlu0 %971
    %v973 = vsel %vm306, %v954, 0.0
    %974 = vadd.xlane.f32.xlu0 %v973
    %v975 = vpop.xlane.xlu0 %974
    %v976 = vsel %vm306, %v956, 0.0
    %977 = vadd.xlane.f32.xlu0 %v976
    %v978 = vpop.xlane.xlu0 %977
    %v979 = vsel %vm306, %v958, 0.0
    %980 = vadd.xlane.f32.xlu0 %v979
    %v981 = vpop.xlane.xlu0 %980
    %v982 = vsel %vm306, %v960, 0.0
    %983 = vadd.xlane.f32.xlu0 %v982
    %v984 = vpop.xlane.xlu0 %983
    %v985 = vrcp.pop %v963
    %v986 = vmul.f32 %v946, %v985
    %v987 = vrcp.pop %v966
    %v988 = vmul.f32 %v948, %v987
    %v989 = vrcp.pop %v969
    %v990 = vmul.f32 %v950, %v989
    %v991 = vrcp.pop %v972
    %v992 = vmul.f32 %v952, %v991
    %v993 = vrcp.pop %v975
    %v994 = vmul.f32 %v954, %v993
    %v995 = vrcp.pop %v978
    %v996 = vmul.f32 %v956, %v995
    %v997 = vrcp.pop %v981
    %v998 = vmul.f32 %v958, %v997
    %v999 = vrcp.pop %v984
    %v1000 = vmul.f32 %v960, %v999
    %1001 = vrot.lane.b32.xlu0 %v282, 64
    %v1002 = vpop.permute.xlu0 %1001
    %v1005 = vsel %vm306, %v986, 0
    %1007 = vmatprep.subr.mxu0 0.0
    %1008 = vmatpush1.msra.mxu0 0.0
    %1009 = vmatprep.subr.mxu0 0.0
    %1010 = vmatpush1.msra.mxu0 0.0
    %1011 = vmatprep.subr.mxu0 0.0
    %1012 = vmatpush1.msra.mxu0 0.0
    %1013 = vmatprep.subr.mxu0 0.0
    %1014 = vmatpush1.msra.mxu0 0.0
    %1015 = vmatprep.subr.mxu0 0.0
    %1016 = vmatpush1.msra.mxu0 0.0
    %1017 = vmatprep.subr.mxu0 0.0
    %1018 = vmatpush1.msra.mxu0 0.0
    %1019 = vmatprep.subr.mxu0 0.0
    %1020 = vmatpush1.msra.mxu0 0.0
    %1021 = vmatprep.subr.mxu0 0.0
    %1022 = vmatpush1.msra.mxu0 0.0
    %1023 = vmatprep.subr.mxu0 0.0
    %1024 = vmatpush1.msra.mxu0 0.0
    %1025 = vmatprep.subr.mxu0 0.0
    %1026 = vmatpush1.msra.mxu0 0.0
    %1027 = vmatprep.subr.mxu0 0.0
    %1028 = vmatpush1.msra.mxu0 0.0
    %1029 = vmatprep.subr.mxu0 0.0
    %1030 = vmatpush1.msra.mxu0 0.0
    %1031 = vmatprep.subr.mxu0 0.0
    %1032 = vmatpush1.msra.mxu0 0.0
    %1033 = vmatprep.subr.mxu0 0.0
    %1034 = vmatpush1.msra.mxu0 0.0
    %1035 = vmatprep.subr.mxu0 0.0
    %1036 = vmatpush1.msra.mxu0 0.0
    %1037 = vmatprep.subr.mxu0 0.0
    %1038 = vmatpush1.msra.mxu0 %v1002
    %1039 = vmatprep.subr.mxu0 0.0
    %1040 = vmatpush2.msra.mxu0 0.0
    %1041 = vmatprep.subr.mxu0 0.0
    %1042 = vmatpush2.msra.mxu0 0.0
    %1043 = vmatprep.subr.mxu0 0.0
    %1044 = vmatpush2.msra.mxu0 0.0
    %1045 = vmatprep.subr.mxu0 0.0
    %1046 = vmatpush2.msra.mxu0 0.0
    %1047 = vmatprep.subr.mxu0 0.0
    %1048 = vmatpush2.msra.mxu0 0.0
    %1049 = vmatprep.subr.mxu0 0.0
    %1050 = vmatpush2.msra.mxu0 0.0
    %1051 = vmatprep.subr.mxu0 0.0
    %1052 = vmatpush2.msra.mxu0 0.0
    %1053 = vmatprep.subr.mxu0 0.0
    %1054 = vmatpush2.msra.mxu0 0.0
    %1055 = vmatprep.subr.mxu0 0.0
    %1056 = vmatpush2.msra.mxu0 0.0
    %1057 = vmatprep.subr.mxu0 0.0
    %1058 = vmatpush2.msra.mxu0 0.0
    %1059 = vmatprep.subr.mxu0 0.0
    %1060 = vmatpush2.msra.mxu0 0.0
    %1061 = vmatprep.subr.mxu0 0.0
    %1062 = vmatpush2.msra.mxu0 0.0
    %1063 = vmatprep.subr.mxu0 0.0
    %1064 = vmatpush2.msra.mxu0 0.0
    %1065 = vmatprep.subr.mxu0 0.0
    %1066 = vmatpush2.msra.mxu0 0.0
    %1067 = vmatprep.subr.mxu0 0.0
    %1068 = vmatpush2.msra.mxu0 0.0
    %1069 = vmatprep.subr.mxu0 0.0
    %1070 = vmatpush2.msra.mxu0 0.0
    %1071 = vmatprep.mubr.f32.mxu0 0.0
    %1072 = vmatmul.mubr.f32.gmra.mxu0 %v1005
    %v1073 = vpop.f32.mrf.mxu0
    %v1074 = vadd.f32 0.0, %v1073
    %v1075 = vpop.f32.mrf.mxu0
    %1076 = vdwg.mxu0
    %1077 = vrot.lane.b32.xlu0 %v287, 64
    %v1078 = vpop.permute.xlu0 %1077
    %v1081 = vsel %vm306, %v988, 0
    %1083 = vmatprep.subr.mxu0 0.0
    %1084 = vmatpush1.msra.mxu0 0.0
    %1085 = vmatprep.subr.mxu0 0.0
    %1086 = vmatpush1.msra.mxu0 0.0
    %1087 = vmatprep.subr.mxu0 0.0
    %1088 = vmatpush1.msra.mxu0 0.0
    %1089 = vmatprep.subr.mxu0 0.0
    %1090 = vmatpush1.msra.mxu0 0.0
    %1091 = vmatprep.subr.mxu0 0.0
    %1092 = vmatpush1.msra.mxu0 0.0
    %1093 = vmatprep.subr.mxu0 0.0
    %1094 = vmatpush1.msra.mxu0 0.0
    %1095 = vmatprep.subr.mxu0 0.0
    %1096 = vmatpush1.msra.mxu0 0.0
    %1097 = vmatprep.subr.mxu0 0.0
    %1098 = vmatpush1.msra.mxu0 0.0
    %1099 = vmatprep.subr.mxu0 0.0
    %1100 = vmatpush1.msra.mxu0 0.0
    %1101 = vmatprep.subr.mxu0 0.0
    %1102 = vmatpush1.msra.mxu0 0.0
    %1103 = vmatprep.subr.mxu0 0.0
    %1104 = vmatpush1.msra.mxu0 0.0
    %1105 = vmatprep.subr.mxu0 0.0
    %1106 = vmatpush1.msra.mxu0 0.0
    %1107 = vmatprep.subr.mxu0 0.0
    %1108 = vmatpush1.msra.mxu0 0.0
    %1109 = vmatprep.subr.mxu0 0.0
    %1110 = vmatpush1.msra.mxu0 0.0
    %1111 = vmatprep.subr.mxu0 0.0
    %1112 = vmatpush1.msra.mxu0 0.0
    %1113 = vmatprep.subr.mxu0 0.0
    %1114 = vmatpush1.msra.mxu0 %v1078
    %1115 = vmatprep.subr.mxu0 0.0
    %1116 = vmatpush2.msra.mxu0 0.0
    %1117 = vmatprep.subr.mxu0 0.0
    %1118 = vmatpush2.msra.mxu0 0.0
    %1119 = vmatprep.subr.mxu0 0.0
    %1120 = vmatpush2.msra.mxu0 0.0
    %1121 = vmatprep.subr.mxu0 0.0
    %1122 = vmatpush2.msra.mxu0 0.0
    %1123 = vmatprep.subr.mxu0 0.0
    %1124 = vmatpush2.msra.mxu0 0.0
    %1125 = vmatprep.subr.mxu0 0.0
    %1126 = vmatpush2.msra.mxu0 0.0
    %1127 = vmatprep.subr.mxu0 0.0
    %1128 = vmatpush2.msra.mxu0 0.0
    %1129 = vmatprep.subr.mxu0 0.0
    %1130 = vmatpush2.msra.mxu0 0.0
    %1131 = vmatprep.subr.mxu0 0.0
    %1132 = vmatpush2.msra.mxu0 0.0
    %1133 = vmatprep.subr.mxu0 0.0
    %1134 = vmatpush2.msra.mxu0 0.0
    %1135 = vmatprep.subr.mxu0 0.0
    %1136 = vmatpush2.msra.mxu0 0.0
    %1137 = vmatprep.subr.mxu0 0.0
    %1138 = vmatpush2.msra.mxu0 0.0
    %1139 = vmatprep.subr.mxu0 0.0
    %1140 = vmatpush2.msra.mxu0 0.0
    %1141 = vmatprep.subr.mxu0 0.0
    %1142 = vmatpush2.msra.mxu0 0.0
    %1143 = vmatprep.subr.mxu0 0.0
    %1144 = vmatpush2.msra.mxu0 0.0
    %1145 = vmatprep.subr.mxu0 0.0
    %1146 = vmatpush2.msra.mxu0 0.0
    %1147 = vmatprep.mubr.f32.mxu0 0.0
    %1148 = vmatmul.mubr.f32.gmra.mxu0 %v1081
    %v1149 = vpop.f32.mrf.mxu0
    %v1150 = vadd.f32 0.0, %v1149
    %v1151 = vpop.f32.mrf.mxu0
    %1152 = vdwg.mxu0
    %1153 = vrot.lane.b32.xlu0 %v293, 64
    %v1154 = vpop.permute.xlu0 %1153
    %v1157 = vsel %vm306, %v990, 0
    %1159 = vmatprep.subr.mxu0 0.0
    %1160 = vmatpush1.msra.mxu0 0.0
    %1161 = vmatprep.subr.mxu0 0.0
    %1162 = vmatpush1.msra.mxu0 0.0
    %1163 = vmatprep.subr.mxu0 0.0
    %1164 = vmatpush1.msra.mxu0 0.0
    %1165 = vmatprep.subr.mxu0 0.0
    %1166 = vmatpush1.msra.mxu0 0.0
    %1167 = vmatprep.subr.mxu0 0.0
    %1168 = vmatpush1.msra.mxu0 0.0
    %1169 = vmatprep.subr.mxu0 0.0
    %1170 = vmatpush1.msra.mxu0 0.0
    %1171 = vmatprep.subr.mxu0 0.0
    %1172 = vmatpush1.msra.mxu0 0.0
    %1173 = vmatprep.subr.mxu0 0.0
    %1174 = vmatpush1.msra.mxu0 0.0
    %1175 = vmatprep.subr.mxu0 0.0
    %1176 = vmatpush1.msra.mxu0 0.0
    %1177 = vmatprep.subr.mxu0 0.0
    %1178 = vmatpush1.msra.mxu0 0.0
    %1179 = vmatprep.subr.mxu0 0.0
    %1180 = vmatpush1.msra.mxu0 0.0
    %1181 = vmatprep.subr.mxu0 0.0
    %1182 = vmatpush1.msra.mxu0 0.0
    %1183 = vmatprep.subr.mxu0 0.0
    %1184 = vmatpush1.msra.mxu0 0.0
    %1185 = vmatprep.subr.mxu0 0.0
    %1186 = vmatpush1.msra.mxu0 0.0
    %1187 = vmatprep.subr.mxu0 0.0
    %1188 = vmatpush1.msra.mxu0 0.0
    %1189 = vmatprep.subr.mxu0 0.0
    %1190 = vmatpush1.msra.mxu0 %v1154
    %1191 = vmatprep.subr.mxu0 0.0
    %1192 = vmatpush2.msra.mxu0 0.0
    %1193 = vmatprep.subr.mxu0 0.0
    %1194 = vmatpush2.msra.mxu0 0.0
    %1195 = vmatprep.subr.mxu0 0.0
    %1196 = vmatpush2.msra.mxu0 0.0
    %1197 = vmatprep.subr.mxu0 0.0
    %1198 = vmatpush2.msra.mxu0 0.0
    %1199 = vmatprep.subr.mxu0 0.0
    %1200 = vmatpush2.msra.mxu0 0.0
    %1201 = vmatprep.subr.mxu0 0.0
    %1202 = vmatpush2.msra.mxu0 0.0
    %1203 = vmatprep.subr.mxu0 0.0
    %1204 = vmatpush2.msra.mxu0 0.0
    %1205 = vmatprep.subr.mxu0 0.0
    %1206 = vmatpush2.msra.mxu0 0.0
    %1207 = vmatprep.subr.mxu0 0.0
    %1208 = vmatpush2.msra.mxu0 0.0
    %1209 = vmatprep.subr.mxu0 0.0
    %1210 = vmatpush2.msra.mxu0 0.0
    %1211 = vmatprep.subr.mxu0 0.0
    %1212 = vmatpush2.msra.mxu0 0.0
    %1213 = vmatprep.subr.mxu0 0.0
    %1214 = vmatpush2.msra.mxu0 0.0
    %1215 = vmatprep.subr.mxu0 0.0
    %1216 = vmatpush2.msra.mxu0 0.0
    %1217 = vmatprep.subr.mxu0 0.0
    %1218 = vmatpush2.msra.mxu0 0.0
    %1219 = vmatprep.subr.mxu0 0.0
    %1220 = vmatpush2.msra.mxu0 0.0
    %1221 = vmatprep.subr.mxu0 0.0
    %1222 = vmatpush2.msra.mxu0 0.0
    %1223 = vmatprep.mubr.f32.mxu0 0.0
    %1224 = vmatmul.mubr.f32.gmra.mxu0 %v1157
    %v1225 = vpop.f32.mrf.mxu0
    %v1226 = vadd.f32 0.0, %v1225
    %v1227 = vpop.f32.mrf.mxu0
    %1228 = vdwg.mxu0
    %1229 = vrot.lane.b32.xlu0 %v295, 64
    %v1230 = vpop.permute.xlu0 %1229
    %v1233 = vsel %vm306, %v992, 0
    %1235 = vmatprep.subr.mxu0 0.0
    %1236 = vmatpush1.msra.mxu0 0.0
    %1237 = vmatprep.subr.mxu0 0.0
    %1238 = vmatpush1.msra.mxu0 0.0
    %1239 = vmatprep.subr.mxu0 0.0
    %1240 = vmatpush1.msra.mxu0 0.0
    %1241 = vmatprep.subr.mxu0 0.0
    %1242 = vmatpush1.msra.mxu0 0.0
    %1243 = vmatprep.subr.mxu0 0.0
    %1244 = vmatpush1.msra.mxu0 0.0
    %1245 = vmatprep.subr.mxu0 0.0
    %1246 = vmatpush1.msra.mxu0 0.0
    %1247 = vmatprep.subr.mxu0 0.0
    %1248 = vmatpush1.msra.mxu0 0.0
    %1249 = vmatprep.subr.mxu0 0.0
    %1250 = vmatpush1.msra.mxu0 0.0
    %1251 = vmatprep.subr.mxu0 0.0
    %1252 = vmatpush1.msra.mxu0 0.0
    %1253 = vmatprep.subr.mxu0 0.0
    %1254 = vmatpush1.msra.mxu0 0.0
    %1255 = vmatprep.subr.mxu0 0.0
    %1256 = vmatpush1.msra.mxu0 0.0
    %1257 = vmatprep.subr.mxu0 0.0
    %1258 = vmatpush1.msra.mxu0 0.0
    %1259 = vmatprep.subr.mxu0 0.0
    %1260 = vmatpush1.msra.mxu0 0.0
    %1261 = vmatprep.subr.mxu0 0.0
    %1262 = vmatpush1.msra.mxu0 0.0
    %1263 = vmatprep.subr.mxu0 0.0
    %1264 = vmatpush1.msra.mxu0 0.0
    %1265 = vmatprep.subr.mxu0 0.0
    %1266 = vmatpush1.msra.mxu0 %v1230
    %1267 = vmatprep.subr.mxu0 0.0
    %1268 = vmatpush2.msra.mxu0 0.0
    %1269 = vmatprep.subr.mxu0 0.0
    %1270 = vmatpush2.msra.mxu0 0.0
    %1271 = vmatprep.subr.mxu0 0.0
    %1272 = vmatpush2.msra.mxu0 0.0
    %1273 = vmatprep.subr.mxu0 0.0
    %1274 = vmatpush2.msra.mxu0 0.0
    %1275 = vmatprep.subr.mxu0 0.0
    %1276 = vmatpush2.msra.mxu0 0.0
    %1277 = vmatprep.subr.mxu0 0.0
    %1278 = vmatpush2.msra.mxu0 0.0
    %1279 = vmatprep.subr.mxu0 0.0
    %1280 = vmatpush2.msra.mxu0 0.0
    %1281 = vmatprep.subr.mxu0 0.0
    %1282 = vmatpush2.msra.mxu0 0.0
    %1283 = vmatprep.subr.mxu0 0.0
    %1284 = vmatpush2.msra.mxu0 0.0
    %1285 = vmatprep.subr.mxu0 0.0
    %1286 = vmatpush2.msra.mxu0 0.0
    %1287 = vmatprep.subr.mxu0 0.0
    %1288 = vmatpush2.msra.mxu0 0.0
    %1289 = vmatprep.subr.mxu0 0.0
    %1290 = vmatpush2.msra.mxu0 0.0
    %1291 = vmatprep.subr.mxu0 0.0
    %1292 = vmatpush2.msra.mxu0 0.0
    %1293 = vmatprep.subr.mxu0 0.0
    %1294 = vmatpush2.msra.mxu0 0.0
    %1295 = vmatprep.subr.mxu0 0.0
    %1296 = vmatpush2.msra.mxu0 0.0
    %1297 = vmatprep.subr.mxu0 0.0
    %1298 = vmatpush2.msra.mxu0 0.0
    %1299 = vmatprep.mubr.f32.mxu0 0.0
    %1300 = vmatmul.mubr.f32.gmra.mxu0 %v1233
    %v1301 = vpop.f32.mrf.mxu0
    %v1302 = vadd.f32 0.0, %v1301
    %v1303 = vpop.f32.mrf.mxu0
    %1304 = vdwg.mxu0
    %1305 = vrot.lane.b32.xlu0 %v297, 64
    %v1306 = vpop.permute.xlu0 %1305
    %v1309 = vsel %vm306, %v994, 0
    %1311 = vmatprep.subr.mxu0 0.0
    %1312 = vmatpush1.msra.mxu0 0.0
    %1313 = vmatprep.subr.mxu0 0.0
    %1314 = vmatpush1.msra.mxu0 0.0
    %1315 = vmatprep.subr.mxu0 0.0
    %1316 = vmatpush1.msra.mxu0 0.0
    %1317 = vmatprep.subr.mxu0 0.0
    %1318 = vmatpush1.msra.mxu0 0.0
    %1319 = vmatprep.subr.mxu0 0.0
    %1320 = vmatpush1.msra.mxu0 0.0
    %1321 = vmatprep.subr.mxu0 0.0
    %1322 = vmatpush1.msra.mxu0 0.0
    %1323 = vmatprep.subr.mxu0 0.0
    %1324 = vmatpush1.msra.mxu0 0.0
    %1325 = vmatprep.subr.mxu0 0.0
    %1326 = vmatpush1.msra.mxu0 0.0
    %1327 = vmatprep.subr.mxu0 0.0
    %1328 = vmatpush1.msra.mxu0 0.0
    %1329 = vmatprep.subr.mxu0 0.0
    %1330 = vmatpush1.msra.mxu0 0.0
    %1331 = vmatprep.subr.mxu0 0.0
    %1332 = vmatpush1.msra.mxu0 0.0
    %1333 = vmatprep.subr.mxu0 0.0
    %1334 = vmatpush1.msra.mxu0 0.0
    %1335 = vmatprep.subr.mxu0 0.0
    %1336 = vmatpush1.msra.mxu0 0.0
    %1337 = vmatprep.subr.mxu0 0.0
    %1338 = vmatpush1.msra.mxu0 0.0
    %1339 = vmatprep.subr.mxu0 0.0
    %1340 = vmatpush1.msra.mxu0 0.0
    %1341 = vmatprep.subr.mxu0 0.0
    %1342 = vmatpush1.msra.mxu0 %v1306
    %1343 = vmatprep.subr.mxu0 0.0
    %1344 = vmatpush2.msra.mxu0 0.0
    %1345 = vmatprep.subr.mxu0 0.0
    %1346 = vmatpush2.msra.mxu0 0.0
    %1347 = vmatprep.subr.mxu0 0.0
    %1348 = vmatpush2.msra.mxu0 0.0
    %1349 = vmatprep.subr.mxu0 0.0
    %1350 = vmatpush2.msra.mxu0 0.0
    %1351 = vmatprep.subr.mxu0 0.0
    %1352 = vmatpush2.msra.mxu0 0.0
    %1353 = vmatprep.subr.mxu0 0.0
    %1354 = vmatpush2.msra.mxu0 0.0
    %1355 = vmatprep.subr.mxu0 0.0
    %1356 = vmatpush2.msra.mxu0 0.0
    %1357 = vmatprep.subr.mxu0 0.0
    %1358 = vmatpush2.msra.mxu0 0.0
    %1359 = vmatprep.subr.mxu0 0.0
    %1360 = vmatpush2.msra.mxu0 0.0
    %1361 = vmatprep.subr.mxu0 0.0
    %1362 = vmatpush2.msra.mxu0 0.0
    %1363 = vmatprep.subr.mxu0 0.0
    %1364 = vmatpush2.msra.mxu0 0.0
    %1365 = vmatprep.subr.mxu0 0.0
    %1366 = vmatpush2.msra.mxu0 0.0
    %1367 = vmatprep.subr.mxu0 0.0
    %1368 = vmatpush2.msra.mxu0 0.0
    %1369 = vmatprep.subr.mxu0 0.0
    %1370 = vmatpush2.msra.mxu0 0.0
    %1371 = vmatprep.subr.mxu0 0.0
    %1372 = vmatpush2.msra.mxu0 0.0
    %1373 = vmatprep.subr.mxu0 0.0
    %1374 = vmatpush2.msra.mxu0 0.0
    %1375 = vmatprep.mubr.f32.mxu0 0.0
    %1376 = vmatmul.mubr.f32.gmra.mxu0 %v1309
    %v1377 = vpop.f32.mrf.mxu0
    %v1378 = vadd.f32 0.0, %v1377
    %v1379 = vpop.f32.mrf.mxu0
    %1380 = vdwg.mxu0
    %1381 = vrot.lane.b32.xlu0 %v299, 64
    %v1382 = vpop.permute.xlu0 %1381
    %v1385 = vsel %vm306, %v996, 0
    %1387 = vmatprep.subr.mxu0 0.0
    %1388 = vmatpush1.msra.mxu0 0.0
    %1389 = vmatprep.subr.mxu0 0.0
    %1390 = vmatpush1.msra.mxu0 0.0
    %1391 = vmatprep.subr.mxu0 0.0
    %1392 = vmatpush1.msra.mxu0 0.0
    %1393 = vmatprep.subr.mxu0 0.0
    %1394 = vmatpush1.msra.mxu0 0.0
    %1395 = vmatprep.subr.mxu0 0.0
    %1396 = vmatpush1.msra.mxu0 0.0
    %1397 = vmatprep.subr.mxu0 0.0
    %1398 = vmatpush1.msra.mxu0 0.0
    %1399 = vmatprep.subr.mxu0 0.0
    %1400 = vmatpush1.msra.mxu0 0.0
    %1401 = vmatprep.subr.mxu0 0.0
    %1402 = vmatpush1.msra.mxu0 0.0
    %1403 = vmatprep.subr.mxu0 0.0
    %1404 = vmatpush1.msra.mxu0 0.0
    %1405 = vmatprep.subr.mxu0 0.0
    %1406 = vmatpush1.msra.mxu0 0.0
    %1407 = vmatprep.subr.mxu0 0.0
    %1408 = vmatpush1.msra.mxu0 0.0
    %1409 = vmatprep.subr.mxu0 0.0
    %1410 = vmatpush1.msra.mxu0 0.0
    %1411 = vmatprep.subr.mxu0 0.0
    %1412 = vmatpush1.msra.mxu0 0.0
    %1413 = vmatprep.subr.mxu0 0.0
    %1414 = vmatpush1.msra.mxu0 0.0
    %1415 = vmatprep.subr.mxu0 0.0
    %1416 = vmatpush1.msra.mxu0 0.0
    %1417 = vmatprep.subr.mxu0 0.0
    %1418 = vmatpush1.msra.mxu0 %v1382
    %1419 = vmatprep.subr.mxu0 0.0
    %1420 = vmatpush2.msra.mxu0 0.0
    %1421 = vmatprep.subr.mxu0 0.0
    %1422 = vmatpush2.msra.mxu0 0.0
    %1423 = vmatprep.subr.mxu0 0.0
    %1424 = vmatpush2.msra.mxu0 0.0
    %1425 = vmatprep.subr.mxu0 0.0
    %1426 = vmatpush2.msra.mxu0 0.0
    %1427 = vmatprep.subr.mxu0 0.0
    %1428 = vmatpush2.msra.mxu0 0.0
    %1429 = vmatprep.subr.mxu0 0.0
    %1430 = vmatpush2.msra.mxu0 0.0
    %1431 = vmatprep.subr.mxu0 0.0
    %1432 = vmatpush2.msra.mxu0 0.0
    %1433 = vmatprep.subr.mxu0 0.0
    %1434 = vmatpush2.msra.mxu0 0.0
    %1435 = vmatprep.subr.mxu0 0.0
    %1436 = vmatpush2.msra.mxu0 0.0
    %1437 = vmatprep.subr.mxu0 0.0
    %1438 = vmatpush2.msra.mxu0 0.0
    %1439 = vmatprep.subr.mxu0 0.0
    %1440 = vmatpush2.msra.mxu0 0.0
    %1441 = vmatprep.subr.mxu0 0.0
    %1442 = vmatpush2.msra.mxu0 0.0
    %1443 = vmatprep.subr.mxu0 0.0
    %1444 = vmatpush2.msra.mxu0 0.0
    %1445 = vmatprep.subr.mxu0 0.0
    %1446 = vmatpush2.msra.mxu0 0.0
    %1447 = vmatprep.subr.mxu0 0.0
    %1448 = vmatpush2.msra.mxu0 0.0
    %1449 = vmatprep.subr.mxu0 0.0
    %1450 = vmatpush2.msra.mxu0 0.0
    %1451 = vmatprep.mubr.f32.mxu0 0.0
    %1452 = vmatmul.mubr.f32.gmra.mxu0 %v1385
    %v1453 = vpop.f32.mrf.mxu0
    %v1454 = vadd.f32 0.0, %v1453
    %v1455 = vpop.f32.mrf.mxu0
    %1456 = vdwg.mxu0
    %1457 = vrot.lane.b32.xlu0 %v301, 64
    %v1458 = vpop.permute.xlu0 %1457
    %v1461 = vsel %vm306, %v998, 0
    %1463 = vmatprep.subr.mxu0 0.0
    %1464 = vmatpush1.msra.mxu0 0.0
    %1465 = vmatprep.subr.mxu0 0.0
    %1466 = vmatpush1.msra.mxu0 0.0
    %1467 = vmatprep.subr.mxu0 0.0
    %1468 = vmatpush1.msra.mxu0 0.0
    %1469 = vmatprep.subr.mxu0 0.0
    %1470 = vmatpush1.msra.mxu0 0.0
    %1471 = vmatprep.subr.mxu0 0.0
    %1472 = vmatpush1.msra.mxu0 0.0
    %1473 = vmatprep.subr.mxu0 0.0
    %1474 = vmatpush1.msra.mxu0 0.0
    %1475 = vmatprep.subr.mxu0 0.0
    %1476 = vmatpush1.msra.mxu0 0.0
    %1477 = vmatprep.subr.mxu0 0.0
    %1478 = vmatpush1.msra.mxu0 0.0
    %1479 = vmatprep.subr.mxu0 0.0
    %1480 = vmatpush1.msra.mxu0 0.0
    %1481 = vmatprep.subr.mxu0 0.0
    %1482 = vmatpush1.msra.mxu0 0.0
    %1483 = vmatprep.subr.mxu0 0.0
    %1484 = vmatpush1.msra.mxu0 0.0
    %1485 = vmatprep.subr.mxu0 0.0
    %1486 = vmatpush1.msra.mxu0 0.0
    %1487 = vmatprep.subr.mxu0 0.0
    %1488 = vmatpush1.msra.mxu0 0.0
    %1489 = vmatprep.subr.mxu0 0.0
    %1490 = vmatpush1.msra.mxu0 0.0
    %1491 = vmatprep.subr.mxu0 0.0
    %1492 = vmatpush1.msra.mxu0 0.0
    %1493 = vmatprep.subr.mxu0 0.0
    %1494 = vmatpush1.msra.mxu0 %v1458
    %1495 = vmatprep.subr.mxu0 0.0
    %1496 = vmatpush2.msra.mxu0 0.0
    %1497 = vmatprep.subr.mxu0 0.0
    %1498 = vmatpush2.msra.mxu0 0.0
    %1499 = vmatprep.subr.mxu0 0.0
    %1500 = vmatpush2.msra.mxu0 0.0
    %1501 = vmatprep.subr.mxu0 0.0
    %1502 = vmatpush2.msra.mxu0 0.0
    %1503 = vmatprep.subr.mxu0 0.0
    %1504 = vmatpush2.msra.mxu0 0.0
    %1505 = vmatprep.subr.mxu0 0.0
    %1506 = vmatpush2.msra.mxu0 0.0
    %1507 = vmatprep.subr.mxu0 0.0
    %1508 = vmatpush2.msra.mxu0 0.0
    %1509 = vmatprep.subr.mxu0 0.0
    %1510 = vmatpush2.msra.mxu0 0.0
    %1511 = vmatprep.subr.mxu0 0.0
    %1512 = vmatpush2.msra.mxu0 0.0
    %1513 = vmatprep.subr.mxu0 0.0
    %1514 = vmatpush2.msra.mxu0 0.0
    %1515 = vmatprep.subr.mxu0 0.0
    %1516 = vmatpush2.msra.mxu0 0.0
    %1517 = vmatprep.subr.mxu0 0.0
    %1518 = vmatpush2.msra.mxu0 0.0
    %1519 = vmatprep.subr.mxu0 0.0
    %1520 = vmatpush2.msra.mxu0 0.0
    %1521 = vmatprep.subr.mxu0 0.0
    %1522 = vmatpush2.msra.mxu0 0.0
    %1523 = vmatprep.subr.mxu0 0.0
    %1524 = vmatpush2.msra.mxu0 0.0
    %1525 = vmatprep.subr.mxu0 0.0
    %1526 = vmatpush2.msra.mxu0 0.0
    %1527 = vmatprep.mubr.f32.mxu0 0.0
    %1528 = vmatmul.mubr.f32.gmra.mxu0 %v1461
    %v1529 = vpop.f32.mrf.mxu0
    %v1530 = vadd.f32 0.0, %v1529
    %v1531 = vpop.f32.mrf.mxu0
    %1532 = vdwg.mxu0
    %1533 = vrot.lane.b32.xlu0 %v303, 64
    %v1534 = vpop.permute.xlu0 %1533
    %v1537 = vsel %vm306, %v1000, 0
    %1539 = vmatprep.subr.mxu0 0.0
    %1540 = vmatpush1.msra.mxu0 0.0
    %1541 = vmatprep.subr.mxu0 0.0
    %1542 = vmatpush1.msra.mxu0 0.0
    %1543 = vmatprep.subr.mxu0 0.0
    %1544 = vmatpush1.msra.mxu0 0.0
    %1545 = vmatprep.subr.mxu0 0.0
    %1546 = vmatpush1.msra.mxu0 0.0
    %1547 = vmatprep.subr.mxu0 0.0
    %1548 = vmatpush1.msra.mxu0 0.0
    %1549 = vmatprep.subr.mxu0 0.0
    %1550 = vmatpush1.msra.mxu0 0.0
    %1551 = vmatprep.subr.mxu0 0.0
    %1552 = vmatpush1.msra.mxu0 0.0
    %1553 = vmatprep.subr.mxu0 0.0
    %1554 = vmatpush1.msra.mxu0 0.0
    %1555 = vmatprep.subr.mxu0 0.0
    %1556 = vmatpush1.msra.mxu0 0.0
    %1557 = vmatprep.subr.mxu0 0.0
    %1558 = vmatpush1.msra.mxu0 0.0
    %1559 = vmatprep.subr.mxu0 0.0
    %1560 = vmatpush1.msra.mxu0 0.0
    %1561 = vmatprep.subr.mxu0 0.0
    %1562 = vmatpush1.msra.mxu0 0.0
    %1563 = vmatprep.subr.mxu0 0.0
    %1564 = vmatpush1.msra.mxu0 0.0
    %1565 = vmatprep.subr.mxu0 0.0
    %1566 = vmatpush1.msra.mxu0 0.0
    %1567 = vmatprep.subr.mxu0 0.0
    %1568 = vmatpush1.msra.mxu0 0.0
    %1569 = vmatprep.subr.mxu0 0.0
    %1570 = vmatpush1.msra.mxu0 %v1534
    %1571 = vmatprep.subr.mxu0 0.0
    %1572 = vmatpush2.msra.mxu0 0.0
    %1573 = vmatprep.subr.mxu0 0.0
    %1574 = vmatpush2.msra.mxu0 0.0
    %1575 = vmatprep.subr.mxu0 0.0
    %1576 = vmatpush2.msra.mxu0 0.0
    %1577 = vmatprep.subr.mxu0 0.0
    %1578 = vmatpush2.msra.mxu0 0.0
    %1579 = vmatprep.subr.mxu0 0.0
    %1580 = vmatpush2.msra.mxu0 0.0
    %1581 = vmatprep.subr.mxu0 0.0
    %1582 = vmatpush2.msra.mxu0 0.0
    %1583 = vmatprep.subr.mxu0 0.0
    %1584 = vmatpush2.msra.mxu0 0.0
    %1585 = vmatprep.subr.mxu0 0.0
    %1586 = vmatpush2.msra.mxu0 0.0
    %1587 = vmatprep.subr.mxu0 0.0
    %1588 = vmatpush2.msra.mxu0 0.0
    %1589 = vmatprep.subr.mxu0 0.0
    %1590 = vmatpush2.msra.mxu0 0.0
    %1591 = vmatprep.subr.mxu0 0.0
    %1592 = vmatpush2.msra.mxu0 0.0
    %1593 = vmatprep.subr.mxu0 0.0
    %1594 = vmatpush2.msra.mxu0 0.0
    %1595 = vmatprep.subr.mxu0 0.0
    %1596 = vmatpush2.msra.mxu0 0.0
    %1597 = vmatprep.subr.mxu0 0.0
    %1598 = vmatpush2.msra.mxu0 0.0
    %1599 = vmatprep.subr.mxu0 0.0
    %1600 = vmatpush2.msra.mxu0 0.0
    %1601 = vmatprep.subr.mxu0 0.0
    %1602 = vmatpush2.msra.mxu0 0.0
    %1603 = vmatprep.mubr.f32.mxu0 0.0
    %1604 = vmatmul.mubr.f32.gmra.mxu0 %v1537
    %v1605 = vpop.f32.mrf.mxu0
    %v1606 = vadd.f32 0.0, %v1605
    %v1607 = vpop.f32.mrf.mxu0
    %1608 = vdwg.mxu0
    %v1610 = vsel %vm306, %v1074, 0
    %v1613 = vsel %vm306, %v1150, 0
    %1615 = vmatprep.subr.mxu0 0.0
    %1616 = vmatpush1.msra.mxu0 0.0
    %1617 = vmatprep.subr.mxu0 0.0
    %1618 = vmatpush1.msra.mxu0 0.0
    %1619 = vmatprep.subr.mxu0 0.0
    %1620 = vmatpush1.msra.mxu0 0.0
    %1621 = vmatprep.subr.mxu0 0.0
    %1622 = vmatpush1.msra.mxu0 0.0
    %1623 = vmatprep.subr.mxu0 0.0
    %1624 = vmatpush1.msra.mxu0 0.0
    %1625 = vmatprep.subr.mxu0 0.0
    %1626 = vmatpush1.msra.mxu0 0.0
    %1627 = vmatprep.subr.mxu0 0.0
    %1628 = vmatpush1.msra.mxu0 0.0
    %1629 = vmatprep.subr.mxu0 0.0
    %1630 = vmatpush1.msra.mxu0 0.0
    %1631 = vmatprep.subr.mxu0 0.0
    %1632 = vmatpush1.msra.mxu0 0.0
    %1633 = vmatprep.subr.mxu0 0.0
    %1634 = vmatpush1.msra.mxu0 0.0
    %1635 = vmatprep.subr.mxu0 0.0
    %1636 = vmatpush1.msra.mxu0 0.0
    %1637 = vmatprep.subr.mxu0 0.0
    %1638 = vmatpush1.msra.mxu0 0.0
    %1639 = vmatprep.subr.mxu0 0.0
    %1640 = vmatpush1.msra.mxu0 0.0
    %1641 = vmatprep.subr.mxu0 0.0
    %1642 = vmatpush1.msra.mxu0 0.0
    %1643 = vmatprep.subr.mxu0 0.0
    %1644 = vmatpush1.msra.mxu0 0.0
    %1645 = vmatprep.subr.mxu0 0.0
    %1646 = vmatpush1.msra.mxu0 %v187
    %1647 = vmatprep.subr.mxu0 0.0
    %1648 = vmatpush2.msra.mxu0 0.0
    %1649 = vmatprep.subr.mxu0 0.0
    %1650 = vmatpush2.msra.mxu0 0.0
    %1651 = vmatprep.subr.mxu0 0.0
    %1652 = vmatpush2.msra.mxu0 0.0
    %1653 = vmatprep.subr.mxu0 0.0
    %1654 = vmatpush2.msra.mxu0 0.0
    %1655 = vmatprep.subr.mxu0 0.0
    %1656 = vmatpush2.msra.mxu0 0.0
    %1657 = vmatprep.subr.mxu0 0.0
    %1658 = vmatpush2.msra.mxu0 0.0
    %1659 = vmatprep.subr.mxu0 0.0
    %1660 = vmatpush2.msra.mxu0 0.0
    %1661 = vmatprep.subr.mxu0 0.0
    %1662 = vmatpush2.msra.mxu0 0.0
    %1663 = vmatprep.subr.mxu0 0.0
    %1664 = vmatpush2.msra.mxu0 0.0
    %1665 = vmatprep.subr.mxu0 0.0
    %1666 = vmatpush2.msra.mxu0 0.0
    %1667 = vmatprep.subr.mxu0 0.0
    %1668 = vmatpush2.msra.mxu0 0.0
    %1669 = vmatprep.subr.mxu0 0.0
    %1670 = vmatpush2.msra.mxu0 0.0
    %1671 = vmatprep.subr.mxu0 0.0
    %1672 = vmatpush2.msra.mxu0 0.0
    %1673 = vmatprep.subr.mxu0 0.0
    %1674 = vmatpush2.msra.mxu0 0.0
    %1675 = vmatprep.subr.mxu0 0.0
    %1676 = vmatpush2.msra.mxu0 0.0
    %1677 = vmatprep.subr.mxu0 0.0
    %1678 = vmatpush2.msra.mxu0 0.0
    %1679 = vmatprep.mubr.f32.mxu0 0.0
    %1680 = vmatmul.mubr.f32.gmra.mxu0 %v1610
    %v1681 = vpop.f32.mrf.mxu0
    %v1682 = vadd.f32 0.0, %v1681
    %v1683 = vpop.f32.mrf.mxu0
    %1684 = vmatprep.mubr.f32.mxu0 0.0
    %1685 = vmatmul.mubr.f32.gmra.mxu0 %v1613
    %v1686 = vpop.f32.mrf.mxu0
    %v1687 = vadd.f32 0.0, %v1686
    %v1688 = vpop.f32.mrf.mxu0
    %1689 = vdwg.mxu0
    %v1691 = vsel %vm306, %v1226, 0
    %v1694 = vsel %vm306, %v1302, 0
    %1696 = vmatprep.subr.mxu0 0.0
    %1697 = vmatpush1.msra.mxu0 0.0
    %1698 = vmatprep.subr.mxu0 0.0
    %1699 = vmatpush1.msra.mxu0 0.0
    %1700 = vmatprep.subr.mxu0 0.0
    %1701 = vmatpush1.msra.mxu0 0.0
    %1702 = vmatprep.subr.mxu0 0.0
    %1703 = vmatpush1.msra.mxu0 0.0
    %1704 = vmatprep.subr.mxu0 0.0
    %1705 = vmatpush1.msra.mxu0 0.0
    %1706 = vmatprep.subr.mxu0 0.0
    %1707 = vmatpush1.msra.mxu0 0.0
    %1708 = vmatprep.subr.mxu0 0.0
    %1709 = vmatpush1.msra.mxu0 0.0
    %1710 = vmatprep.subr.mxu0 0.0
    %1711 = vmatpush1.msra.mxu0 0.0
    %1712 = vmatprep.subr.mxu0 0.0
    %1713 = vmatpush1.msra.mxu0 0.0
    %1714 = vmatprep.subr.mxu0 0.0
    %1715 = vmatpush1.msra.mxu0 0.0
    %1716 = vmatprep.subr.mxu0 0.0
    %1717 = vmatpush1.msra.mxu0 0.0
    %1718 = vmatprep.subr.mxu0 0.0
    %1719 = vmatpush1.msra.mxu0 0.0
    %1720 = vmatprep.subr.mxu0 0.0
    %1721 = vmatpush1.msra.mxu0 0.0
    %1722 = vmatprep.subr.mxu0 0.0
    %1723 = vmatpush1.msra.mxu0 0.0
    %1724 = vmatprep.subr.mxu0 0.0
    %1725 = vmatpush1.msra.mxu0 0.0
    %1726 = vmatprep.subr.mxu0 0.0
    %1727 = vmatpush1.msra.mxu0 %v188
    %1728 = vmatprep.subr.mxu0 0.0
    %1729 = vmatpush2.msra.mxu0 0.0
    %1730 = vmatprep.subr.mxu0 0.0
    %1731 = vmatpush2.msra.mxu0 0.0
    %1732 = vmatprep.subr.mxu0 0.0
    %1733 = vmatpush2.msra.mxu0 0.0
    %1734 = vmatprep.subr.mxu0 0.0
    %1735 = vmatpush2.msra.mxu0 0.0
    %1736 = vmatprep.subr.mxu0 0.0
    %1737 = vmatpush2.msra.mxu0 0.0
    %1738 = vmatprep.subr.mxu0 0.0
    %1739 = vmatpush2.msra.mxu0 0.0
    %1740 = vmatprep.subr.mxu0 0.0
    %1741 = vmatpush2.msra.mxu0 0.0
    %1742 = vmatprep.subr.mxu0 0.0
    %1743 = vmatpush2.msra.mxu0 0.0
    %1744 = vmatprep.subr.mxu0 0.0
    %1745 = vmatpush2.msra.mxu0 0.0
    %1746 = vmatprep.subr.mxu0 0.0
    %1747 = vmatpush2.msra.mxu0 0.0
    %1748 = vmatprep.subr.mxu0 0.0
    %1749 = vmatpush2.msra.mxu0 0.0
    %1750 = vmatprep.subr.mxu0 0.0
    %1751 = vmatpush2.msra.mxu0 0.0
    %1752 = vmatprep.subr.mxu0 0.0
    %1753 = vmatpush2.msra.mxu0 0.0
    %1754 = vmatprep.subr.mxu0 0.0
    %1755 = vmatpush2.msra.mxu0 0.0
    %1756 = vmatprep.subr.mxu0 0.0
    %1757 = vmatpush2.msra.mxu0 0.0
    %1758 = vmatprep.subr.mxu0 0.0
    %1759 = vmatpush2.msra.mxu0 0.0
    %1760 = vmatprep.mubr.f32.mxu0 0.0
    %1761 = vmatmul.mubr.f32.gmra.mxu0 %v1691
    %v1762 = vpop.f32.mrf.mxu0
    %v1763 = vadd.f32 0.0, %v1762
    %v1764 = vpop.f32.mrf.mxu0
    %1765 = vmatprep.mubr.f32.mxu0 0.0
    %1766 = vmatmul.mubr.f32.gmra.mxu0 %v1694
    %v1767 = vpop.f32.mrf.mxu0
    %v1768 = vadd.f32 0.0, %v1767
    %v1769 = vpop.f32.mrf.mxu0
    %1770 = vdwg.mxu0
    %v1772 = vsel %vm306, %v1378, 0
    %v1775 = vsel %vm306, %v1454, 0
    %1777 = vmatprep.subr.mxu0 0.0
    %1778 = vmatpush1.msra.mxu0 0.0
    %1779 = vmatprep.subr.mxu0 0.0
    %1780 = vmatpush1.msra.mxu0 0.0
    %1781 = vmatprep.subr.mxu0 0.0
    %1782 = vmatpush1.msra.mxu0 0.0
    %1783 = vmatprep.subr.mxu0 0.0
    %1784 = vmatpush1.msra.mxu0 0.0
    %1785 = vmatprep.subr.mxu0 0.0
    %1786 = vmatpush1.msra.mxu0 0.0
    %1787 = vmatprep.subr.mxu0 0.0
    %1788 = vmatpush1.msra.mxu0 0.0
    %1789 = vmatprep.subr.mxu0 0.0
    %1790 = vmatpush1.msra.mxu0 0.0
    %1791 = vmatprep.subr.mxu0 0.0
    %1792 = vmatpush1.msra.mxu0 0.0
    %1793 = vmatprep.subr.mxu0 0.0
    %1794 = vmatpush1.msra.mxu0 0.0
    %1795 = vmatprep.subr.mxu0 0.0
    %1796 = vmatpush1.msra.mxu0 0.0
    %1797 = vmatprep.subr.mxu0 0.0
    %1798 = vmatpush1.msra.mxu0 0.0
    %1799 = vmatprep.subr.mxu0 0.0
    %1800 = vmatpush1.msra.mxu0 0.0
    %1801 = vmatprep.subr.mxu0 0.0
    %1802 = vmatpush1.msra.mxu0 0.0
    %1803 = vmatprep.subr.mxu0 0.0
    %1804 = vmatpush1.msra.mxu0 0.0
    %1805 = vmatprep.subr.mxu0 0.0
    %1806 = vmatpush1.msra.mxu0 0.0
    %1807 = vmatprep.subr.mxu0 0.0
    %1808 = vmatpush1.msra.mxu0 %v189
    %1809 = vmatprep.subr.mxu0 0.0
    %1810 = vmatpush2.msra.mxu0 0.0
    %1811 = vmatprep.subr.mxu0 0.0
    %1812 = vmatpush2.msra.mxu0 0.0
    %1813 = vmatprep.subr.mxu0 0.0
    %1814 = vmatpush2.msra.mxu0 0.0
    %1815 = vmatprep.subr.mxu0 0.0
    %1816 = vmatpush2.msra.mxu0 0.0
    %1817 = vmatprep.subr.mxu0 0.0
    %1818 = vmatpush2.msra.mxu0 0.0
    %1819 = vmatprep.subr.mxu0 0.0
    %1820 = vmatpush2.msra.mxu0 0.0
    %1821 = vmatprep.subr.mxu0 0.0
    %1822 = vmatpush2.msra.mxu0 0.0
    %1823 = vmatprep.subr.mxu0 0.0
    %1824 = vmatpush2.msra.mxu0 0.0
    %1825 = vmatprep.subr.mxu0 0.0
    %1826 = vmatpush2.msra.mxu0 0.0
    %1827 = vmatprep.subr.mxu0 0.0
    %1828 = vmatpush2.msra.mxu0 0.0
    %1829 = vmatprep.subr.mxu0 0.0
    %1830 = vmatpush2.msra.mxu0 0.0
    %1831 = vmatprep.subr.mxu0 0.0
    %1832 = vmatpush2.msra.mxu0 0.0
    %1833 = vmatprep.subr.mxu0 0.0
    %1834 = vmatpush2.msra.mxu0 0.0
    %1835 = vmatprep.subr.mxu0 0.0
    %1836 = vmatpush2.msra.mxu0 0.0
    %1837 = vmatprep.subr.mxu0 0.0
    %1838 = vmatpush2.msra.mxu0 0.0
    %1839 = vmatprep.subr.mxu0 0.0
    %1840 = vmatpush2.msra.mxu0 0.0
    %1841 = vmatprep.mubr.f32.mxu0 0.0
    %1842 = vmatmul.mubr.f32.gmra.mxu0 %v1772
    %v1843 = vpop.f32.mrf.mxu0
    %v1844 = vadd.f32 0.0, %v1843
    %v1845 = vpop.f32.mrf.mxu0
    %1846 = vmatprep.mubr.f32.mxu0 0.0
    %1847 = vmatmul.mubr.f32.gmra.mxu0 %v1775
    %v1848 = vpop.f32.mrf.mxu0
    %v1849 = vadd.f32 0.0, %v1848
    %v1850 = vpop.f32.mrf.mxu0
    %1851 = vdwg.mxu0
    %v1853 = vsel %vm306, %v1530, 0
    %v1856 = vsel %vm306, %v1606, 0
    %1858 = vmatprep.subr.mxu0 0.0
    %1859 = vmatpush1.msra.mxu0 0.0
    %1860 = vmatprep.subr.mxu0 0.0
    %1861 = vmatpush1.msra.mxu0 0.0
    %1862 = vmatprep.subr.mxu0 0.0
    %1863 = vmatpush1.msra.mxu0 0.0
    %1864 = vmatprep.subr.mxu0 0.0
    %1865 = vmatpush1.msra.mxu0 0.0
    %1866 = vmatprep.subr.mxu0 0.0
    %1867 = vmatpush1.msra.mxu0 0.0
    %1868 = vmatprep.subr.mxu0 0.0
    %1869 = vmatpush1.msra.mxu0 0.0
    %1870 = vmatprep.subr.mxu0 0.0
    %1871 = vmatpush1.msra.mxu0 0.0
    %1872 = vmatprep.subr.mxu0 0.0
    %1873 = vmatpush1.msra.mxu0 0.0
    %1874 = vmatprep.subr.mxu0 0.0
    %1875 = vmatpush1.msra.mxu0 0.0
    %1876 = vmatprep.subr.mxu0 0.0
    %1877 = vmatpush1.msra.mxu0 0.0
    %1878 = vmatprep.subr.mxu0 0.0
    %1879 = vmatpush1.msra.mxu0 0.0
    %1880 = vmatprep.subr.mxu0 0.0
    %1881 = vmatpush1.msra.mxu0 0.0
    %1882 = vmatprep.subr.mxu0 0.0
    %1883 = vmatpush1.msra.mxu0 0.0
    %1884 = vmatprep.subr.mxu0 0.0
    %1885 = vmatpush1.msra.mxu0 0.0
    %1886 = vmatprep.subr.mxu0 0.0
    %1887 = vmatpush1.msra.mxu0 0.0
    %1888 = vmatprep.subr.mxu0 0.0
    %1889 = vmatpush1.msra.mxu0 %v190
    %1890 = vmatprep.subr.mxu0 0.0
    %1891 = vmatpush2.msra.mxu0 0.0
    %1892 = vmatprep.subr.mxu0 0.0
    %1893 = vmatpush2.msra.mxu0 0.0
    %1894 = vmatprep.subr.mxu0 0.0
    %1895 = vmatpush2.msra.mxu0 0.0
    %1896 = vmatprep.subr.mxu0 0.0
    %1897 = vmatpush2.msra.mxu0 0.0
    %1898 = vmatprep.subr.mxu0 0.0
    %1899 = vmatpush2.msra.mxu0 0.0
    %1900 = vmatprep.subr.mxu0 0.0
    %1901 = vmatpush2.msra.mxu0 0.0
    %1902 = vmatprep.subr.mxu0 0.0
    %1903 = vmatpush2.msra.mxu0 0.0
    %1904 = vmatprep.subr.mxu0 0.0
    %1905 = vmatpush2.msra.mxu0 0.0
    %1906 = vmatprep.subr.mxu0 0.0
    %1907 = vmatpush2.msra.mxu0 0.0
    %1908 = vmatprep.subr.mxu0 0.0
    %1909 = vmatpush2.msra.mxu0 0.0
    %1910 = vmatprep.subr.mxu0 0.0
    %1911 = vmatpush2.msra.mxu0 0.0
    %1912 = vmatprep.subr.mxu0 0.0
    %1913 = vmatpush2.msra.mxu0 0.0
    %1914 = vmatprep.subr.mxu0 0.0
    %1915 = vmatpush2.msra.mxu0 0.0
    %1916 = vmatprep.subr.mxu0 0.0
    %1917 = vmatpush2.msra.mxu0 0.0
    %1918 = vmatprep.subr.mxu0 0.0
    %1919 = vmatpush2.msra.mxu0 0.0
    %1920 = vmatprep.subr.mxu0 0.0
    %1921 = vmatpush2.msra.mxu0 0.0
    %1922 = vmatprep.mubr.f32.mxu0 0.0
    %1923 = vmatmul.mubr.f32.gmra.mxu0 %v1853
    %v1924 = vpop.f32.mrf.mxu0
    %v1925 = vadd.f32 0.0, %v1924
    %v1926 = vpop.f32.mrf.mxu0
    %1927 = vmatprep.mubr.f32.mxu0 0.0
    %1928 = vmatmul.mubr.f32.gmra.mxu0 %v1856
    %v1929 = vpop.f32.mrf.mxu0
    %v1930 = vadd.f32 0.0, %v1929
    %v1931 = vpop.f32.mrf.mxu0
    %1932 = vdwg.mxu0
    %v1933 = vsel %vm208, %v1682, 0.0
    %v1934 = vsel %vm208, %v1763, 0.0
    %v1935 = vadd.f32 %v1933, %v1934
    %v1936 = vsel %vm208, %v1844, 0.0
    %v1937 = vadd.f32 %v1935, %v1936
    %v1938 = vsel %vm208, %v1925, 0.0
    %v1939 = vadd.f32 %v1937, %v1938
    %v1940 = vsel %vm208, %v1687, 0.0
    %v1941 = vsel %vm208, %v1768, 0.0
    %v1942 = vadd.f32 %v1940, %v1941
    %v1943 = vsel %vm208, %v1849, 0.0
    %v1944 = vadd.f32 %v1942, %v1943
    %v1945 = vsel %vm208, %v1930, 0.0
    %v1946 = vadd.f32 %v1944, %v1945
    %v1947 = vld [vmem:[#allocation8 + $0x3] sm:$0x1]
    %v1948 = vlaneseq
    %v1949 = vshrl.u32 %v1948, 7
    %v1950 = vsub.s32 0, %v1949
    %v1951 = vrot.slane %v1947, %v1950
    %v1952 = vadd.f32 %v1939, %v1951
    %v1953 = vadd.f32 %v1946, %v1951
    %v1954 = vadd.f32 %v181, %v1952
    %v1955 = vadd.f32 %v182, %v1953
    %v1956 = vld [vmem:[#allocation8 + $0x6] sm:$0x1]
    %v1957 = vld [vmem:[#allocation8 + $0x7] sm:$0x1]
    %v1958 = vsel %vm208, %v1954, 0.0
    %1959 = vadd.xlane.f32.xlu0 %v1958
    %v1960 = vpop.xlane.xlu0 %1959
    %v1961 = vsel %vm208, %v1955, 0.0
    %1962 = vadd.xlane.f32.xlu0 %v1961
    %v1963 = vpop.xlane.xlu0 %1962
    %v1964 = vrcp.pop 32.0
    %v1965 = vmul.f32 %v1960, %v1964
    %v1966 = vmul.f32 %v1963, %v1964
    %v1967 = vsub.f32 %v1954, %v1965
    %v1968 = vsub.f32 %v1955, %v1966
    %v1969 = vmul.f32 %v1967, %v1967
    %v1970 = vmul.f32 %v1968, %v1968
    %v1971 = vsel %vm208, %v1969, 0.0
    %1972 = vadd.xlane.f32.xlu0 %v1971
    %v1973 = vpop.xlane.xlu0 %1972
    %v1974 = vsel %vm208, %v1970, 0.0
    %1975 = vadd.xlane.f32.xlu0 %v1974
    %v1976 = vpop.xlane.xlu0 %1975
    %v1977 = vmul.f32 %v1973, %v1964
    %v1978 = vmul.f32 %v1976, %v1964
    %v1979 = vadd.f32 %v1977, 1e-05
    %v1980 = vadd.f32 %v1978, 1e-05
    %v1981 = vrsqrt.pop %v1979
    %v1982 = vrsqrt.pop %v1980
    %v1983 = vmul.f32 %v1967, %v1981
    %v1984 = vmul.f32 %v1968, %v1982
    %v1985 = vlaneseq
    %v1986 = vshrl.u32 %v1985, 7
    %v1987 = vsub.s32 0, %v1986
    %v1988 = vrot.slane %v1956, %v1987
    %v1989 = vmul.f32 %v1983, %v1988
    %v1990 = vmul.f32 %v1984, %v1988
    %v1991 = vlaneseq
    %v1992 = vshrl.u32 %v1991, 7
    %v1993 = vsub.s32 0, %v1992
    %v1994 = vrot.slane %v1957, %v1993
    %v1995 = vadd.f32 %v1989, %v1994
    %v1996 = vadd.f32 %v1990, %v1994
    %v1997 = vld [vmem:[#allocation8 + $0x4] sm:$0x1]
    %v1998 = vlaneseq
    %v1999 = vshrl.u32 %v1998, 7
    %v2000 = vsub.s32 0, %v1999
    %v2001 = vrot.slane %v1997, %v2000
    %v2003 = vsel %vm208, %v1995, 0
    %v2006 = vsel %vm208, %v1996, 0
    %2008 = vmatprep.subr.mxu0 0.0
    %2009 = vmatpush1.msra.mxu0 0.0
    %2010 = vmatprep.subr.mxu0 0.0
    %2011 = vmatpush1.msra.mxu0 0.0
    %2012 = vmatprep.subr.mxu0 0.0
    %2013 = vmatpush1.msra.mxu0 0.0
    %2014 = vmatprep.subr.mxu0 0.0
    %2015 = vmatpush1.msra.mxu0 0.0
    %2016 = vmatprep.subr.mxu0 0.0
    %2017 = vmatpush1.msra.mxu0 0.0
    %2018 = vmatprep.subr.mxu0 0.0
    %2019 = vmatpush1.msra.mxu0 0.0
    %2020 = vmatprep.subr.mxu0 0.0
    %2021 = vmatpush1.msra.mxu0 0.0
    %2022 = vmatprep.subr.mxu0 0.0
    %2023 = vmatpush1.msra.mxu0 0.0
    %2024 = vmatprep.subr.mxu0 0.0
    %2025 = vmatpush1.msra.mxu0 0.0
    %2026 = vmatprep.subr.mxu0 0.0
    %2027 = vmatpush1.msra.mxu0 0.0
    %2028 = vmatprep.subr.mxu0 0.0
    %2029 = vmatpush1.msra.mxu0 0.0
    %2030 = vmatprep.subr.mxu0 0.0
    %2031 = vmatpush1.msra.mxu0 0.0
    %2032 = vmatprep.subr.mxu0 0.0
    %2033 = vmatpush1.msra.mxu0 %v194
    %2034 = vmatprep.subr.mxu0 0.0
    %2035 = vmatpush1.msra.mxu0 %v193
    %2036 = vmatprep.subr.mxu0 0.0
    %2037 = vmatpush1.msra.mxu0 %v192
    %2038 = vmatprep.subr.mxu0 0.0
    %2039 = vmatpush1.msra.mxu0 %v191
    %2040 = vmatprep.subr.mxu0 0.0
    %2041 = vmatpush2.msra.mxu0 0.0
    %2042 = vmatprep.subr.mxu0 0.0
    %2043 = vmatpush2.msra.mxu0 0.0
    %2044 = vmatprep.subr.mxu0 0.0
    %2045 = vmatpush2.msra.mxu0 0.0
    %2046 = vmatprep.subr.mxu0 0.0
    %2047 = vmatpush2.msra.mxu0 0.0
    %2048 = vmatprep.subr.mxu0 0.0
    %2049 = vmatpush2.msra.mxu0 0.0
    %2050 = vmatprep.subr.mxu0 0.0
    %2051 = vmatpush2.msra.mxu0 0.0
    %2052 = vmatprep.subr.mxu0 0.0
    %2053 = vmatpush2.msra.mxu0 0.0
    %2054 = vmatprep.subr.mxu0 0.0
    %2055 = vmatpush2.msra.mxu0 0.0
    %2056 = vmatprep.subr.mxu0 0.0
    %2057 = vmatpush2.msra.mxu0 0.0
    %2058 = vmatprep.subr.mxu0 0.0
    %2059 = vmatpush2.msra.mxu0 0.0
    %2060 = vmatprep.subr.mxu0 0.0
    %2061 = vmatpush2.msra.mxu0 0.0
    %2062 = vmatprep.subr.mxu0 0.0
    %2063 = vmatpush2.msra.mxu0 0.0
    %2064 = vmatprep.subr.mxu0 0.0
    %2065 = vmatpush2.msra.mxu0 0.0
    %2066 = vmatprep.subr.mxu0 0.0
    %2067 = vmatpush2.msra.mxu0 0.0
    %2068 = vmatprep.subr.mxu0 0.0
    %2069 = vmatpush2.msra.mxu0 0.0
    %2070 = vmatprep.subr.mxu0 0.0
    %2071 = vmatpush2.msra.mxu0 0.0
    %2072 = vmatprep.mubr.f32.mxu0 0.0
    %2073 = vmatmul.mubr.f32.gmra.mxu0 %v2003
    %v2074 = vpop.f32.mrf.mxu0
    %v2075 = vadd.f32 %v2001, %v2074
    %v2076 = vpop.f32.mrf.mxu0
    %2077 = vmatprep.mubr.f32.mxu0 0.0
    %2078 = vmatmul.mubr.f32.gmra.mxu0 %v2006
    %v2079 = vpop.f32.mrf.mxu0
    %v2080 = vadd.f32 %v2001, %v2079
    %v2081 = vpop.f32.mrf.mxu0
    %2082 = vdwg.mxu0
    %v2083 = vmax.f32 %v2075, 0.0
    %v2084 = vmax.f32 %v2080, 0.0
    %v2085 = vld [vmem:[#allocation8 + $0x5] sm:$0x1]
    %v2086 = vlaneseq
    %v2087 = vshrl.u32 %v2086, 7
    %v2088 = vsub.s32 0, %v2087
    %v2089 = vrot.slane %v2085, %v2088
    %vm2090 = vcmask 523264
    %v2092 = vsel %vm2090, %v2083, 0
    %v2095 = vsel %vm2090, %v2084, 0
    %2097 = vmatprep.subr.mxu0 0.0
    %2098 = vmatpush1.msra.mxu0 0.0
    %2099 = vmatprep.subr.mxu0 0.0
    %2100 = vmatpush1.msra.mxu0 0.0
    %2101 = vmatprep.subr.mxu0 0.0
    %2102 = vmatpush1.msra.mxu0 0.0
    %2103 = vmatprep.subr.mxu0 0.0
    %2104 = vmatpush1.msra.mxu0 0.0
    %2105 = vmatprep.subr.mxu0 0.0
    %2106 = vmatpush1.msra.mxu0 0.0
    %2107 = vmatprep.subr.mxu0 0.0
    %2108 = vmatpush1.msra.mxu0 0.0
    %2109 = vmatprep.subr.mxu0 0.0
    %2110 = vmatpush1.msra.mxu0 0.0
    %2111 = vmatprep.subr.mxu0 0.0
    %2112 = vmatpush1.msra.mxu0 0.0
    %2113 = vmatprep.subr.mxu0 0.0
    %2114 = vmatpush1.msra.mxu0 %v202
    %2115 = vmatprep.subr.mxu0 0.0
    %2116 = vmatpush1.msra.mxu0 %v201
    %2117 = vmatprep.subr.mxu0 0.0
    %2118 = vmatpush1.msra.mxu0 %v200
    %2119 = vmatprep.subr.mxu0 0.0
    %2120 = vmatpush1.msra.mxu0 %v199
    %2121 = vmatprep.subr.mxu0 0.0
    %2122 = vmatpush1.msra.mxu0 %v198
    %2123 = vmatprep.subr.mxu0 0.0
    %2124 = vmatpush1.msra.mxu0 %v197
    %2125 = vmatprep.subr.mxu0 0.0
    %2126 = vmatpush1.msra.mxu0 %v196
    %2127 = vmatprep.subr.mxu0 0.0
    %2128 = vmatpush1.msra.mxu0 %v195
    %2129 = vmatprep.subr.mxu0 0.0
    %2130 = vmatpush2.msra.mxu0 0.0
    %2131 = vmatprep.subr.mxu0 0.0
    %2132 = vmatpush2.msra.mxu0 0.0
    %2133 = vmatprep.subr.mxu0 0.0
    %2134 = vmatpush2.msra.mxu0 0.0
    %2135 = vmatprep.subr.mxu0 0.0
    %2136 = vmatpush2.msra.mxu0 0.0
    %2137 = vmatprep.subr.mxu0 0.0
    %2138 = vmatpush2.msra.mxu0 0.0
    %2139 = vmatprep.subr.mxu0 0.0
    %2140 = vmatpush2.msra.mxu0 0.0
    %2141 = vmatprep.subr.mxu0 0.0
    %2142 = vmatpush2.msra.mxu0 0.0
    %2143 = vmatprep.subr.mxu0 0.0
    %2144 = vmatpush2.msra.mxu0 0.0
    %2145 = vmatprep.subr.mxu0 0.0
    %2146 = vmatpush2.msra.mxu0 0.0
    %2147 = vmatprep.subr.mxu0 0.0
    %2148 = vmatpush2.msra.mxu0 0.0
    %2149 = vmatprep.subr.mxu0 0.0
    %2150 = vmatpush2.msra.mxu0 0.0
    %2151 = vmatprep.subr.mxu0 0.0
    %2152 = vmatpush2.msra.mxu0 0.0
    %2153 = vmatprep.subr.mxu0 0.0
    %2154 = vmatpush2.msra.mxu0 0.0
    %2155 = vmatprep.subr.mxu0 0.0
    %2156 = vmatpush2.msra.mxu0 0.0
    %2157 = vmatprep.subr.mxu0 0.0
    %2158 = vmatpush2.msra.mxu0 0.0
    %2159 = vmatprep.subr.mxu0 0.0
    %2160 = vmatpush2.msra.mxu0 0.0
    %2161 = vmatprep.mubr.f32.mxu0 0.0
    %2162 = vmatmul.mubr.f32.gmra.mxu0 %v2092
    %v2163 = vpop.f32.mrf.mxu0
    %v2164 = vadd.f32 %v2089, %v2163
    %v2165 = vpop.f32.mrf.mxu0
    %2166 = vmatprep.mubr.f32.mxu0 0.0
    %2167 = vmatmul.mubr.f32.gmra.mxu0 %v2095
    %v2168 = vpop.f32.mrf.mxu0
    %v2169 = vadd.f32 %v2089, %v2168
    %v2170 = vpop.f32.mrf.mxu0
    %2171 = vdwg.mxu0
    %v2172 = vadd.f32 %v1995, %v2164
    %v2173 = vadd.f32 %v1996, %v2169
    %v2174 = vld [vmem:[#allocation8 + $0x8] sm:$0x1]
    %v2175 = vld [vmem:[#allocation8 + $0x9] sm:$0x1]
    %v2176 = vsel %vm208, %v2172, 0.0
    %2177 = vadd.xlane.f32.xlu0 %v2176
    %v2178 = vpop.xlane.xlu0 %2177
    %v2179 = vsel %vm208, %v2173, 0.0
    %2180 = vadd.xlane.f32.xlu0 %v2179
    %v2181 = vpop.xlane.xlu0 %2180
    %v2182 = vmul.f32 %v2178, %v1964
    %v2183 = vmul.f32 %v2181, %v1964
    %v2184 = vsub.f32 %v2172, %v2182
    %v2185 = vsub.f32 %v2173, %v2183
    %v2186 = vmul.f32 %v2184, %v2184
    %v2187 = vmul.f32 %v2185, %v2185
    %v2188 = vsel %vm208, %v2186, 0.0
    %2189 = vadd.xlane.f32.xlu0 %v2188
    %v2190 = vpop.xlane.xlu0 %2189
    %v2191 = vsel %vm208, %v2187, 0.0
    %2192 = vadd.xlane.f32.xlu0 %v2191
    %v2193 = vpop.xlane.xlu0 %2192
    %v2194 = vmul.f32 %v2190, %v1964
    %v2195 = vmul.f32 %v2193, %v1964
    %v2196 = vadd.f32 %v2194, 1e-05
    %v2197 = vadd.f32 %v2195, 1e-05
    %v2198 = vrsqrt.pop %v2196
    %v2199 = vrsqrt.pop %v2197
    %v2200 = vmul.f32 %v2184, %v2198
    %v2201 = vmul.f32 %v2185, %v2199
    %v2202 = vlaneseq
    %v2203 = vshrl.u32 %v2202, 7
    %v2204 = vsub.s32 0, %v2203
    %v2205 = vrot.slane %v2174, %v2204
    %v2206 = vmul.f32 %v2200, %v2205
    %v2207 = vmul.f32 %v2201, %v2205
    %v2208 = vlaneseq
    %v2209 = vshrl.u32 %v2208, 7
    %v2210 = vsub.s32 0, %v2209
    %v2211 = vrot.slane %v2175, %v2210
    %v2212 = vadd.f32 %v2206, %v2211
    %v2213 = vadd.f32 %v2207, %v2211
    %v2214 = vld [vmem:[%s4 + $0x20] sm:$0xff]
    %v2215 = vld [vmem:[%s4 + $0x28] sm:$0xff]
    %v2216 = vld [vmem:[%s4 + $0x30] sm:$0xff]
    %v2217 = vld [vmem:[%s4 + $0x38] sm:$0xff]
    %s2218 = scalar_lea.vmem %s5, 32
    %v2219 = vld [vmem:[%s2218] sm:$0xff]
    %v2220 = vld [vmem:[%s2218 + $0x8] sm:$0xff]
    %v2221 = vld [vmem:[%s2218 + $0x10] sm:$0xff]
    %v2222 = vld [vmem:[%s2218 + $0x18] sm:$0xff]
    %v2223 = vld [vmem:[%s6 + $0x20] sm:$0xff]
    %v2224 = vld [vmem:[%s6 + $0x28] sm:$0xff]
    %v2225 = vld [vmem:[%s6 + $0x30] sm:$0xff]
    %v2226 = vld [vmem:[%s6 + $0x38] sm:$0xff]
    %v2227 = vld [vmem:[%s7 + $0x40] sm:$0xff]
    %v2228 = vld [vmem:[%s7 + $0x48] sm:$0xff]
    %v2229 = vld [vmem:[%s7 + $0x50] sm:$0xff]
    %v2230 = vld [vmem:[%s7 + $0x58] sm:$0xff]
    %v2231 = vld [vmem:[%s7 + $0x60] sm:$0xff]
    %v2232 = vld [vmem:[%s7 + $0x68] sm:$0xff]
    %v2233 = vld [vmem:[%s7 + $0x70] sm:$0xff]
    %v2234 = vld [vmem:[%s7 + $0x78] sm:$0xff]
    %v2235 = vld [vmem:[#allocation8 + $0xa] sm:$0x1]
    %v2236 = vlaneseq
    %v2237 = vshrl.u32 %v2236, 7
    %v2238 = vsub.s32 0, %v2237
    %v2239 = vrot.slane %v2235, %v2238
    %v2241 = vsel %vm208, %v2212, 0
    %v2244 = vsel %vm208, %v2213, 0
    %2246 = vmatprep.subr.mxu0 0.0
    %2247 = vmatpush1.msra.mxu0 0.0
    %2248 = vmatprep.subr.mxu0 0.0
    %2249 = vmatpush1.msra.mxu0 0.0
    %2250 = vmatprep.subr.mxu0 0.0
    %2251 = vmatpush1.msra.mxu0 0.0
    %2252 = vmatprep.subr.mxu0 0.0
    %2253 = vmatpush1.msra.mxu0 0.0
    %2254 = vmatprep.subr.mxu0 0.0
    %2255 = vmatpush1.msra.mxu0 0.0
    %2256 = vmatprep.subr.mxu0 0.0
    %2257 = vmatpush1.msra.mxu0 0.0
    %2258 = vmatprep.subr.mxu0 0.0
    %2259 = vmatpush1.msra.mxu0 0.0
    %2260 = vmatprep.subr.mxu0 0.0
    %2261 = vmatpush1.msra.mxu0 0.0
    %2262 = vmatprep.subr.mxu0 0.0
    %2263 = vmatpush1.msra.mxu0 0.0
    %2264 = vmatprep.subr.mxu0 0.0
    %2265 = vmatpush1.msra.mxu0 0.0
    %2266 = vmatprep.subr.mxu0 0.0
    %2267 = vmatpush1.msra.mxu0 0.0
    %2268 = vmatprep.subr.mxu0 0.0
    %2269 = vmatpush1.msra.mxu0 0.0
    %2270 = vmatprep.subr.mxu0 0.0
    %2271 = vmatpush1.msra.mxu0 %v2217
    %2272 = vmatprep.subr.mxu0 0.0
    %2273 = vmatpush1.msra.mxu0 %v2216
    %2274 = vmatprep.subr.mxu0 0.0
    %2275 = vmatpush1.msra.mxu0 %v2215
    %2276 = vmatprep.subr.mxu0 0.0
    %2277 = vmatpush1.msra.mxu0 %v2214
    %2278 = vmatprep.subr.mxu0 0.0
    %2279 = vmatpush2.msra.mxu0 0.0
    %2280 = vmatprep.subr.mxu0 0.0
    %2281 = vmatpush2.msra.mxu0 0.0
    %2282 = vmatprep.subr.mxu0 0.0
    %2283 = vmatpush2.msra.mxu0 0.0
    %2284 = vmatprep.subr.mxu0 0.0
    %2285 = vmatpush2.msra.mxu0 0.0
    %2286 = vmatprep.subr.mxu0 0.0
    %2287 = vmatpush2.msra.mxu0 0.0
    %2288 = vmatprep.subr.mxu0 0.0
    %2289 = vmatpush2.msra.mxu0 0.0
    %2290 = vmatprep.subr.mxu0 0.0
    %2291 = vmatpush2.msra.mxu0 0.0
    %2292 = vmatprep.subr.mxu0 0.0
    %2293 = vmatpush2.msra.mxu0 0.0
    %2294 = vmatprep.subr.mxu0 0.0
    %2295 = vmatpush2.msra.mxu0 0.0
    %2296 = vmatprep.subr.mxu0 0.0
    %2297 = vmatpush2.msra.mxu0 0.0
    %2298 = vmatprep.subr.mxu0 0.0
    %2299 = vmatpush2.msra.mxu0 0.0
    %2300 = vmatprep.subr.mxu0 0.0
    %2301 = vmatpush2.msra.mxu0 0.0
    %2302 = vmatprep.subr.mxu0 0.0
    %2303 = vmatpush2.msra.mxu0 0.0
    %2304 = vmatprep.subr.mxu0 0.0
    %2305 = vmatpush2.msra.mxu0 0.0
    %2306 = vmatprep.subr.mxu0 0.0
    %2307 = vmatpush2.msra.mxu0 0.0
    %2308 = vmatprep.subr.mxu0 0.0
    %2309 = vmatpush2.msra.mxu0 0.0
    %2310 = vmatprep.mubr.f32.mxu0 0.0
    %2311 = vmatmul.mubr.f32.gmra.mxu0 %v2241
    %v2312 = vpop.f32.mrf.mxu0
    %v2313 = vadd.f32 %v2239, %v2312
    %v2314 = vpop.f32.mrf.mxu0
    %2315 = vmatprep.mubr.f32.mxu0 0.0
    %2316 = vmatmul.mubr.f32.gmra.mxu0 %v2244
    %v2317 = vpop.f32.mrf.mxu0
    %v2318 = vadd.f32 %v2239, %v2317
    %v2319 = vpop.f32.mrf.mxu0
    %2320 = vdwg.mxu0
    %2323 = vrot.lane.b32.xlu0 %v2313, 120
    %v2324 = vpop.permute.xlu0 %2323
    %2325 = vrot.lane.b32.xlu0 %v2318, 120
    %v2326 = vpop.permute.xlu0 %2325
    %2327 = vrot.lane.b32.xlu0 %v2313, 112
    %v2328 = vpop.permute.xlu0 %2327
    %2329 = vrot.lane.b32.xlu0 %v2318, 112
    %v2330 = vpop.permute.xlu0 %2329
    %2331 = vrot.lane.b32.xlu0 %v2313, 104
    %v2332 = vpop.permute.xlu0 %2331
    %2333 = vrot.lane.b32.xlu0 %v2318, 104
    %v2334 = vpop.permute.xlu0 %2333
    %2335 = vrot.lane.b32.xlu0 %v2313, 96
    %v2336 = vpop.permute.xlu0 %2335
    %v2337 = vsel %vm306, %v2313, 0
    %v2339 = vsel %vm306, %v2336, 0
    %2341 = vmatprep.subr.mxu0 0.0
    %2342 = vmatpush1.xpose.msra.mxu0 0.0
    %2343 = vmatprep.subr.mxu0 0.0
    %2344 = vmatpush1.xpose.msra.mxu0 0.0
    %2345 = vmatprep.subr.mxu0 0.0
    %2346 = vmatpush1.xpose.msra.mxu0 0.0
    %2347 = vmatprep.subr.mxu0 0.0
    %2348 = vmatpush1.xpose.msra.mxu0 0.0
    %2349 = vmatprep.subr.mxu0 0.0
    %2350 = vmatpush1.xpose.msra.mxu0 0.0
    %2351 = vmatprep.subr.mxu0 0.0
    %2352 = vmatpush1.xpose.msra.mxu0 0.0
    %2353 = vmatprep.subr.mxu0 0.0
    %2354 = vmatpush1.xpose.msra.mxu0 0.0
    %2355 = vmatprep.subr.mxu0 0.0
    %2356 = vmatpush1.xpose.msra.mxu0 0.0
    %2357 = vmatprep.subr.mxu0 0.0
    %2358 = vmatpush1.xpose.msra.mxu0 0.0
    %2359 = vmatprep.subr.mxu0 0.0
    %2360 = vmatpush1.xpose.msra.mxu0 0.0
    %2361 = vmatprep.subr.mxu0 0.0
    %2362 = vmatpush1.xpose.msra.mxu0 0.0
    %2363 = vmatprep.subr.mxu0 0.0
    %2364 = vmatpush1.xpose.msra.mxu0 0.0
    %2365 = vmatprep.subr.mxu0 0.0
    %2366 = vmatpush1.xpose.msra.mxu0 0.0
    %2367 = vmatprep.subr.mxu0 0.0
    %2368 = vmatpush1.xpose.msra.mxu0 0.0
    %2369 = vmatprep.subr.mxu0 0.0
    %2370 = vmatpush1.xpose.msra.mxu0 0.0
    %2371 = vmatprep.subr.mxu0 0.0
    %2372 = vmatpush1.xpose.msra.mxu0 %v2339
    %2373 = vmatprep.subr.mxu0 0.0
    %2374 = vmatpush2.xpose.msra.mxu0 0.0
    %2375 = vmatprep.subr.mxu0 0.0
    %2376 = vmatpush2.xpose.msra.mxu0 0.0
    %2377 = vmatprep.subr.mxu0 0.0
    %2378 = vmatpush2.xpose.msra.mxu0 0.0
    %2379 = vmatprep.subr.mxu0 0.0
    %2380 = vmatpush2.xpose.msra.mxu0 0.0
    %2381 = vmatprep.subr.mxu0 0.0
    %2382 = vmatpush2.xpose.msra.mxu0 0.0
    %2383 = vmatprep.subr.mxu0 0.0
    %2384 = vmatpush2.xpose.msra.mxu0 0.0
    %2385 = vmatprep.subr.mxu0 0.0
    %2386 = vmatpush2.xpose.msra.mxu0 0.0
    %2387 = vmatprep.subr.mxu0 0.0
    %2388 = vmatpush2.xpose.msra.mxu0 0.0
    %2389 = vmatprep.subr.mxu0 0.0
    %2390 = vmatpush2.xpose.msra.mxu0 0.0
    %2391 = vmatprep.subr.mxu0 0.0
    %2392 = vmatpush2.xpose.msra.mxu0 0.0
    %2393 = vmatprep.subr.mxu0 0.0
    %2394 = vmatpush2.xpose.msra.mxu0 0.0
    %2395 = vmatprep.subr.mxu0 0.0
    %2396 = vmatpush2.xpose.msra.mxu0 0.0
    %2397 = vmatprep.subr.mxu0 0.0
    %2398 = vmatpush2.xpose.msra.mxu0 0.0
    %2399 = vmatprep.subr.mxu0 0.0
    %2400 = vmatpush2.xpose.msra.mxu0 0.0
    %2401 = vmatprep.subr.mxu0 0.0
    %2402 = vmatpush2.xpose.msra.mxu0 0.0
    %2403 = vmatprep.subr.mxu0 0.0
    %2404 = vmatpush2.xpose.msra.mxu0 0.0
    %2405 = vmatprep.mubr.f32.mxu0 0.0
    %2406 = vmatmul.mubr.f32.gmra.mxu0 %v2337
    %v2407 = vpop.f32.mrf.mxu0
    %v2408 = vadd.f32 0.0, %v2407
    %v2409 = vpop.f32.mrf.mxu0
    %2410 = vdwg.mxu0
    %2411 = vrot.lane.b32.xlu0 %v2318, 96
    %v2412 = vpop.permute.xlu0 %2411
    %v2413 = vsel %vm306, %v2318, 0
    %v2415 = vsel %vm306, %v2412, 0
    %2417 = vmatprep.subr.mxu0 0.0
    %2418 = vmatpush1.xpose.msra.mxu0 0.0
    %2419 = vmatprep.subr.mxu0 0.0
    %2420 = vmatpush1.xpose.msra.mxu0 0.0
    %2421 = vmatprep.subr.mxu0 0.0
    %2422 = vmatpush1.xpose.msra.mxu0 0.0
    %2423 = vmatprep.subr.mxu0 0.0
    %2424 = vmatpush1.xpose.msra.mxu0 0.0
    %2425 = vmatprep.subr.mxu0 0.0
    %2426 = vmatpush1.xpose.msra.mxu0 0.0
    %2427 = vmatprep.subr.mxu0 0.0
    %2428 = vmatpush1.xpose.msra.mxu0 0.0
    %2429 = vmatprep.subr.mxu0 0.0
    %2430 = vmatpush1.xpose.msra.mxu0 0.0
    %2431 = vmatprep.subr.mxu0 0.0
    %2432 = vmatpush1.xpose.msra.mxu0 0.0
    %2433 = vmatprep.subr.mxu0 0.0
    %2434 = vmatpush1.xpose.msra.mxu0 0.0
    %2435 = vmatprep.subr.mxu0 0.0
    %2436 = vmatpush1.xpose.msra.mxu0 0.0
    %2437 = vmatprep.subr.mxu0 0.0
    %2438 = vmatpush1.xpose.msra.mxu0 0.0
    %2439 = vmatprep.subr.mxu0 0.0
    %2440 = vmatpush1.xpose.msra.mxu0 0.0
    %2441 = vmatprep.subr.mxu0 0.0
    %2442 = vmatpush1.xpose.msra.mxu0 0.0
    %2443 = vmatprep.subr.mxu0 0.0
    %2444 = vmatpush1.xpose.msra.mxu0 0.0
    %2445 = vmatprep.subr.mxu0 0.0
    %2446 = vmatpush1.xpose.msra.mxu0 0.0
    %2447 = vmatprep.subr.mxu0 0.0
    %2448 = vmatpush1.xpose.msra.mxu0 %v2415
    %2449 = vmatprep.subr.mxu0 0.0
    %2450 = vmatpush2.xpose.msra.mxu0 0.0
    %2451 = vmatprep.subr.mxu0 0.0
    %2452 = vmatpush2.xpose.msra.mxu0 0.0
    %2453 = vmatprep.subr.mxu0 0.0
    %2454 = vmatpush2.xpose.msra.mxu0 0.0
    %2455 = vmatprep.subr.mxu0 0.0
    %2456 = vmatpush2.xpose.msra.mxu0 0.0
    %2457 = vmatprep.subr.mxu0 0.0
    %2458 = vmatpush2.xpose.msra.mxu0 0.0
    %2459 = vmatprep.subr.mxu0 0.0
    %2460 = vmatpush2.xpose.msra.mxu0 0.0
    %2461 = vmatprep.subr.mxu0 0.0
    %2462 = vmatpush2.xpose.msra.mxu0 0.0
    %2463 = vmatprep.subr.mxu0 0.0
    %2464 = vmatpush2.xpose.msra.mxu0 0.0
    %2465 = vmatprep.subr.mxu0 0.0
    %2466 = vmatpush2.xpose.msra.mxu0 0.0
    %2467 = vmatprep.subr.mxu0 0.0
    %2468 = vmatpush2.xpose.msra.mxu0 0.0
    %2469 = vmatprep.subr.mxu0 0.0
    %2470 = vmatpush2.xpose.msra.mxu0 0.0
    %2471 = vmatprep.subr.mxu0 0.0
    %2472 = vmatpush2.xpose.msra.mxu0 0.0
    %2473 = vmatprep.subr.mxu0 0.0
    %2474 = vmatpush2.xpose.msra.mxu0 0.0
    %2475 = vmatprep.subr.mxu0 0.0
    %2476 = vmatpush2.xpose.msra.mxu0 0.0
    %2477 = vmatprep.subr.mxu0 0.0
    %2478 = vmatpush2.xpose.msra.mxu0 0.0
    %2479 = vmatprep.subr.mxu0 0.0
    %2480 = vmatpush2.xpose.msra.mxu0 0.0
    %2481 = vmatprep.mubr.f32.mxu0 0.0
    %2482 = vmatmul.mubr.f32.gmra.mxu0 %v2413
    %v2483 = vpop.f32.mrf.mxu0
    %v2484 = vadd.f32 0.0, %v2483
    %v2485 = vpop.f32.mrf.mxu0
    %2486 = vdwg.mxu0
    %2487 = vrot.lane.b32.xlu0 %v2324, 96
    %v2488 = vpop.permute.xlu0 %2487
    %v2489 = vsel %vm306, %v2324, 0
    %v2491 = vsel %vm306, %v2488, 0
    %2493 = vmatprep.subr.mxu0 0.0
    %2494 = vmatpush1.xpose.msra.mxu0 0.0
    %2495 = vmatprep.subr.mxu0 0.0
    %2496 = vmatpush1.xpose.msra.mxu0 0.0
    %2497 = vmatprep.subr.mxu0 0.0
    %2498 = vmatpush1.xpose.msra.mxu0 0.0
    %2499 = vmatprep.subr.mxu0 0.0
    %2500 = vmatpush1.xpose.msra.mxu0 0.0
    %2501 = vmatprep.subr.mxu0 0.0
    %2502 = vmatpush1.xpose.msra.mxu0 0.0
    %2503 = vmatprep.subr.mxu0 0.0
    %2504 = vmatpush1.xpose.msra.mxu0 0.0
    %2505 = vmatprep.subr.mxu0 0.0
    %2506 = vmatpush1.xpose.msra.mxu0 0.0
    %2507 = vmatprep.subr.mxu0 0.0
    %2508 = vmatpush1.xpose.msra.mxu0 0.0
    %2509 = vmatprep.subr.mxu0 0.0
    %2510 = vmatpush1.xpose.msra.mxu0 0.0
    %2511 = vmatprep.subr.mxu0 0.0
    %2512 = vmatpush1.xpose.msra.mxu0 0.0
    %2513 = vmatprep.subr.mxu0 0.0
    %2514 = vmatpush1.xpose.msra.mxu0 0.0
    %2515 = vmatprep.subr.mxu0 0.0
    %2516 = vmatpush1.xpose.msra.mxu0 0.0
    %2517 = vmatprep.subr.mxu0 0.0
    %2518 = vmatpush1.xpose.msra.mxu0 0.0
    %2519 = vmatprep.subr.mxu0 0.0
    %2520 = vmatpush1.xpose.msra.mxu0 0.0
    %2521 = vmatprep.subr.mxu0 0.0
    %2522 = vmatpush1.xpose.msra.mxu0 0.0
    %2523 = vmatprep.subr.mxu0 0.0
    %2524 = vmatpush1.xpose.msra.mxu0 %v2491
    %2525 = vmatprep.subr.mxu0 0.0
    %2526 = vmatpush2.xpose.msra.mxu0 0.0
    %2527 = vmatprep.subr.mxu0 0.0
    %2528 = vmatpush2.xpose.msra.mxu0 0.0
    %2529 = vmatprep.subr.mxu0 0.0
    %2530 = vmatpush2.xpose.msra.mxu0 0.0
    %2531 = vmatprep.subr.mxu0 0.0
    %2532 = vmatpush2.xpose.msra.mxu0 0.0
    %2533 = vmatprep.subr.mxu0 0.0
    %2534 = vmatpush2.xpose.msra.mxu0 0.0
    %2535 = vmatprep.subr.mxu0 0.0
    %2536 = vmatpush2.xpose.msra.mxu0 0.0
    %2537 = vmatprep.subr.mxu0 0.0
    %2538 = vmatpush2.xpose.msra.mxu0 0.0
    %2539 = vmatprep.subr.mxu0 0.0
    %2540 = vmatpush2.xpose.msra.mxu0 0.0
    %2541 = vmatprep.subr.mxu0 0.0
    %2542 = vmatpush2.xpose.msra.mxu0 0.0
    %2543 = vmatprep.subr.mxu0 0.0
    %2544 = vmatpush2.xpose.msra.mxu0 0.0
    %2545 = vmatprep.subr.mxu0 0.0
    %2546 = vmatpush2.xpose.msra.mxu0 0.0
    %2547 = vmatprep.subr.mxu0 0.0
    %2548 = vmatpush2.xpose.msra.mxu0 0.0
    %2549 = vmatprep.subr.mxu0 0.0
    %2550 = vmatpush2.xpose.msra.mxu0 0.0
    %2551 = vmatprep.subr.mxu0 0.0
    %2552 = vmatpush2.xpose.msra.mxu0 0.0
    %2553 = vmatprep.subr.mxu0 0.0
    %2554 = vmatpush2.xpose.msra.mxu0 0.0
    %2555 = vmatprep.subr.mxu0 0.0
    %2556 = vmatpush2.xpose.msra.mxu0 0.0
    %2557 = vmatprep.mubr.f32.mxu0 0.0
    %2558 = vmatmul.mubr.f32.gmra.mxu0 %v2489
    %v2559 = vpop.f32.mrf.mxu0
    %v2560 = vadd.f32 0.0, %v2559
    %v2561 = vpop.f32.mrf.mxu0
    %2562 = vdwg.mxu0
    %2563 = vrot.lane.b32.xlu0 %v2326, 96
    %v2564 = vpop.permute.xlu0 %2563
    %v2565 = vsel %vm306, %v2326, 0
    %v2567 = vsel %vm306, %v2564, 0
    %2569 = vmatprep.subr.mxu0 0.0
    %2570 = vmatpush1.xpose.msra.mxu0 0.0
    %2571 = vmatprep.subr.mxu0 0.0
    %2572 = vmatpush1.xpose.msra.mxu0 0.0
    %2573 = vmatprep.subr.mxu0 0.0
    %2574 = vmatpush1.xpose.msra.mxu0 0.0
    %2575 = vmatprep.subr.mxu0 0.0
    %2576 = vmatpush1.xpose.msra.mxu0 0.0
    %2577 = vmatprep.subr.mxu0 0.0
    %2578 = vmatpush1.xpose.msra.mxu0 0.0
    %2579 = vmatprep.subr.mxu0 0.0
    %2580 = vmatpush1.xpose.msra.mxu0 0.0
    %2581 = vmatprep.subr.mxu0 0.0
    %2582 = vmatpush1.xpose.msra.mxu0 0.0
    %2583 = vmatprep.subr.mxu0 0.0
    %2584 = vmatpush1.xpose.msra.mxu0 0.0
    %2585 = vmatprep.subr.mxu0 0.0
    %2586 = vmatpush1.xpose.msra.mxu0 0.0
    %2587 = vmatprep.subr.mxu0 0.0
    %2588 = vmatpush1.xpose.msra.mxu0 0.0
    %2589 = vmatprep.subr.mxu0 0.0
    %2590 = vmatpush1.xpose.msra.mxu0 0.0
    %2591 = vmatprep.subr.mxu0 0.0
    %2592 = vmatpush1.xpose.msra.mxu0 0.0
    %2593 = vmatprep.subr.mxu0 0.0
    %2594 = vmatpush1.xpose.msra.mxu0 0.0
    %2595 = vmatprep.subr.mxu0 0.0
    %2596 = vmatpush1.xpose.msra.mxu0 0.0
    %2597 = vmatprep.subr.mxu0 0.0
    %2598 = vmatpush1.xpose.msra.mxu0 0.0
    %2599 = vmatprep.subr.mxu0 0.0
    %2600 = vmatpush1.xpose.msra.mxu0 %v2567
    %2601 = vmatprep.subr.mxu0 0.0
    %2602 = vmatpush2.xpose.msra.mxu0 0.0
    %2603 = vmatprep.subr.mxu0 0.0
    %2604 = vmatpush2.xpose.msra.mxu0 0.0
    %2605 = vmatprep.subr.mxu0 0.0
    %2606 = vmatpush2.xpose.msra.mxu0 0.0
    %2607 = vmatprep.subr.mxu0 0.0
    %2608 = vmatpush2.xpose.msra.mxu0 0.0
    %2609 = vmatprep.subr.mxu0 0.0
    %2610 = vmatpush2.xpose.msra.mxu0 0.0
    %2611 = vmatprep.subr.mxu0 0.0
    %2612 = vmatpush2.xpose.msra.mxu0 0.0
    %2613 = vmatprep.subr.mxu0 0.0
    %2614 = vmatpush2.xpose.msra.mxu0 0.0
    %2615 = vmatprep.subr.mxu0 0.0
    %2616 = vmatpush2.xpose.msra.mxu0 0.0
    %2617 = vmatprep.subr.mxu0 0.0
    %2618 = vmatpush2.xpose.msra.mxu0 0.0
    %2619 = vmatprep.subr.mxu0 0.0
    %2620 = vmatpush2.xpose.msra.mxu0 0.0
    %2621 = vmatprep.subr.mxu0 0.0
    %2622 = vmatpush2.xpose.msra.mxu0 0.0
    %2623 = vmatprep.subr.mxu0 0.0
    %2624 = vmatpush2.xpose.msra.mxu0 0.0
    %2625 = vmatprep.subr.mxu0 0.0
    %2626 = vmatpush2.xpose.msra.mxu0 0.0
    %2627 = vmatprep.subr.mxu0 0.0
    %2628 = vmatpush2.xpose.msra.mxu0 0.0
    %2629 = vmatprep.subr.mxu0 0.0
    %2630 = vmatpush2.xpose.msra.mxu0 0.0
    %2631 = vmatprep.subr.mxu0 0.0
    %2632 = vmatpush2.xpose.msra.mxu0 0.0
    %2633 = vmatprep.mubr.f32.mxu0 0.0
    %2634 = vmatmul.mubr.f32.gmra.mxu0 %v2565
    %v2635 = vpop.f32.mrf.mxu0
    %v2636 = vadd.f32 0.0, %v2635
    %v2637 = vpop.f32.mrf.mxu0
    %2638 = vdwg.mxu0
    %2639 = vrot.lane.b32.xlu0 %v2328, 96
    %v2640 = vpop.permute.xlu0 %2639
    %v2641 = vsel %vm306, %v2328, 0
    %v2643 = vsel %vm306, %v2640, 0
    %2645 = vmatprep.subr.mxu0 0.0
    %2646 = vmatpush1.xpose.msra.mxu0 0.0
    %2647 = vmatprep.subr.mxu0 0.0
    %2648 = vmatpush1.xpose.msra.mxu0 0.0
    %2649 = vmatprep.subr.mxu0 0.0
    %2650 = vmatpush1.xpose.msra.mxu0 0.0
    %2651 = vmatprep.subr.mxu0 0.0
    %2652 = vmatpush1.xpose.msra.mxu0 0.0
    %2653 = vmatprep.subr.mxu0 0.0
    %2654 = vmatpush1.xpose.msra.mxu0 0.0
    %2655 = vmatprep.subr.mxu0 0.0
    %2656 = vmatpush1.xpose.msra.mxu0 0.0
    %2657 = vmatprep.subr.mxu0 0.0
    %2658 = vmatpush1.xpose.msra.mxu0 0.0
    %2659 = vmatprep.subr.mxu0 0.0
    %2660 = vmatpush1.xpose.msra.mxu0 0.0
    %2661 = vmatprep.subr.mxu0 0.0
    %2662 = vmatpush1.xpose.msra.mxu0 0.0
    %2663 = vmatprep.subr.mxu0 0.0
    %2664 = vmatpush1.xpose.msra.mxu0 0.0
    %2665 = vmatprep.subr.mxu0 0.0
    %2666 = vmatpush1.xpose.msra.mxu0 0.0
    %2667 = vmatprep.subr.mxu0 0.0
    %2668 = vmatpush1.xpose.msra.mxu0 0.0
    %2669 = vmatprep.subr.mxu0 0.0
    %2670 = vmatpush1.xpose.msra.mxu0 0.0
    %2671 = vmatprep.subr.mxu0 0.0
    %2672 = vmatpush1.xpose.msra.mxu0 0.0
    %2673 = vmatprep.subr.mxu0 0.0
    %2674 = vmatpush1.xpose.msra.mxu0 0.0
    %2675 = vmatprep.subr.mxu0 0.0
    %2676 = vmatpush1.xpose.msra.mxu0 %v2643
    %2677 = vmatprep.subr.mxu0 0.0
    %2678 = vmatpush2.xpose.msra.mxu0 0.0
    %2679 = vmatprep.subr.mxu0 0.0
    %2680 = vmatpush2.xpose.msra.mxu0 0.0
    %2681 = vmatprep.subr.mxu0 0.0
    %2682 = vmatpush2.xpose.msra.mxu0 0.0
    %2683 = vmatprep.subr.mxu0 0.0
    %2684 = vmatpush2.xpose.msra.mxu0 0.0
    %2685 = vmatprep.subr.mxu0 0.0
    %2686 = vmatpush2.xpose.msra.mxu0 0.0
    %2687 = vmatprep.subr.mxu0 0.0
    %2688 = vmatpush2.xpose.msra.mxu0 0.0
    %2689 = vmatprep.subr.mxu0 0.0
    %2690 = vmatpush2.xpose.msra.mxu0 0.0
    %2691 = vmatprep.subr.mxu0 0.0
    %2692 = vmatpush2.xpose.msra.mxu0 0.0
    %2693 = vmatprep.subr.mxu0 0.0
    %2694 = vmatpush2.xpose.msra.mxu0 0.0
    %2695 = vmatprep.subr.mxu0 0.0
    %2696 = vmatpush2.xpose.msra.mxu0 0.0
    %2697 = vmatprep.subr.mxu0 0.0
    %2698 = vmatpush2.xpose.msra.mxu0 0.0
    %2699 = vmatprep.subr.mxu0 0.0
    %2700 = vmatpush2.xpose.msra.mxu0 0.0
    %2701 = vmatprep.subr.mxu0 0.0
    %2702 = vmatpush2.xpose.msra.mxu0 0.0
    %2703 = vmatprep.subr.mxu0 0.0
    %2704 = vmatpush2.xpose.msra.mxu0 0.0
    %2705 = vmatprep.subr.mxu0 0.0
    %2706 = vmatpush2.xpose.msra.mxu0 0.0
    %2707 = vmatprep.subr.mxu0 0.0
    %2708 = vmatpush2.xpose.msra.mxu0 0.0
    %2709 = vmatprep.mubr.f32.mxu0 0.0
    %2710 = vmatmul.mubr.f32.gmra.mxu0 %v2641
    %v2711 = vpop.f32.mrf.mxu0
    %v2712 = vadd.f32 0.0, %v2711
    %v2713 = vpop.f32.mrf.mxu0
    %2714 = vdwg.mxu0
    %2715 = vrot.lane.b32.xlu0 %v2330, 96
    %v2716 = vpop.permute.xlu0 %2715
    %v2717 = vsel %vm306, %v2330, 0
    %v2719 = vsel %vm306, %v2716, 0
    %2721 = vmatprep.subr.mxu0 0.0
    %2722 = vmatpush1.xpose.msra.mxu0 0.0
    %2723 = vmatprep.subr.mxu0 0.0
    %2724 = vmatpush1.xpose.msra.mxu0 0.0
    %2725 = vmatprep.subr.mxu0 0.0
    %2726 = vmatpush1.xpose.msra.mxu0 0.0
    %2727 = vmatprep.subr.mxu0 0.0
    %2728 = vmatpush1.xpose.msra.mxu0 0.0
    %2729 = vmatprep.subr.mxu0 0.0
    %2730 = vmatpush1.xpose.msra.mxu0 0.0
    %2731 = vmatprep.subr.mxu0 0.0
    %2732 = vmatpush1.xpose.msra.mxu0 0.0
    %2733 = vmatprep.subr.mxu0 0.0
    %2734 = vmatpush1.xpose.msra.mxu0 0.0
    %2735 = vmatprep.subr.mxu0 0.0
    %2736 = vmatpush1.xpose.msra.mxu0 0.0
    %2737 = vmatprep.subr.mxu0 0.0
    %2738 = vmatpush1.xpose.msra.mxu0 0.0
    %2739 = vmatprep.subr.mxu0 0.0
    %2740 = vmatpush1.xpose.msra.mxu0 0.0
    %2741 = vmatprep.subr.mxu0 0.0
    %2742 = vmatpush1.xpose.msra.mxu0 0.0
    %2743 = vmatprep.subr.mxu0 0.0
    %2744 = vmatpush1.xpose.msra.mxu0 0.0
    %2745 = vmatprep.subr.mxu0 0.0
    %2746 = vmatpush1.xpose.msra.mxu0 0.0
    %2747 = vmatprep.subr.mxu0 0.0
    %2748 = vmatpush1.xpose.msra.mxu0 0.0
    %2749 = vmatprep.subr.mxu0 0.0
    %2750 = vmatpush1.xpose.msra.mxu0 0.0
    %2751 = vmatprep.subr.mxu0 0.0
    %2752 = vmatpush1.xpose.msra.mxu0 %v2719
    %2753 = vmatprep.subr.mxu0 0.0
    %2754 = vmatpush2.xpose.msra.mxu0 0.0
    %2755 = vmatprep.subr.mxu0 0.0
    %2756 = vmatpush2.xpose.msra.mxu0 0.0
    %2757 = vmatprep.subr.mxu0 0.0
    %2758 = vmatpush2.xpose.msra.mxu0 0.0
    %2759 = vmatprep.subr.mxu0 0.0
    %2760 = vmatpush2.xpose.msra.mxu0 0.0
    %2761 = vmatprep.subr.mxu0 0.0
    %2762 = vmatpush2.xpose.msra.mxu0 0.0
    %2763 = vmatprep.subr.mxu0 0.0
    %2764 = vmatpush2.xpose.msra.mxu0 0.0
    %2765 = vmatprep.subr.mxu0 0.0
    %2766 = vmatpush2.xpose.msra.mxu0 0.0
    %2767 = vmatprep.subr.mxu0 0.0
    %2768 = vmatpush2.xpose.msra.mxu0 0.0
    %2769 = vmatprep.subr.mxu0 0.0
    %2770 = vmatpush2.xpose.msra.mxu0 0.0
    %2771 = vmatprep.subr.mxu0 0.0
    %2772 = vmatpush2.xpose.msra.mxu0 0.0
    %2773 = vmatprep.subr.mxu0 0.0
    %2774 = vmatpush2.xpose.msra.mxu0 0.0
    %2775 = vmatprep.subr.mxu0 0.0
    %2776 = vmatpush2.xpose.msra.mxu0 0.0
    %2777 = vmatprep.subr.mxu0 0.0
    %2778 = vmatpush2.xpose.msra.mxu0 0.0
    %2779 = vmatprep.subr.mxu0 0.0
    %2780 = vmatpush2.xpose.msra.mxu0 0.0
    %2781 = vmatprep.subr.mxu0 0.0
    %2782 = vmatpush2.xpose.msra.mxu0 0.0
    %2783 = vmatprep.subr.mxu0 0.0
    %2784 = vmatpush2.xpose.msra.mxu0 0.0
    %2785 = vmatprep.mubr.f32.mxu0 0.0
    %2786 = vmatmul.mubr.f32.gmra.mxu0 %v2717
    %v2787 = vpop.f32.mrf.mxu0
    %v2788 = vadd.f32 0.0, %v2787
    %v2789 = vpop.f32.mrf.mxu0
    %2790 = vdwg.mxu0
    %2791 = vrot.lane.b32.xlu0 %v2332, 96
    %v2792 = vpop.permute.xlu0 %2791
    %v2793 = vsel %vm306, %v2332, 0
    %v2795 = vsel %vm306, %v2792, 0
    %2797 = vmatprep.subr.mxu0 0.0
    %2798 = vmatpush1.xpose.msra.mxu0 0.0
    %2799 = vmatprep.subr.mxu0 0.0
    %2800 = vmatpush1.xpose.msra.mxu0 0.0
    %2801 = vmatprep.subr.mxu0 0.0
    %2802 = vmatpush1.xpose.msra.mxu0 0.0
    %2803 = vmatprep.subr.mxu0 0.0
    %2804 = vmatpush1.xpose.msra.mxu0 0.0
    %2805 = vmatprep.subr.mxu0 0.0
    %2806 = vmatpush1.xpose.msra.mxu0 0.0
    %2807 = vmatprep.subr.mxu0 0.0
    %2808 = vmatpush1.xpose.msra.mxu0 0.0
    %2809 = vmatprep.subr.mxu0 0.0
    %2810 = vmatpush1.xpose.msra.mxu0 0.0
    %2811 = vmatprep.subr.mxu0 0.0
    %2812 = vmatpush1.xpose.msra.mxu0 0.0
    %2813 = vmatprep.subr.mxu0 0.0
    %2814 = vmatpush1.xpose.msra.mxu0 0.0
    %2815 = vmatprep.subr.mxu0 0.0
    %2816 = vmatpush1.xpose.msra.mxu0 0.0
    %2817 = vmatprep.subr.mxu0 0.0
    %2818 = vmatpush1.xpose.msra.mxu0 0.0
    %2819 = vmatprep.subr.mxu0 0.0
    %2820 = vmatpush1.xpose.msra.mxu0 0.0
    %2821 = vmatprep.subr.mxu0 0.0
    %2822 = vmatpush1.xpose.msra.mxu0 0.0
    %2823 = vmatprep.subr.mxu0 0.0
    %2824 = vmatpush1.xpose.msra.mxu0 0.0
    %2825 = vmatprep.subr.mxu0 0.0
    %2826 = vmatpush1.xpose.msra.mxu0 0.0
    %2827 = vmatprep.subr.mxu0 0.0
    %2828 = vmatpush1.xpose.msra.mxu0 %v2795
    %2829 = vmatprep.subr.mxu0 0.0
    %2830 = vmatpush2.xpose.msra.mxu0 0.0
    %2831 = vmatprep.subr.mxu0 0.0
    %2832 = vmatpush2.xpose.msra.mxu0 0.0
    %2833 = vmatprep.subr.mxu0 0.0
    %2834 = vmatpush2.xpose.msra.mxu0 0.0
    %2835 = vmatprep.subr.mxu0 0.0
    %2836 = vmatpush2.xpose.msra.mxu0 0.0
    %2837 = vmatprep.subr.mxu0 0.0
    %2838 = vmatpush2.xpose.msra.mxu0 0.0
    %2839 = vmatprep.subr.mxu0 0.0
    %2840 = vmatpush2.xpose.msra.mxu0 0.0
    %2841 = vmatprep.subr.mxu0 0.0
    %2842 = vmatpush2.xpose.msra.mxu0 0.0
    %2843 = vmatprep.subr.mxu0 0.0
    %2844 = vmatpush2.xpose.msra.mxu0 0.0
    %2845 = vmatprep.subr.mxu0 0.0
    %2846 = vmatpush2.xpose.msra.mxu0 0.0
    %2847 = vmatprep.subr.mxu0 0.0
    %2848 = vmatpush2.xpose.msra.mxu0 0.0
    %2849 = vmatprep.subr.mxu0 0.0
    %2850 = vmatpush2.xpose.msra.mxu0 0.0
    %2851 = vmatprep.subr.mxu0 0.0
    %2852 = vmatpush2.xpose.msra.mxu0 0.0
    %2853 = vmatprep.subr.mxu0 0.0
    %2854 = vmatpush2.xpose.msra.mxu0 0.0
    %2855 = vmatprep.subr.mxu0 0.0
    %2856 = vmatpush2.xpose.msra.mxu0 0.0
    %2857 = vmatprep.subr.mxu0 0.0
    %2858 = vmatpush2.xpose.msra.mxu0 0.0
    %2859 = vmatprep.subr.mxu0 0.0
    %2860 = vmatpush2.xpose.msra.mxu0 0.0
    %2861 = vmatprep.mubr.f32.mxu0 0.0
    %2862 = vmatmul.mubr.f32.gmra.mxu0 %v2793
    %v2863 = vpop.f32.mrf.mxu0
    %v2864 = vadd.f32 0.0, %v2863
    %v2865 = vpop.f32.mrf.mxu0
    %2866 = vdwg.mxu0
    %2867 = vrot.lane.b32.xlu0 %v2334, 96
    %v2868 = vpop.permute.xlu0 %2867
    %v2869 = vsel %vm306, %v2334, 0
    %v2871 = vsel %vm306, %v2868, 0
    %2873 = vmatprep.subr.mxu0 0.0
    %2874 = vmatpush1.xpose.msra.mxu0 0.0
    %2875 = vmatprep.subr.mxu0 0.0
    %2876 = vmatpush1.xpose.msra.mxu0 0.0
    %2877 = vmatprep.subr.mxu0 0.0
    %2878 = vmatpush1.xpose.msra.mxu0 0.0
    %2879 = vmatprep.subr.mxu0 0.0
    %2880 = vmatpush1.xpose.msra.mxu0 0.0
    %2881 = vmatprep.subr.mxu0 0.0
    %2882 = vmatpush1.xpose.msra.mxu0 0.0
    %2883 = vmatprep.subr.mxu0 0.0
    %2884 = vmatpush1.xpose.msra.mxu0 0.0
    %2885 = vmatprep.subr.mxu0 0.0
    %2886 = vmatpush1.xpose.msra.mxu0 0.0
    %2887 = vmatprep.subr.mxu0 0.0
    %2888 = vmatpush1.xpose.msra.mxu0 0.0
    %2889 = vmatprep.subr.mxu0 0.0
    %2890 = vmatpush1.xpose.msra.mxu0 0.0
    %2891 = vmatprep.subr.mxu0 0.0
    %2892 = vmatpush1.xpose.msra.mxu0 0.0
    %2893 = vmatprep.subr.mxu0 0.0
    %2894 = vmatpush1.xpose.msra.mxu0 0.0
    %2895 = vmatprep.subr.mxu0 0.0
    %2896 = vmatpush1.xpose.msra.mxu0 0.0
    %2897 = vmatprep.subr.mxu0 0.0
    %2898 = vmatpush1.xpose.msra.mxu0 0.0
    %2899 = vmatprep.subr.mxu0 0.0
    %2900 = vmatpush1.xpose.msra.mxu0 0.0
    %2901 = vmatprep.subr.mxu0 0.0
    %2902 = vmatpush1.xpose.msra.mxu0 0.0
    %2903 = vmatprep.subr.mxu0 0.0
    %2904 = vmatpush1.xpose.msra.mxu0 %v2871
    %2905 = vmatprep.subr.mxu0 0.0
    %2906 = vmatpush2.xpose.msra.mxu0 0.0
    %2907 = vmatprep.subr.mxu0 0.0
    %2908 = vmatpush2.xpose.msra.mxu0 0.0
    %2909 = vmatprep.subr.mxu0 0.0
    %2910 = vmatpush2.xpose.msra.mxu0 0.0
    %2911 = vmatprep.subr.mxu0 0.0
    %2912 = vmatpush2.xpose.msra.mxu0 0.0
    %2913 = vmatprep.subr.mxu0 0.0
    %2914 = vmatpush2.xpose.msra.mxu0 0.0
    %2915 = vmatprep.subr.mxu0 0.0
    %2916 = vmatpush2.xpose.msra.mxu0 0.0
    %2917 = vmatprep.subr.mxu0 0.0
    %2918 = vmatpush2.xpose.msra.mxu0 0.0
    %2919 = vmatprep.subr.mxu0 0.0
    %2920 = vmatpush2.xpose.msra.mxu0 0.0
    %2921 = vmatprep.subr.mxu0 0.0
    %2922 = vmatpush2.xpose.msra.mxu0 0.0
    %2923 = vmatprep.subr.mxu0 0.0
    %2924 = vmatpush2.xpose.msra.mxu0 0.0
    %2925 = vmatprep.subr.mxu0 0.0
    %2926 = vmatpush2.xpose.msra.mxu0 0.0
    %2927 = vmatprep.subr.mxu0 0.0
    %2928 = vmatpush2.xpose.msra.mxu0 0.0
    %2929 = vmatprep.subr.mxu0 0.0
    %2930 = vmatpush2.xpose.msra.mxu0 0.0
    %2931 = vmatprep.subr.mxu0 0.0
    %2932 = vmatpush2.xpose.msra.mxu0 0.0
    %2933 = vmatprep.subr.mxu0 0.0
    %2934 = vmatpush2.xpose.msra.mxu0 0.0
    %2935 = vmatprep.subr.mxu0 0.0
    %2936 = vmatpush2.xpose.msra.mxu0 0.0
    %2937 = vmatprep.mubr.f32.mxu0 0.0
    %2938 = vmatmul.mubr.f32.gmra.mxu0 %v2869
    %v2939 = vpop.f32.mrf.mxu0
    %v2940 = vadd.f32 0.0, %v2939
    %v2941 = vpop.f32.mrf.mxu0
    %2942 = vdwg.mxu0
    %v2943 = vsel %vm306, %v2408, -inf
    %2944 = vmax.xlane.f32.xlu0 %v2943
    %v2945 = vpop.xlane.xlu0 %2944
    %v2946 = vsel %vm306, %v2484, -inf
    %2947 = vmax.xlane.f32.xlu0 %v2946
    %v2948 = vpop.xlane.xlu0 %2947
    %v2949 = vsel %vm306, %v2560, -inf
    %2950 = vmax.xlane.f32.xlu0 %v2949
    %v2951 = vpop.xlane.xlu0 %2950
    %v2952 = vsel %vm306, %v2636, -inf
    %2953 = vmax.xlane.f32.xlu0 %v2952
    %v2954 = vpop.xlane.xlu0 %2953
    %v2955 = vsel %vm306, %v2712, -inf
    %2956 = vmax.xlane.f32.xlu0 %v2955
    %v2957 = vpop.xlane.xlu0 %2956
    %v2958 = vsel %vm306, %v2788, -inf
    %2959 = vmax.xlane.f32.xlu0 %v2958
    %v2960 = vpop.xlane.xlu0 %2959
    %v2961 = vsel %vm306, %v2864, -inf
    %2962 = vmax.xlane.f32.xlu0 %v2961
    %v2963 = vpop.xlane.xlu0 %2962
    %v2964 = vsel %vm306, %v2940, -inf
    %2965 = vmax.xlane.f32.xlu0 %v2964
    %v2966 = vpop.xlane.xlu0 %2965
    %v2967 = vsub.f32 %v2408, %v2945
    %v2968 = vsub.f32 %v2484, %v2948
    %v2969 = vsub.f32 %v2560, %v2951
    %v2970 = vsub.f32 %v2636, %v2954
    %v2971 = vsub.f32 %v2712, %v2957
    %v2972 = vsub.f32 %v2788, %v2960
    %v2973 = vsub.f32 %v2864, %v2963
    %v2974 = vsub.f32 %v2940, %v2966
    %v2975 = vmul.f32 %v2967, 1.442695
    %v2976 = vpow.pop %v2975
    %v2977 = vmul.f32 %v2968, 1.442695
    %v2978 = vpow.pop %v2977
    %v2979 = vmul.f32 %v2969, 1.442695
    %v2980 = vpow.pop %v2979
    %v2981 = vmul.f32 %v2970, 1.442695
    %v2982 = vpow.pop %v2981
    %v2983 = vmul.f32 %v2971, 1.442695
    %v2984 = vpow.pop %v2983
    %v2985 = vmul.f32 %v2972, 1.442695
    %v2986 = vpow.pop %v2985
    %v2987 = vmul.f32 %v2973, 1.442695
    %v2988 = vpow.pop %v2987
    %v2989 = vmul.f32 %v2974, 1.442695
    %v2990 = vpow.pop %v2989
    %v2991 = vsel %vm306, %v2976, 0.0
    %2992 = vadd.xlane.f32.xlu0 %v2991
    %v2993 = vpop.xlane.xlu0 %2992
    %v2994 = vsel %vm306, %v2978, 0.0
    %2995 = vadd.xlane.f32.xlu0 %v2994
    %v2996 = vpop.xlane.xlu0 %2995
    %v2997 = vsel %vm306, %v2980, 0.0
    %2998 = vadd.xlane.f32.xlu0 %v2997
    %v2999 = vpop.xlane.xlu0 %2998
    %v3000 = vsel %vm306, %v2982, 0.0
    %3001 = vadd.xlane.f32.xlu0 %v3000
    %v3002 = vpop.xlane.xlu0 %3001
    %v3003 = vsel %vm306, %v2984, 0.0
    %3004 = vadd.xlane.f32.xlu0 %v3003
    %v3005 = vpop.xlane.xlu0 %3004
    %v3006 = vsel %vm306, %v2986, 0.0
    %3007 = vadd.xlane.f32.xlu0 %v3006
    %v3008 = vpop.xlane.xlu0 %3007
    %v3009 = vsel %vm306, %v2988, 0.0
    %3010 = vadd.xlane.f32.xlu0 %v3009
    %v3011 = vpop.xlane.xlu0 %3010
    %v3012 = vsel %vm306, %v2990, 0.0
    %3013 = vadd.xlane.f32.xlu0 %v3012
    %v3014 = vpop.xlane.xlu0 %3013
    %v3015 = vrcp.pop %v2993
    %v3016 = vmul.f32 %v2976, %v3015
    %v3017 = vrcp.pop %v2996
    %v3018 = vmul.f32 %v2978, %v3017
    %v3019 = vrcp.pop %v2999
    %v3020 = vmul.f32 %v2980, %v3019
    %v3021 = vrcp.pop %v3002
    %v3022 = vmul.f32 %v2982, %v3021
    %v3023 = vrcp.pop %v3005
    %v3024 = vmul.f32 %v2984, %v3023
    %v3025 = vrcp.pop %v3008
    %v3026 = vmul.f32 %v2986, %v3025
    %v3027 = vrcp.pop %v3011
    %v3028 = vmul.f32 %v2988, %v3027
    %v3029 = vrcp.pop %v3014
    %v3030 = vmul.f32 %v2990, %v3029
    %3031 = vrot.lane.b32.xlu0 %v2313, 64
    %v3032 = vpop.permute.xlu0 %3031
    %v3035 = vsel %vm306, %v3016, 0
    %3037 = vmatprep.subr.mxu0 0.0
    %3038 = vmatpush1.msra.mxu0 0.0
    %3039 = vmatprep.subr.mxu0 0.0
    %3040 = vmatpush1.msra.mxu0 0.0
    %3041 = vmatprep.subr.mxu0 0.0
    %3042 = vmatpush1.msra.mxu0 0.0
    %3043 = vmatprep.subr.mxu0 0.0
    %3044 = vmatpush1.msra.mxu0 0.0
    %3045 = vmatprep.subr.mxu0 0.0
    %3046 = vmatpush1.msra.mxu0 0.0
    %3047 = vmatprep.subr.mxu0 0.0
    %3048 = vmatpush1.msra.mxu0 0.0
    %3049 = vmatprep.subr.mxu0 0.0
    %3050 = vmatpush1.msra.mxu0 0.0
    %3051 = vmatprep.subr.mxu0 0.0
    %3052 = vmatpush1.msra.mxu0 0.0
    %3053 = vmatprep.subr.mxu0 0.0
    %3054 = vmatpush1.msra.mxu0 0.0
    %3055 = vmatprep.subr.mxu0 0.0
    %3056 = vmatpush1.msra.mxu0 0.0
    %3057 = vmatprep.subr.mxu0 0.0
    %3058 = vmatpush1.msra.mxu0 0.0
    %3059 = vmatprep.subr.mxu0 0.0
    %3060 = vmatpush1.msra.mxu0 0.0
    %3061 = vmatprep.subr.mxu0 0.0
    %3062 = vmatpush1.msra.mxu0 0.0
    %3063 = vmatprep.subr.mxu0 0.0
    %3064 = vmatpush1.msra.mxu0 0.0
    %3065 = vmatprep.subr.mxu0 0.0
    %3066 = vmatpush1.msra.mxu0 0.0
    %3067 = vmatprep.subr.mxu0 0.0
    %3068 = vmatpush1.msra.mxu0 %v3032
    %3069 = vmatprep.subr.mxu0 0.0
    %3070 = vmatpush2.msra.mxu0 0.0
    %3071 = vmatprep.subr.mxu0 0.0
    %3072 = vmatpush2.msra.mxu0 0.0
    %3073 = vmatprep.subr.mxu0 0.0
    %3074 = vmatpush2.msra.mxu0 0.0
    %3075 = vmatprep.subr.mxu0 0.0
    %3076 = vmatpush2.msra.mxu0 0.0
    %3077 = vmatprep.subr.mxu0 0.0
    %3078 = vmatpush2.msra.mxu0 0.0
    %3079 = vmatprep.subr.mxu0 0.0
    %3080 = vmatpush2.msra.mxu0 0.0
    %3081 = vmatprep.subr.mxu0 0.0
    %3082 = vmatpush2.msra.mxu0 0.0
    %3083 = vmatprep.subr.mxu0 0.0
    %3084 = vmatpush2.msra.mxu0 0.0
    %3085 = vmatprep.subr.mxu0 0.0
    %3086 = vmatpush2.msra.mxu0 0.0
    %3087 = vmatprep.subr.mxu0 0.0
    %3088 = vmatpush2.msra.mxu0 0.0
    %3089 = vmatprep.subr.mxu0 0.0
    %3090 = vmatpush2.msra.mxu0 0.0
    %3091 = vmatprep.subr.mxu0 0.0
    %3092 = vmatpush2.msra.mxu0 0.0
    %3093 = vmatprep.subr.mxu0 0.0
    %3094 = vmatpush2.msra.mxu0 0.0
    %3095 = vmatprep.subr.mxu0 0.0
    %3096 = vmatpush2.msra.mxu0 0.0
    %3097 = vmatprep.subr.mxu0 0.0
    %3098 = vmatpush2.msra.mxu0 0.0
    %3099 = vmatprep.subr.mxu0 0.0
    %3100 = vmatpush2.msra.mxu0 0.0
    %3101 = vmatprep.mubr.f32.mxu0 0.0
    %3102 = vmatmul.mubr.f32.gmra.mxu0 %v3035
    %v3103 = vpop.f32.mrf.mxu0
    %v3104 = vadd.f32 0.0, %v3103
    %v3105 = vpop.f32.mrf.mxu0
    %3106 = vdwg.mxu0
    %3107 = vrot.lane.b32.xlu0 %v2318, 64
    %v3108 = vpop.permute.xlu0 %3107
    %v3111 = vsel %vm306, %v3018, 0
    %3113 = vmatprep.subr.mxu0 0.0
    %3114 = vmatpush1.msra.mxu0 0.0
    %3115 = vmatprep.subr.mxu0 0.0
    %3116 = vmatpush1.msra.mxu0 0.0
    %3117 = vmatprep.subr.mxu0 0.0
    %3118 = vmatpush1.msra.mxu0 0.0
    %3119 = vmatprep.subr.mxu0 0.0
    %3120 = vmatpush1.msra.mxu0 0.0
    %3121 = vmatprep.subr.mxu0 0.0
    %3122 = vmatpush1.msra.mxu0 0.0
    %3123 = vmatprep.subr.mxu0 0.0
    %3124 = vmatpush1.msra.mxu0 0.0
    %3125 = vmatprep.subr.mxu0 0.0
    %3126 = vmatpush1.msra.mxu0 0.0
    %3127 = vmatprep.subr.mxu0 0.0
    %3128 = vmatpush1.msra.mxu0 0.0
    %3129 = vmatprep.subr.mxu0 0.0
    %3130 = vmatpush1.msra.mxu0 0.0
    %3131 = vmatprep.subr.mxu0 0.0
    %3132 = vmatpush1.msra.mxu0 0.0
    %3133 = vmatprep.subr.mxu0 0.0
    %3134 = vmatpush1.msra.mxu0 0.0
    %3135 = vmatprep.subr.mxu0 0.0
    %3136 = vmatpush1.msra.mxu0 0.0
    %3137 = vmatprep.subr.mxu0 0.0
    %3138 = vmatpush1.msra.mxu0 0.0
    %3139 = vmatprep.subr.mxu0 0.0
    %3140 = vmatpush1.msra.mxu0 0.0
    %3141 = vmatprep.subr.mxu0 0.0
    %3142 = vmatpush1.msra.mxu0 0.0
    %3143 = vmatprep.subr.mxu0 0.0
    %3144 = vmatpush1.msra.mxu0 %v3108
    %3145 = vmatprep.subr.mxu0 0.0
    %3146 = vmatpush2.msra.mxu0 0.0
    %3147 = vmatprep.subr.mxu0 0.0
    %3148 = vmatpush2.msra.mxu0 0.0
    %3149 = vmatprep.subr.mxu0 0.0
    %3150 = vmatpush2.msra.mxu0 0.0
    %3151 = vmatprep.subr.mxu0 0.0
    %3152 = vmatpush2.msra.mxu0 0.0
    %3153 = vmatprep.subr.mxu0 0.0
    %3154 = vmatpush2.msra.mxu0 0.0
    %3155 = vmatprep.subr.mxu0 0.0
    %3156 = vmatpush2.msra.mxu0 0.0
    %3157 = vmatprep.subr.mxu0 0.0
    %3158 = vmatpush2.msra.mxu0 0.0
    %3159 = vmatprep.subr.mxu0 0.0
    %3160 = vmatpush2.msra.mxu0 0.0
    %3161 = vmatprep.subr.mxu0 0.0
    %3162 = vmatpush2.msra.mxu0 0.0
    %3163 = vmatprep.subr.mxu0 0.0
    %3164 = vmatpush2.msra.mxu0 0.0
    %3165 = vmatprep.subr.mxu0 0.0
    %3166 = vmatpush2.msra.mxu0 0.0
    %3167 = vmatprep.subr.mxu0 0.0
    %3168 = vmatpush2.msra.mxu0 0.0
    %3169 = vmatprep.subr.mxu0 0.0
    %3170 = vmatpush2.msra.mxu0 0.0
    %3171 = vmatprep.subr.mxu0 0.0
    %3172 = vmatpush2.msra.mxu0 0.0
    %3173 = vmatprep.subr.mxu0 0.0
    %3174 = vmatpush2.msra.mxu0 0.0
    %3175 = vmatprep.subr.mxu0 0.0
    %3176 = vmatpush2.msra.mxu0 0.0
    %3177 = vmatprep.mubr.f32.mxu0 0.0
    %3178 = vmatmul.mubr.f32.gmra.mxu0 %v3111
    %v3179 = vpop.f32.mrf.mxu0
    %v3180 = vadd.f32 0.0, %v3179
    %v3181 = vpop.f32.mrf.mxu0
    %3182 = vdwg.mxu0
    %3183 = vrot.lane.b32.xlu0 %v2324, 64
    %v3184 = vpop.permute.xlu0 %3183
    %v3187 = vsel %vm306, %v3020, 0
    %3189 = vmatprep.subr.mxu0 0.0
    %3190 = vmatpush1.msra.mxu0 0.0
    %3191 = vmatprep.subr.mxu0 0.0
    %3192 = vmatpush1.msra.mxu0 0.0
    %3193 = vmatprep.subr.mxu0 0.0
    %3194 = vmatpush1.msra.mxu0 0.0
    %3195 = vmatprep.subr.mxu0 0.0
    %3196 = vmatpush1.msra.mxu0 0.0
    %3197 = vmatprep.subr.mxu0 0.0
    %3198 = vmatpush1.msra.mxu0 0.0
    %3199 = vmatprep.subr.mxu0 0.0
    %3200 = vmatpush1.msra.mxu0 0.0
    %3201 = vmatprep.subr.mxu0 0.0
    %3202 = vmatpush1.msra.mxu0 0.0
    %3203 = vmatprep.subr.mxu0 0.0
    %3204 = vmatpush1.msra.mxu0 0.0
    %3205 = vmatprep.subr.mxu0 0.0
    %3206 = vmatpush1.msra.mxu0 0.0
    %3207 = vmatprep.subr.mxu0 0.0
    %3208 = vmatpush1.msra.mxu0 0.0
    %3209 = vmatprep.subr.mxu0 0.0
    %3210 = vmatpush1.msra.mxu0 0.0
    %3211 = vmatprep.subr.mxu0 0.0
    %3212 = vmatpush1.msra.mxu0 0.0
    %3213 = vmatprep.subr.mxu0 0.0
    %3214 = vmatpush1.msra.mxu0 0.0
    %3215 = vmatprep.subr.mxu0 0.0
    %3216 = vmatpush1.msra.mxu0 0.0
    %3217 = vmatprep.subr.mxu0 0.0
    %3218 = vmatpush1.msra.mxu0 0.0
    %3219 = vmatprep.subr.mxu0 0.0
    %3220 = vmatpush1.msra.mxu0 %v3184
    %3221 = vmatprep.subr.mxu0 0.0
    %3222 = vmatpush2.msra.mxu0 0.0
    %3223 = vmatprep.subr.mxu0 0.0
    %3224 = vmatpush2.msra.mxu0 0.0
    %3225 = vmatprep.subr.mxu0 0.0
    %3226 = vmatpush2.msra.mxu0 0.0
    %3227 = vmatprep.subr.mxu0 0.0
    %3228 = vmatpush2.msra.mxu0 0.0
    %3229 = vmatprep.subr.mxu0 0.0
    %3230 = vmatpush2.msra.mxu0 0.0
    %3231 = vmatprep.subr.mxu0 0.0
    %3232 = vmatpush2.msra.mxu0 0.0
    %3233 = vmatprep.subr.mxu0 0.0
    %3234 = vmatpush2.msra.mxu0 0.0
    %3235 = vmatprep.subr.mxu0 0.0
    %3236 = vmatpush2.msra.mxu0 0.0
    %3237 = vmatprep.subr.mxu0 0.0
    %3238 = vmatpush2.msra.mxu0 0.0
    %3239 = vmatprep.subr.mxu0 0.0
    %3240 = vmatpush2.msra.mxu0 0.0
    %3241 = vmatprep.subr.mxu0 0.0
    %3242 = vmatpush2.msra.mxu0 0.0
    %3243 = vmatprep.subr.mxu0 0.0
    %3244 = vmatpush2.msra.mxu0 0.0
    %3245 = vmatprep.subr.mxu0 0.0
    %3246 = vmatpush2.msra.mxu0 0.0
    %3247 = vmatprep.subr.mxu0 0.0
    %3248 = vmatpush2.msra.mxu0 0.0
    %3249 = vmatprep.subr.mxu0 0.0
    %3250 = vmatpush2.msra.mxu0 0.0
    %3251 = vmatprep.subr.mxu0 0.0
    %3252 = vmatpush2.msra.mxu0 0.0
    %3253 = vmatprep.mubr.f32.mxu0 0.0
    %3254 = vmatmul.mubr.f32.gmra.mxu0 %v3187
    %v3255 = vpop.f32.mrf.mxu0
    %v3256 = vadd.f32 0.0, %v3255
    %v3257 = vpop.f32.mrf.mxu0
    %3258 = vdwg.mxu0
    %3259 = vrot.lane.b32.xlu0 %v2326, 64
    %v3260 = vpop.permute.xlu0 %3259
    %v3263 = vsel %vm306, %v3022, 0
    %3265 = vmatprep.subr.mxu0 0.0
    %3266 = vmatpush1.msra.mxu0 0.0
    %3267 = vmatprep.subr.mxu0 0.0
    %3268 = vmatpush1.msra.mxu0 0.0
    %3269 = vmatprep.subr.mxu0 0.0
    %3270 = vmatpush1.msra.mxu0 0.0
    %3271 = vmatprep.subr.mxu0 0.0
    %3272 = vmatpush1.msra.mxu0 0.0
    %3273 = vmatprep.subr.mxu0 0.0
    %3274 = vmatpush1.msra.mxu0 0.0
    %3275 = vmatprep.subr.mxu0 0.0
    %3276 = vmatpush1.msra.mxu0 0.0
    %3277 = vmatprep.subr.mxu0 0.0
    %3278 = vmatpush1.msra.mxu0 0.0
    %3279 = vmatprep.subr.mxu0 0.0
    %3280 = vmatpush1.msra.mxu0 0.0
    %3281 = vmatprep.subr.mxu0 0.0
    %3282 = vmatpush1.msra.mxu0 0.0
    %3283 = vmatprep.subr.mxu0 0.0
    %3284 = vmatpush1.msra.mxu0 0.0
    %3285 = vmatprep.subr.mxu0 0.0
    %3286 = vmatpush1.msra.mxu0 0.0
    %3287 = vmatprep.subr.mxu0 0.0
    %3288 = vmatpush1.msra.mxu0 0.0
    %3289 = vmatprep.subr.mxu0 0.0
    %3290 = vmatpush1.msra.mxu0 0.0
    %3291 = vmatprep.subr.mxu0 0.0
    %3292 = vmatpush1.msra.mxu0 0.0
    %3293 = vmatprep.subr.mxu0 0.0
    %3294 = vmatpush1.msra.mxu0 0.0
    %3295 = vmatprep.subr.mxu0 0.0
    %3296 = vmatpush1.msra.mxu0 %v3260
    %3297 = vmatprep.subr.mxu0 0.0
    %3298 = vmatpush2.msra.mxu0 0.0
    %3299 = vmatprep.subr.mxu0 0.0
    %3300 = vmatpush2.msra.mxu0 0.0
    %3301 = vmatprep.subr.mxu0 0.0
    %3302 = vmatpush2.msra.mxu0 0.0
    %3303 = vmatprep.subr.mxu0 0.0
    %3304 = vmatpush2.msra.mxu0 0.0
    %3305 = vmatprep.subr.mxu0 0.0
    %3306 = vmatpush2.msra.mxu0 0.0
    %3307 = vmatprep.subr.mxu0 0.0
    %3308 = vmatpush2.msra.mxu0 0.0
    %3309 = vmatprep.subr.mxu0 0.0
    %3310 = vmatpush2.msra.mxu0 0.0
    %3311 = vmatprep.subr.mxu0 0.0
    %3312 = vmatpush2.msra.mxu0 0.0
    %3313 = vmatprep.subr.mxu0 0.0
    %3314 = vmatpush2.msra.mxu0 0.0
    %3315 = vmatprep.subr.mxu0 0.0
    %3316 = vmatpush2.msra.mxu0 0.0
    %3317 = vmatprep.subr.mxu0 0.0
    %3318 = vmatpush2.msra.mxu0 0.0
    %3319 = vmatprep.subr.mxu0 0.0
    %3320 = vmatpush2.msra.mxu0 0.0
    %3321 = vmatprep.subr.mxu0 0.0
    %3322 = vmatpush2.msra.mxu0 0.0
    %3323 = vmatprep.subr.mxu0 0.0
    %3324 = vmatpush2.msra.mxu0 0.0
    %3325 = vmatprep.subr.mxu0 0.0
    %3326 = vmatpush2.msra.mxu0 0.0
    %3327 = vmatprep.subr.mxu0 0.0
    %3328 = vmatpush2.msra.mxu0 0.0
    %3329 = vmatprep.mubr.f32.mxu0 0.0
    %3330 = vmatmul.mubr.f32.gmra.mxu0 %v3263
    %v3331 = vpop.f32.mrf.mxu0
    %v3332 = vadd.f32 0.0, %v3331
    %v3333 = vpop.f32.mrf.mxu0
    %3334 = vdwg.mxu0
    %3335 = vrot.lane.b32.xlu0 %v2328, 64
    %v3336 = vpop.permute.xlu0 %3335
    %v3339 = vsel %vm306, %v3024, 0
    %3341 = vmatprep.subr.mxu0 0.0
    %3342 = vmatpush1.msra.mxu0 0.0
    %3343 = vmatprep.subr.mxu0 0.0
    %3344 = vmatpush1.msra.mxu0 0.0
    %3345 = vmatprep.subr.mxu0 0.0
    %3346 = vmatpush1.msra.mxu0 0.0
    %3347 = vmatprep.subr.mxu0 0.0
    %3348 = vmatpush1.msra.mxu0 0.0
    %3349 = vmatprep.subr.mxu0 0.0
    %3350 = vmatpush1.msra.mxu0 0.0
    %3351 = vmatprep.subr.mxu0 0.0
    %3352 = vmatpush1.msra.mxu0 0.0
    %3353 = vmatprep.subr.mxu0 0.0
    %3354 = vmatpush1.msra.mxu0 0.0
    %3355 = vmatprep.subr.mxu0 0.0
    %3356 = vmatpush1.msra.mxu0 0.0
    %3357 = vmatprep.subr.mxu0 0.0
    %3358 = vmatpush1.msra.mxu0 0.0
    %3359 = vmatprep.subr.mxu0 0.0
    %3360 = vmatpush1.msra.mxu0 0.0
    %3361 = vmatprep.subr.mxu0 0.0
    %3362 = vmatpush1.msra.mxu0 0.0
    %3363 = vmatprep.subr.mxu0 0.0
    %3364 = vmatpush1.msra.mxu0 0.0
    %3365 = vmatprep.subr.mxu0 0.0
    %3366 = vmatpush1.msra.mxu0 0.0
    %3367 = vmatprep.subr.mxu0 0.0
    %3368 = vmatpush1.msra.mxu0 0.0
    %3369 = vmatprep.subr.mxu0 0.0
    %3370 = vmatpush1.msra.mxu0 0.0
    %3371 = vmatprep.subr.mxu0 0.0
    %3372 = vmatpush1.msra.mxu0 %v3336
    %3373 = vmatprep.subr.mxu0 0.0
    %3374 = vmatpush2.msra.mxu0 0.0
    %3375 = vmatprep.subr.mxu0 0.0
    %3376 = vmatpush2.msra.mxu0 0.0
    %3377 = vmatprep.subr.mxu0 0.0
    %3378 = vmatpush2.msra.mxu0 0.0
    %3379 = vmatprep.subr.mxu0 0.0
    %3380 = vmatpush2.msra.mxu0 0.0
    %3381 = vmatprep.subr.mxu0 0.0
    %3382 = vmatpush2.msra.mxu0 0.0
    %3383 = vmatprep.subr.mxu0 0.0
    %3384 = vmatpush2.msra.mxu0 0.0
    %3385 = vmatprep.subr.mxu0 0.0
    %3386 = vmatpush2.msra.mxu0 0.0
    %3387 = vmatprep.subr.mxu0 0.0
    %3388 = vmatpush2.msra.mxu0 0.0
    %3389 = vmatprep.subr.mxu0 0.0
    %3390 = vmatpush2.msra.mxu0 0.0
    %3391 = vmatprep.subr.mxu0 0.0
    %3392 = vmatpush2.msra.mxu0 0.0
    %3393 = vmatprep.subr.mxu0 0.0
    %3394 = vmatpush2.msra.mxu0 0.0
    %3395 = vmatprep.subr.mxu0 0.0
    %3396 = vmatpush2.msra.mxu0 0.0
    %3397 = vmatprep.subr.mxu0 0.0
    %3398 = vmatpush2.msra.mxu0 0.0
    %3399 = vmatprep.subr.mxu0 0.0
    %3400 = vmatpush2.msra.mxu0 0.0
    %3401 = vmatprep.subr.mxu0 0.0
    %3402 = vmatpush2.msra.mxu0 0.0
    %3403 = vmatprep.subr.mxu0 0.0
    %3404 = vmatpush2.msra.mxu0 0.0
    %3405 = vmatprep.mubr.f32.mxu0 0.0
    %3406 = vmatmul.mubr.f32.gmra.mxu0 %v3339
    %v3407 = vpop.f32.mrf.mxu0
    %v3408 = vadd.f32 0.0, %v3407
    %v3409 = vpop.f32.mrf.mxu0
    %3410 = vdwg.mxu0
    %3411 = vrot.lane.b32.xlu0 %v2330, 64
    %v3412 = vpop.permute.xlu0 %3411
    %v3415 = vsel %vm306, %v3026, 0
    %3417 = vmatprep.subr.mxu0 0.0
    %3418 = vmatpush1.msra.mxu0 0.0
    %3419 = vmatprep.subr.mxu0 0.0
    %3420 = vmatpush1.msra.mxu0 0.0
    %3421 = vmatprep.subr.mxu0 0.0
    %3422 = vmatpush1.msra.mxu0 0.0
    %3423 = vmatprep.subr.mxu0 0.0
    %3424 = vmatpush1.msra.mxu0 0.0
    %3425 = vmatprep.subr.mxu0 0.0
    %3426 = vmatpush1.msra.mxu0 0.0
    %3427 = vmatprep.subr.mxu0 0.0
    %3428 = vmatpush1.msra.mxu0 0.0
    %3429 = vmatprep.subr.mxu0 0.0
    %3430 = vmatpush1.msra.mxu0 0.0
    %3431 = vmatprep.subr.mxu0 0.0
    %3432 = vmatpush1.msra.mxu0 0.0
    %3433 = vmatprep.subr.mxu0 0.0
    %3434 = vmatpush1.msra.mxu0 0.0
    %3435 = vmatprep.subr.mxu0 0.0
    %3436 = vmatpush1.msra.mxu0 0.0
    %3437 = vmatprep.subr.mxu0 0.0
    %3438 = vmatpush1.msra.mxu0 0.0
    %3439 = vmatprep.subr.mxu0 0.0
    %3440 = vmatpush1.msra.mxu0 0.0
    %3441 = vmatprep.subr.mxu0 0.0
    %3442 = vmatpush1.msra.mxu0 0.0
    %3443 = vmatprep.subr.mxu0 0.0
    %3444 = vmatpush1.msra.mxu0 0.0
    %3445 = vmatprep.subr.mxu0 0.0
    %3446 = vmatpush1.msra.mxu0 0.0
    %3447 = vmatprep.subr.mxu0 0.0
    %3448 = vmatpush1.msra.mxu0 %v3412
    %3449 = vmatprep.subr.mxu0 0.0
    %3450 = vmatpush2.msra.mxu0 0.0
    %3451 = vmatprep.subr.mxu0 0.0
    %3452 = vmatpush2.msra.mxu0 0.0
    %3453 = vmatprep.subr.mxu0 0.0
    %3454 = vmatpush2.msra.mxu0 0.0
    %3455 = vmatprep.subr.mxu0 0.0
    %3456 = vmatpush2.msra.mxu0 0.0
    %3457 = vmatprep.subr.mxu0 0.0
    %3458 = vmatpush2.msra.mxu0 0.0
    %3459 = vmatprep.subr.mxu0 0.0
    %3460 = vmatpush2.msra.mxu0 0.0
    %3461 = vmatprep.subr.mxu0 0.0
    %3462 = vmatpush2.msra.mxu0 0.0
    %3463 = vmatprep.subr.mxu0 0.0
    %3464 = vmatpush2.msra.mxu0 0.0
    %3465 = vmatprep.subr.mxu0 0.0
    %3466 = vmatpush2.msra.mxu0 0.0
    %3467 = vmatprep.subr.mxu0 0.0
    %3468 = vmatpush2.msra.mxu0 0.0
    %3469 = vmatprep.subr.mxu0 0.0
    %3470 = vmatpush2.msra.mxu0 0.0
    %3471 = vmatprep.subr.mxu0 0.0
    %3472 = vmatpush2.msra.mxu0 0.0
    %3473 = vmatprep.subr.mxu0 0.0
    %3474 = vmatpush2.msra.mxu0 0.0
    %3475 = vmatprep.subr.mxu0 0.0
    %3476 = vmatpush2.msra.mxu0 0.0
    %3477 = vmatprep.subr.mxu0 0.0
    %3478 = vmatpush2.msra.mxu0 0.0
    %3479 = vmatprep.subr.mxu0 0.0
    %3480 = vmatpush2.msra.mxu0 0.0
    %3481 = vmatprep.mubr.f32.mxu0 0.0
    %3482 = vmatmul.mubr.f32.gmra.mxu0 %v3415
    %v3483 = vpop.f32.mrf.mxu0
    %v3484 = vadd.f32 0.0, %v3483
    %v3485 = vpop.f32.mrf.mxu0
    %3486 = vdwg.mxu0
    %3487 = vrot.lane.b32.xlu0 %v2332, 64
    %v3488 = vpop.permute.xlu0 %3487
    %v3491 = vsel %vm306, %v3028, 0
    %3493 = vmatprep.subr.mxu0 0.0
    %3494 = vmatpush1.msra.mxu0 0.0
    %3495 = vmatprep.subr.mxu0 0.0
    %3496 = vmatpush1.msra.mxu0 0.0
    %3497 = vmatprep.subr.mxu0 0.0
    %3498 = vmatpush1.msra.mxu0 0.0
    %3499 = vmatprep.subr.mxu0 0.0
    %3500 = vmatpush1.msra.mxu0 0.0
    %3501 = vmatprep.subr.mxu0 0.0
    %3502 = vmatpush1.msra.mxu0 0.0
    %3503 = vmatprep.subr.mxu0 0.0
    %3504 = vmatpush1.msra.mxu0 0.0
    %3505 = vmatprep.subr.mxu0 0.0
    %3506 = vmatpush1.msra.mxu0 0.0
    %3507 = vmatprep.subr.mxu0 0.0
    %3508 = vmatpush1.msra.mxu0 0.0
    %3509 = vmatprep.subr.mxu0 0.0
    %3510 = vmatpush1.msra.mxu0 0.0
    %3511 = vmatprep.subr.mxu0 0.0
    %3512 = vmatpush1.msra.mxu0 0.0
    %3513 = vmatprep.subr.mxu0 0.0
    %3514 = vmatpush1.msra.mxu0 0.0
    %3515 = vmatprep.subr.mxu0 0.0
    %3516 = vmatpush1.msra.mxu0 0.0
    %3517 = vmatprep.subr.mxu0 0.0
    %3518 = vmatpush1.msra.mxu0 0.0
    %3519 = vmatprep.subr.mxu0 0.0
    %3520 = vmatpush1.msra.mxu0 0.0
    %3521 = vmatprep.subr.mxu0 0.0
    %3522 = vmatpush1.msra.mxu0 0.0
    %3523 = vmatprep.subr.mxu0 0.0
    %3524 = vmatpush1.msra.mxu0 %v3488
    %3525 = vmatprep.subr.mxu0 0.0
    %3526 = vmatpush2.msra.mxu0 0.0
    %3527 = vmatprep.subr.mxu0 0.0
    %3528 = vmatpush2.msra.mxu0 0.0
    %3529 = vmatprep.subr.mxu0 0.0
    %3530 = vmatpush2.msra.mxu0 0.0
    %3531 = vmatprep.subr.mxu0 0.0
    %3532 = vmatpush2.msra.mxu0 0.0
    %3533 = vmatprep.subr.mxu0 0.0
    %3534 = vmatpush2.msra.mxu0 0.0
    %3535 = vmatprep.subr.mxu0 0.0
    %3536 = vmatpush2.msra.mxu0 0.0
    %3537 = vmatprep.subr.mxu0 0.0
    %3538 = vmatpush2.msra.mxu0 0.0
    %3539 = vmatprep.subr.mxu0 0.0
    %3540 = vmatpush2.msra.mxu0 0.0
    %3541 = vmatprep.subr.mxu0 0.0
    %3542 = vmatpush2.msra.mxu0 0.0
    %3543 = vmatprep.subr.mxu0 0.0
    %3544 = vmatpush2.msra.mxu0 0.0
    %3545 = vmatprep.subr.mxu0 0.0
    %3546 = vmatpush2.msra.mxu0 0.0
    %3547 = vmatprep.subr.mxu0 0.0
    %3548 = vmatpush2.msra.mxu0 0.0
    %3549 = vmatprep.subr.mxu0 0.0
    %3550 = vmatpush2.msra.mxu0 0.0
    %3551 = vmatprep.subr.mxu0 0.0
    %3552 = vmatpush2.msra.mxu0 0.0
    %3553 = vmatprep.subr.mxu0 0.0
    %3554 = vmatpush2.msra.mxu0 0.0
    %3555 = vmatprep.subr.mxu0 0.0
    %3556 = vmatpush2.msra.mxu0 0.0
    %3557 = vmatprep.mubr.f32.mxu0 0.0
    %3558 = vmatmul.mubr.f32.gmra.mxu0 %v3491
    %v3559 = vpop.f32.mrf.mxu0
    %v3560 = vadd.f32 0.0, %v3559
    %v3561 = vpop.f32.mrf.mxu0
    %3562 = vdwg.mxu0
    %3563 = vrot.lane.b32.xlu0 %v2334, 64
    %v3564 = vpop.permute.xlu0 %3563
    %v3567 = vsel %vm306, %v3030, 0
    %3569 = vmatprep.subr.mxu0 0.0
    %3570 = vmatpush1.msra.mxu0 0.0
    %3571 = vmatprep.subr.mxu0 0.0
    %3572 = vmatpush1.msra.mxu0 0.0
    %3573 = vmatprep.subr.mxu0 0.0
    %3574 = vmatpush1.msra.mxu0 0.0
    %3575 = vmatprep.subr.mxu0 0.0
    %3576 = vmatpush1.msra.mxu0 0.0
    %3577 = vmatprep.subr.mxu0 0.0
    %3578 = vmatpush1.msra.mxu0 0.0
    %3579 = vmatprep.subr.mxu0 0.0
    %3580 = vmatpush1.msra.mxu0 0.0
    %3581 = vmatprep.subr.mxu0 0.0
    %3582 = vmatpush1.msra.mxu0 0.0
    %3583 = vmatprep.subr.mxu0 0.0
    %3584 = vmatpush1.msra.mxu0 0.0
    %3585 = vmatprep.subr.mxu0 0.0
    %3586 = vmatpush1.msra.mxu0 0.0
    %3587 = vmatprep.subr.mxu0 0.0
    %3588 = vmatpush1.msra.mxu0 0.0
    %3589 = vmatprep.subr.mxu0 0.0
    %3590 = vmatpush1.msra.mxu0 0.0
    %3591 = vmatprep.subr.mxu0 0.0
    %3592 = vmatpush1.msra.mxu0 0.0
    %3593 = vmatprep.subr.mxu0 0.0
    %3594 = vmatpush1.msra.mxu0 0.0
    %3595 = vmatprep.subr.mxu0 0.0
    %3596 = vmatpush1.msra.mxu0 0.0
    %3597 = vmatprep.subr.mxu0 0.0
    %3598 = vmatpush1.msra.mxu0 0.0
    %3599 = vmatprep.subr.mxu0 0.0
    %3600 = vmatpush1.msra.mxu0 %v3564
    %3601 = vmatprep.subr.mxu0 0.0
    %3602 = vmatpush2.msra.mxu0 0.0
    %3603 = vmatprep.subr.mxu0 0.0
    %3604 = vmatpush2.msra.mxu0 0.0
    %3605 = vmatprep.subr.mxu0 0.0
    %3606 = vmatpush2.msra.mxu0 0.0
    %3607 = vmatprep.subr.mxu0 0.0
    %3608 = vmatpush2.msra.mxu0 0.0
    %3609 = vmatprep.subr.mxu0 0.0
    %3610 = vmatpush2.msra.mxu0 0.0
    %3611 = vmatprep.subr.mxu0 0.0
    %3612 = vmatpush2.msra.mxu0 0.0
    %3613 = vmatprep.subr.mxu0 0.0
    %3614 = vmatpush2.msra.mxu0 0.0
    %3615 = vmatprep.subr.mxu0 0.0
    %3616 = vmatpush2.msra.mxu0 0.0
    %3617 = vmatprep.subr.mxu0 0.0
    %3618 = vmatpush2.msra.mxu0 0.0
    %3619 = vmatprep.subr.mxu0 0.0
    %3620 = vmatpush2.msra.mxu0 0.0
    %3621 = vmatprep.subr.mxu0 0.0
    %3622 = vmatpush2.msra.mxu0 0.0
    %3623 = vmatprep.subr.mxu0 0.0
    %3624 = vmatpush2.msra.mxu0 0.0
    %3625 = vmatprep.subr.mxu0 0.0
    %3626 = vmatpush2.msra.mxu0 0.0
    %3627 = vmatprep.subr.mxu0 0.0
    %3628 = vmatpush2.msra.mxu0 0.0
    %3629 = vmatprep.subr.mxu0 0.0
    %3630 = vmatpush2.msra.mxu0 0.0
    %3631 = vmatprep.subr.mxu0 0.0
    %3632 = vmatpush2.msra.mxu0 0.0
    %3633 = vmatprep.mubr.f32.mxu0 0.0
    %3634 = vmatmul.mubr.f32.gmra.mxu0 %v3567
    %v3635 = vpop.f32.mrf.mxu0
    %v3636 = vadd.f32 0.0, %v3635
    %v3637 = vpop.f32.mrf.mxu0
    %3638 = vdwg.mxu0
    %v3640 = vsel %vm306, %v3104, 0
    %v3643 = vsel %vm306, %v3180, 0
    %3645 = vmatprep.subr.mxu0 0.0
    %3646 = vmatpush1.msra.mxu0 0.0
    %3647 = vmatprep.subr.mxu0 0.0
    %3648 = vmatpush1.msra.mxu0 0.0
    %3649 = vmatprep.subr.mxu0 0.0
    %3650 = vmatpush1.msra.mxu0 0.0
    %3651 = vmatprep.subr.mxu0 0.0
    %3652 = vmatpush1.msra.mxu0 0.0
    %3653 = vmatprep.subr.mxu0 0.0
    %3654 = vmatpush1.msra.mxu0 0.0
    %3655 = vmatprep.subr.mxu0 0.0
    %3656 = vmatpush1.msra.mxu0 0.0
    %3657 = vmatprep.subr.mxu0 0.0
    %3658 = vmatpush1.msra.mxu0 0.0
    %3659 = vmatprep.subr.mxu0 0.0
    %3660 = vmatpush1.msra.mxu0 0.0
    %3661 = vmatprep.subr.mxu0 0.0
    %3662 = vmatpush1.msra.mxu0 0.0
    %3663 = vmatprep.subr.mxu0 0.0
    %3664 = vmatpush1.msra.mxu0 0.0
    %3665 = vmatprep.subr.mxu0 0.0
    %3666 = vmatpush1.msra.mxu0 0.0
    %3667 = vmatprep.subr.mxu0 0.0
    %3668 = vmatpush1.msra.mxu0 0.0
    %3669 = vmatprep.subr.mxu0 0.0
    %3670 = vmatpush1.msra.mxu0 0.0
    %3671 = vmatprep.subr.mxu0 0.0
    %3672 = vmatpush1.msra.mxu0 0.0
    %3673 = vmatprep.subr.mxu0 0.0
    %3674 = vmatpush1.msra.mxu0 0.0
    %3675 = vmatprep.subr.mxu0 0.0
    %3676 = vmatpush1.msra.mxu0 %v2219
    %3677 = vmatprep.subr.mxu0 0.0
    %3678 = vmatpush2.msra.mxu0 0.0
    %3679 = vmatprep.subr.mxu0 0.0
    %3680 = vmatpush2.msra.mxu0 0.0
    %3681 = vmatprep.subr.mxu0 0.0
    %3682 = vmatpush2.msra.mxu0 0.0
    %3683 = vmatprep.subr.mxu0 0.0
    %3684 = vmatpush2.msra.mxu0 0.0
    %3685 = vmatprep.subr.mxu0 0.0
    %3686 = vmatpush2.msra.mxu0 0.0
    %3687 = vmatprep.subr.mxu0 0.0
    %3688 = vmatpush2.msra.mxu0 0.0
    %3689 = vmatprep.subr.mxu0 0.0
    %3690 = vmatpush2.msra.mxu0 0.0
    %3691 = vmatprep.subr.mxu0 0.0
    %3692 = vmatpush2.msra.mxu0 0.0
    %3693 = vmatprep.subr.mxu0 0.0
    %3694 = vmatpush2.msra.mxu0 0.0
    %3695 = vmatprep.subr.mxu0 0.0
    %3696 = vmatpush2.msra.mxu0 0.0
    %3697 = vmatprep.subr.mxu0 0.0
    %3698 = vmatpush2.msra.mxu0 0.0
    %3699 = vmatprep.subr.mxu0 0.0
    %3700 = vmatpush2.msra.mxu0 0.0
    %3701 = vmatprep.subr.mxu0 0.0
    %3702 = vmatpush2.msra.mxu0 0.0
    %3703 = vmatprep.subr.mxu0 0.0
    %3704 = vmatpush2.msra.mxu0 0.0
    %3705 = vmatprep.subr.mxu0 0.0
    %3706 = vmatpush2.msra.mxu0 0.0
    %3707 = vmatprep.subr.mxu0 0.0
    %3708 = vmatpush2.msra.mxu0 0.0
    %3709 = vmatprep.mubr.f32.mxu0 0.0
    %3710 = vmatmul.mubr.f32.gmra.mxu0 %v3640
    %v3711 = vpop.f32.mrf.mxu0
    %v3712 = vadd.f32 0.0, %v3711
    %v3713 = vpop.f32.mrf.mxu0
    %3714 = vmatprep.mubr.f32.mxu0 0.0
    %3715 = vmatmul.mubr.f32.gmra.mxu0 %v3643
    %v3716 = vpop.f32.mrf.mxu0
    %v3717 = vadd.f32 0.0, %v3716
    %v3718 = vpop.f32.mrf.mxu0
    %3719 = vdwg.mxu0
    %v3721 = vsel %vm306, %v3256, 0
    %v3724 = vsel %vm306, %v3332, 0
    %3726 = vmatprep.subr.mxu0 0.0
    %3727 = vmatpush1.msra.mxu0 0.0
    %3728 = vmatprep.subr.mxu0 0.0
    %3729 = vmatpush1.msra.mxu0 0.0
    %3730 = vmatprep.subr.mxu0 0.0
    %3731 = vmatpush1.msra.mxu0 0.0
    %3732 = vmatprep.subr.mxu0 0.0
    %3733 = vmatpush1.msra.mxu0 0.0
    %3734 = vmatprep.subr.mxu0 0.0
    %3735 = vmatpush1.msra.mxu0 0.0
    %3736 = vmatprep.subr.mxu0 0.0
    %3737 = vmatpush1.msra.mxu0 0.0
    %3738 = vmatprep.subr.mxu0 0.0
    %3739 = vmatpush1.msra.mxu0 0.0
    %3740 = vmatprep.subr.mxu0 0.0
    %3741 = vmatpush1.msra.mxu0 0.0
    %3742 = vmatprep.subr.mxu0 0.0
    %3743 = vmatpush1.msra.mxu0 0.0
    %3744 = vmatprep.subr.mxu0 0.0
    %3745 = vmatpush1.msra.mxu0 0.0
    %3746 = vmatprep.subr.mxu0 0.0
    %3747 = vmatpush1.msra.mxu0 0.0
    %3748 = vmatprep.subr.mxu0 0.0
    %3749 = vmatpush1.msra.mxu0 0.0
    %3750 = vmatprep.subr.mxu0 0.0
    %3751 = vmatpush1.msra.mxu0 0.0
    %3752 = vmatprep.subr.mxu0 0.0
    %3753 = vmatpush1.msra.mxu0 0.0
    %3754 = vmatprep.subr.mxu0 0.0
    %3755 = vmatpush1.msra.mxu0 0.0
    %3756 = vmatprep.subr.mxu0 0.0
    %3757 = vmatpush1.msra.mxu0 %v2220
    %3758 = vmatprep.subr.mxu0 0.0
    %3759 = vmatpush2.msra.mxu0 0.0
    %3760 = vmatprep.subr.mxu0 0.0
    %3761 = vmatpush2.msra.mxu0 0.0
    %3762 = vmatprep.subr.mxu0 0.0
    %3763 = vmatpush2.msra.mxu0 0.0
    %3764 = vmatprep.subr.mxu0 0.0
    %3765 = vmatpush2.msra.mxu0 0.0
    %3766 = vmatprep.subr.mxu0 0.0
    %3767 = vmatpush2.msra.mxu0 0.0
    %3768 = vmatprep.subr.mxu0 0.0
    %3769 = vmatpush2.msra.mxu0 0.0
    %3770 = vmatprep.subr.mxu0 0.0
    %3771 = vmatpush2.msra.mxu0 0.0
    %3772 = vmatprep.subr.mxu0 0.0
    %3773 = vmatpush2.msra.mxu0 0.0
    %3774 = vmatprep.subr.mxu0 0.0
    %3775 = vmatpush2.msra.mxu0 0.0
    %3776 = vmatprep.subr.mxu0 0.0
    %3777 = vmatpush2.msra.mxu0 0.0
    %3778 = vmatprep.subr.mxu0 0.0
    %3779 = vmatpush2.msra.mxu0 0.0
    %3780 = vmatprep.subr.mxu0 0.0
    %3781 = vmatpush2.msra.mxu0 0.0
    %3782 = vmatprep.subr.mxu0 0.0
    %3783 = vmatpush2.msra.mxu0 0.0
    %3784 = vmatprep.subr.mxu0 0.0
    %3785 = vmatpush2.msra.mxu0 0.0
    %3786 = vmatprep.subr.mxu0 0.0
    %3787 = vmatpush2.msra.mxu0 0.0
    %3788 = vmatprep.subr.mxu0 0.0
    %3789 = vmatpush2.msra.mxu0 0.0
    %3790 = vmatprep.mubr.f32.mxu0 0.0
    %3791 = vmatmul.mubr.f32.gmra.mxu0 %v3721
    %v3792 = vpop.f32.mrf.mxu0
    %v3793 = vadd.f32 0.0, %v3792
    %v3794 = vpop.f32.mrf.mxu0
    %3795 = vmatprep.mubr.f32.mxu0 0.0
    %3796 = vmatmul.mubr.f32.gmra.mxu0 %v3724
    %v3797 = vpop.f32.mrf.mxu0
    %v3798 = vadd.f32 0.0, %v3797
    %v3799 = vpop.f32.mrf.mxu0
    %3800 = vdwg.mxu0
    %v3802 = vsel %vm306, %v3408, 0
    %v3805 = vsel %vm306, %v3484, 0
    %3807 = vmatprep.subr.mxu0 0.0
    %3808 = vmatpush1.msra.mxu0 0.0
    %3809 = vmatprep.subr.mxu0 0.0
    %3810 = vmatpush1.msra.mxu0 0.0
    %3811 = vmatprep.subr.mxu0 0.0
    %3812 = vmatpush1.msra.mxu0 0.0
    %3813 = vmatprep.subr.mxu0 0.0
    %3814 = vmatpush1.msra.mxu0 0.0
    %3815 = vmatprep.subr.mxu0 0.0
    %3816 = vmatpush1.msra.mxu0 0.0
    %3817 = vmatprep.subr.mxu0 0.0
    %3818 = vmatpush1.msra.mxu0 0.0
    %3819 = vmatprep.subr.mxu0 0.0
    %3820 = vmatpush1.msra.mxu0 0.0
    %3821 = vmatprep.subr.mxu0 0.0
    %3822 = vmatpush1.msra.mxu0 0.0
    %3823 = vmatprep.subr.mxu0 0.0
    %3824 = vmatpush1.msra.mxu0 0.0
    %3825 = vmatprep.subr.mxu0 0.0
    %3826 = vmatpush1.msra.mxu0 0.0
    %3827 = vmatprep.subr.mxu0 0.0
    %3828 = vmatpush1.msra.mxu0 0.0
    %3829 = vmatprep.subr.mxu0 0.0
    %3830 = vmatpush1.msra.mxu0 0.0
    %3831 = vmatprep.subr.mxu0 0.0
    %3832 = vmatpush1.msra.mxu0 0.0
    %3833 = vmatprep.subr.mxu0 0.0
    %3834 = vmatpush1.msra.mxu0 0.0
    %3835 = vmatprep.subr.mxu0 0.0
    %3836 = vmatpush1.msra.mxu0 0.0
    %3837 = vmatprep.subr.mxu0 0.0
    %3838 = vmatpush1.msra.mxu0 %v2221
    %3839 = vmatprep.subr.mxu0 0.0
    %3840 = vmatpush2.msra.mxu0 0.0
    %3841 = vmatprep.subr.mxu0 0.0
    %3842 = vmatpush2.msra.mxu0 0.0
    %3843 = vmatprep.subr.mxu0 0.0
    %3844 = vmatpush2.msra.mxu0 0.0
    %3845 = vmatprep.subr.mxu0 0.0
    %3846 = vmatpush2.msra.mxu0 0.0
    %3847 = vmatprep.subr.mxu0 0.0
    %3848 = vmatpush2.msra.mxu0 0.0
    %3849 = vmatprep.subr.mxu0 0.0
    %3850 = vmatpush2.msra.mxu0 0.0
    %3851 = vmatprep.subr.mxu0 0.0
    %3852 = vmatpush2.msra.mxu0 0.0
    %3853 = vmatprep.subr.mxu0 0.0
    %3854 = vmatpush2.msra.mxu0 0.0
    %3855 = vmatprep.subr.mxu0 0.0
    %3856 = vmatpush2.msra.mxu0 0.0
    %3857 = vmatprep.subr.mxu0 0.0
    %3858 = vmatpush2.msra.mxu0 0.0
    %3859 = vmatprep.subr.mxu0 0.0
    %3860 = vmatpush2.msra.mxu0 0.0
    %3861 = vmatprep.subr.mxu0 0.0
    %3862 = vmatpush2.msra.mxu0 0.0
    %3863 = vmatprep.subr.mxu0 0.0
    %3864 = vmatpush2.msra.mxu0 0.0
    %3865 = vmatprep.subr.mxu0 0.0
    %3866 = vmatpush2.msra.mxu0 0.0
    %3867 = vmatprep.subr.mxu0 0.0
    %3868 = vmatpush2.msra.mxu0 0.0
    %3869 = vmatprep.subr.mxu0 0.0
    %3870 = vmatpush2.msra.mxu0 0.0
    %3871 = vmatprep.mubr.f32.mxu0 0.0
    %3872 = vmatmul.mubr.f32.gmra.mxu0 %v3802
    %v3873 = vpop.f32.mrf.mxu0
    %v3874 = vadd.f32 0.0, %v3873
    %v3875 = vpop.f32.mrf.mxu0
    %3876 = vmatprep.mubr.f32.mxu0 0.0
    %3877 = vmatmul.mubr.f32.gmra.mxu0 %v3805
    %v3878 = vpop.f32.mrf.mxu0
    %v3879 = vadd.f32 0.0, %v3878
    %v3880 = vpop.f32.mrf.mxu0
    %3881 = vdwg.mxu0
    %v3883 = vsel %vm306, %v3560, 0
    %v3886 = vsel %vm306, %v3636, 0
    %3888 = vmatprep.subr.mxu0 0.0
    %3889 = vmatpush1.msra.mxu0 0.0
    %3890 = vmatprep.subr.mxu0 0.0
    %3891 = vmatpush1.msra.mxu0 0.0
    %3892 = vmatprep.subr.mxu0 0.0
    %3893 = vmatpush1.msra.mxu0 0.0
    %3894 = vmatprep.subr.mxu0 0.0
    %3895 = vmatpush1.msra.mxu0 0.0
    %3896 = vmatprep.subr.mxu0 0.0
    %3897 = vmatpush1.msra.mxu0 0.0
    %3898 = vmatprep.subr.mxu0 0.0
    %3899 = vmatpush1.msra.mxu0 0.0
    %3900 = vmatprep.subr.mxu0 0.0
    %3901 = vmatpush1.msra.mxu0 0.0
    %3902 = vmatprep.subr.mxu0 0.0
    %3903 = vmatpush1.msra.mxu0 0.0
    %3904 = vmatprep.subr.mxu0 0.0
    %3905 = vmatpush1.msra.mxu0 0.0
    %3906 = vmatprep.subr.mxu0 0.0
    %3907 = vmatpush1.msra.mxu0 0.0
    %3908 = vmatprep.subr.mxu0 0.0
    %3909 = vmatpush1.msra.mxu0 0.0
    %3910 = vmatprep.subr.mxu0 0.0
    %3911 = vmatpush1.msra.mxu0 0.0
    %3912 = vmatprep.subr.mxu0 0.0
    %3913 = vmatpush1.msra.mxu0 0.0
    %3914 = vmatprep.subr.mxu0 0.0
    %3915 = vmatpush1.msra.mxu0 0.0
    %3916 = vmatprep.subr.mxu0 0.0
    %3917 = vmatpush1.msra.mxu0 0.0
    %3918 = vmatprep.subr.mxu0 0.0
    %3919 = vmatpush1.msra.mxu0 %v2222
    %3920 = vmatprep.subr.mxu0 0.0
    %3921 = vmatpush2.msra.mxu0 0.0
    %3922 = vmatprep.subr.mxu0 0.0
    %3923 = vmatpush2.msra.mxu0 0.0
    %3924 = vmatprep.subr.mxu0 0.0
    %3925 = vmatpush2.msra.mxu0 0.0
    %3926 = vmatprep.subr.mxu0 0.0
    %3927 = vmatpush2.msra.mxu0 0.0
    %3928 = vmatprep.subr.mxu0 0.0
    %3929 = vmatpush2.msra.mxu0 0.0
    %3930 = vmatprep.subr.mxu0 0.0
    %3931 = vmatpush2.msra.mxu0 0.0
    %3932 = vmatprep.subr.mxu0 0.0
    %3933 = vmatpush2.msra.mxu0 0.0
    %3934 = vmatprep.subr.mxu0 0.0
    %3935 = vmatpush2.msra.mxu0 0.0
    %3936 = vmatprep.subr.mxu0 0.0
    %3937 = vmatpush2.msra.mxu0 0.0
    %3938 = vmatprep.subr.mxu0 0.0
    %3939 = vmatpush2.msra.mxu0 0.0
    %3940 = vmatprep.subr.mxu0 0.0
    %3941 = vmatpush2.msra.mxu0 0.0
    %3942 = vmatprep.subr.mxu0 0.0
    %3943 = vmatpush2.msra.mxu0 0.0
    %3944 = vmatprep.subr.mxu0 0.0
    %3945 = vmatpush2.msra.mxu0 0.0
    %3946 = vmatprep.subr.mxu0 0.0
    %3947 = vmatpush2.msra.mxu0 0.0
    %3948 = vmatprep.subr.mxu0 0.0
    %3949 = vmatpush2.msra.mxu0 0.0
    %3950 = vmatprep.subr.mxu0 0.0
    %3951 = vmatpush2.msra.mxu0 0.0
    %3952 = vmatprep.mubr.f32.mxu0 0.0
    %3953 = vmatmul.mubr.f32.gmra.mxu0 %v3883
    %v3954 = vpop.f32.mrf.mxu0
    %v3955 = vadd.f32 0.0, %v3954
    %v3956 = vpop.f32.mrf.mxu0
    %3957 = vmatprep.mubr.f32.mxu0 0.0
    %3958 = vmatmul.mubr.f32.gmra.mxu0 %v3886
    %v3959 = vpop.f32.mrf.mxu0
    %v3960 = vadd.f32 0.0, %v3959
    %v3961 = vpop.f32.mrf.mxu0
    %3962 = vdwg.mxu0
    %v3963 = vsel %vm208, %v3712, 0.0
    %v3964 = vsel %vm208, %v3793, 0.0
    %v3965 = vadd.f32 %v3963, %v3964
    %v3966 = vsel %vm208, %v3874, 0.0
    %v3967 = vadd.f32 %v3965, %v3966
    %v3968 = vsel %vm208, %v3955, 0.0
    %v3969 = vadd.f32 %v3967, %v3968
    %v3970 = vsel %vm208, %v3717, 0.0
    %v3971 = vsel %vm208, %v3798, 0.0
    %v3972 = vadd.f32 %v3970, %v3971
    %v3973 = vsel %vm208, %v3879, 0.0
    %v3974 = vadd.f32 %v3972, %v3973
    %v3975 = vsel %vm208, %v3960, 0.0
    %v3976 = vadd.f32 %v3974, %v3975
    %v3977 = vld [vmem:[#allocation8 + $0xb] sm:$0x1]
    %v3978 = vlaneseq
    %v3979 = vshrl.u32 %v3978, 7
    %v3980 = vsub.s32 0, %v3979
    %v3981 = vrot.slane %v3977, %v3980
    %v3982 = vadd.f32 %v3969, %v3981
    %v3983 = vadd.f32 %v3976, %v3981
    %v3984 = vadd.f32 %v2212, %v3982
    %v3985 = vadd.f32 %v2213, %v3983
    %v3986 = vld [vmem:[#allocation8 + $0xe] sm:$0x1]
    %v3987 = vld [vmem:[#allocation8 + $0xf] sm:$0x1]
    %v3988 = vsel %vm208, %v3984, 0.0
    %3989 = vadd.xlane.f32.xlu0 %v3988
    %v3990 = vpop.xlane.xlu0 %3989
    %v3991 = vsel %vm208, %v3985, 0.0
    %3992 = vadd.xlane.f32.xlu0 %v3991
    %v3993 = vpop.xlane.xlu0 %3992
    %v3994 = vmul.f32 %v3990, %v1964
    %v3995 = vmul.f32 %v3993, %v1964
    %v3996 = vsub.f32 %v3984, %v3994
    %v3997 = vsub.f32 %v3985, %v3995
    %v3998 = vmul.f32 %v3996, %v3996
    %v3999 = vmul.f32 %v3997, %v3997
    %v4000 = vsel %vm208, %v3998, 0.0
    %4001 = vadd.xlane.f32.xlu0 %v4000
    %v4002 = vpop.xlane.xlu0 %4001
    %v4003 = vsel %vm208, %v3999, 0.0
    %4004 = vadd.xlane.f32.xlu0 %v4003
    %v4005 = vpop.xlane.xlu0 %4004
    %v4006 = vmul.f32 %v4002, %v1964
    %v4007 = vmul.f32 %v4005, %v1964
    %v4008 = vadd.f32 %v4006, 1e-05
    %v4009 = vadd.f32 %v4007, 1e-05
    %v4010 = vrsqrt.pop %v4008
    %v4011 = vrsqrt.pop %v4009
    %v4012 = vmul.f32 %v3996, %v4010
    %v4013 = vmul.f32 %v3997, %v4011
    %v4014 = vlaneseq
    %v4015 = vshrl.u32 %v4014, 7
    %v4016 = vsub.s32 0, %v4015
    %v4017 = vrot.slane %v3986, %v4016
    %v4018 = vmul.f32 %v4012, %v4017
    %v4019 = vmul.f32 %v4013, %v4017
    %v4020 = vlaneseq
    %v4021 = vshrl.u32 %v4020, 7
    %v4022 = vsub.s32 0, %v4021
    %v4023 = vrot.slane %v3987, %v4022
    %v4024 = vadd.f32 %v4018, %v4023
    %v4025 = vadd.f32 %v4019, %v4023
    %v4026 = vld [vmem:[#allocation8 + $0xc] sm:$0x1]
    %v4027 = vlaneseq
    %v4028 = vshrl.u32 %v4027, 7
    %v4029 = vsub.s32 0, %v4028
    %v4030 = vrot.slane %v4026, %v4029
    %v4032 = vsel %vm208, %v4024, 0
    %v4035 = vsel %vm208, %v4025, 0
    %4037 = vmatprep.subr.mxu0 0.0
    %4038 = vmatpush1.msra.mxu0 0.0
    %4039 = vmatprep.subr.mxu0 0.0
    %4040 = vmatpush1.msra.mxu0 0.0
    %4041 = vmatprep.subr.mxu0 0.0
    %4042 = vmatpush1.msra.mxu0 0.0
    %4043 = vmatprep.subr.mxu0 0.0
    %4044 = vmatpush1.msra.mxu0 0.0
    %4045 = vmatprep.subr.mxu0 0.0
    %4046 = vmatpush1.msra.mxu0 0.0
    %4047 = vmatprep.subr.mxu0 0.0
    %4048 = vmatpush1.msra.mxu0 0.0
    %4049 = vmatprep.subr.mxu0 0.0
    %4050 = vmatpush1.msra.mxu0 0.0
    %4051 = vmatprep.subr.mxu0 0.0
    %4052 = vmatpush1.msra.mxu0 0.0
    %4053 = vmatprep.subr.mxu0 0.0
    %4054 = vmatpush1.msra.mxu0 0.0
    %4055 = vmatprep.subr.mxu0 0.0
    %4056 = vmatpush1.msra.mxu0 0.0
    %4057 = vmatprep.subr.mxu0 0.0
    %4058 = vmatpush1.msra.mxu0 0.0
    %4059 = vmatprep.subr.mxu0 0.0
    %4060 = vmatpush1.msra.mxu0 0.0
    %4061 = vmatprep.subr.mxu0 0.0
    %4062 = vmatpush1.msra.mxu0 %v2226
    %4063 = vmatprep.subr.mxu0 0.0
    %4064 = vmatpush1.msra.mxu0 %v2225
    %4065 = vmatprep.subr.mxu0 0.0
    %4066 = vmatpush1.msra.mxu0 %v2224
    %4067 = vmatprep.subr.mxu0 0.0
    %4068 = vmatpush1.msra.mxu0 %v2223
    %4069 = vmatprep.subr.mxu0 0.0
    %4070 = vmatpush2.msra.mxu0 0.0
    %4071 = vmatprep.subr.mxu0 0.0
    %4072 = vmatpush2.msra.mxu0 0.0
    %4073 = vmatprep.subr.mxu0 0.0
    %4074 = vmatpush2.msra.mxu0 0.0
    %4075 = vmatprep.subr.mxu0 0.0
    %4076 = vmatpush2.msra.mxu0 0.0
    %4077 = vmatprep.subr.mxu0 0.0
    %4078 = vmatpush2.msra.mxu0 0.0
    %4079 = vmatprep.subr.mxu0 0.0
    %4080 = vmatpush2.msra.mxu0 0.0
    %4081 = vmatprep.subr.mxu0 0.0
    %4082 = vmatpush2.msra.mxu0 0.0
    %4083 = vmatprep.subr.mxu0 0.0
    %4084 = vmatpush2.msra.mxu0 0.0
    %4085 = vmatprep.subr.mxu0 0.0
    %4086 = vmatpush2.msra.mxu0 0.0
    %4087 = vmatprep.subr.mxu0 0.0
    %4088 = vmatpush2.msra.mxu0 0.0
    %4089 = vmatprep.subr.mxu0 0.0
    %4090 = vmatpush2.msra.mxu0 0.0
    %4091 = vmatprep.subr.mxu0 0.0
    %4092 = vmatpush2.msra.mxu0 0.0
    %4093 = vmatprep.subr.mxu0 0.0
    %4094 = vmatpush2.msra.mxu0 0.0
    %4095 = vmatprep.subr.mxu0 0.0
    %4096 = vmatpush2.msra.mxu0 0.0
    %4097 = vmatprep.subr.mxu0 0.0
    %4098 = vmatpush2.msra.mxu0 0.0
    %4099 = vmatprep.subr.mxu0 0.0
    %4100 = vmatpush2.msra.mxu0 0.0
    %4101 = vmatprep.mubr.f32.mxu0 0.0
    %4102 = vmatmul.mubr.f32.gmra.mxu0 %v4032
    %v4103 = vpop.f32.mrf.mxu0
    %v4104 = vadd.f32 %v4030, %v4103
    %v4105 = vpop.f32.mrf.mxu0
    %4106 = vmatprep.mubr.f32.mxu0 0.0
    %4107 = vmatmul.mubr.f32.gmra.mxu0 %v4035
    %v4108 = vpop.f32.mrf.mxu0
    %v4109 = vadd.f32 %v4030, %v4108
    %v4110 = vpop.f32.mrf.mxu0
    %4111 = vdwg.mxu0
    %v4112 = vmax.f32 %v4104, 0.0
    %v4113 = vmax.f32 %v4109, 0.0
    %v4114 = vld [vmem:[#allocation8 + $0xd] sm:$0x1]
    %v4115 = vlaneseq
    %v4116 = vshrl.u32 %v4115, 7
    %v4117 = vsub.s32 0, %v4116
    %v4118 = vrot.slane %v4114, %v4117
    %v4120 = vsel %vm2090, %v4112, 0
    %v4123 = vsel %vm2090, %v4113, 0
    %4125 = vmatprep.subr.mxu0 0.0
    %4126 = vmatpush1.msra.mxu0 0.0
    %4127 = vmatprep.subr.mxu0 0.0
    %4128 = vmatpush1.msra.mxu0 0.0
    %4129 = vmatprep.subr.mxu0 0.0
    %4130 = vmatpush1.msra.mxu0 0.0
    %4131 = vmatprep.subr.mxu0 0.0
    %4132 = vmatpush1.msra.mxu0 0.0
    %4133 = vmatprep.subr.mxu0 0.0
    %4134 = vmatpush1.msra.mxu0 0.0
    %4135 = vmatprep.subr.mxu0 0.0
    %4136 = vmatpush1.msra.mxu0 0.0
    %4137 = vmatprep.subr.mxu0 0.0
    %4138 = vmatpush1.msra.mxu0 0.0
    %4139 = vmatprep.subr.mxu0 0.0
    %4140 = vmatpush1.msra.mxu0 0.0
    %4141 = vmatprep.subr.mxu0 0.0
    %4142 = vmatpush1.msra.mxu0 %v2234
    %4143 = vmatprep.subr.mxu0 0.0
    %4144 = vmatpush1.msra.mxu0 %v2233
    %4145 = vmatprep.subr.mxu0 0.0
    %4146 = vmatpush1.msra.mxu0 %v2232
    %4147 = vmatprep.subr.mxu0 0.0
    %4148 = vmatpush1.msra.mxu0 %v2231
    %4149 = vmatprep.subr.mxu0 0.0
    %4150 = vmatpush1.msra.mxu0 %v2230
    %4151 = vmatprep.subr.mxu0 0.0
    %4152 = vmatpush1.msra.mxu0 %v2229
    %4153 = vmatprep.subr.mxu0 0.0
    %4154 = vmatpush1.msra.mxu0 %v2228
    %4155 = vmatprep.subr.mxu0 0.0
    %4156 = vmatpush1.msra.mxu0 %v2227
    %4157 = vmatprep.subr.mxu0 0.0
    %4158 = vmatpush2.msra.mxu0 0.0
    %4159 = vmatprep.subr.mxu0 0.0
    %4160 = vmatpush2.msra.mxu0 0.0
    %4161 = vmatprep.subr.mxu0 0.0
    %4162 = vmatpush2.msra.mxu0 0.0
    %4163 = vmatprep.subr.mxu0 0.0
    %4164 = vmatpush2.msra.mxu0 0.0
    %4165 = vmatprep.subr.mxu0 0.0
    %4166 = vmatpush2.msra.mxu0 0.0
    %4167 = vmatprep.subr.mxu0 0.0
    %4168 = vmatpush2.msra.mxu0 0.0
    %4169 = vmatprep.subr.mxu0 0.0
    %4170 = vmatpush2.msra.mxu0 0.0
    %4171 = vmatprep.subr.mxu0 0.0
    %4172 = vmatpush2.msra.mxu0 0.0
    %4173 = vmatprep.subr.mxu0 0.0
    %4174 = vmatpush2.msra.mxu0 0.0
    %4175 = vmatprep.subr.mxu0 0.0
    %4176 = vmatpush2.msra.mxu0 0.0
    %4177 = vmatprep.subr.mxu0 0.0
    %4178 = vmatpush2.msra.mxu0 0.0
    %4179 = vmatprep.subr.mxu0 0.0
    %4180 = vmatpush2.msra.mxu0 0.0
    %4181 = vmatprep.subr.mxu0 0.0
    %4182 = vmatpush2.msra.mxu0 0.0
    %4183 = vmatprep.subr.mxu0 0.0
    %4184 = vmatpush2.msra.mxu0 0.0
    %4185 = vmatprep.subr.mxu0 0.0
    %4186 = vmatpush2.msra.mxu0 0.0
    %4187 = vmatprep.subr.mxu0 0.0
    %4188 = vmatpush2.msra.mxu0 0.0
    %4189 = vmatprep.mubr.f32.mxu0 0.0
    %4190 = vmatmul.mubr.f32.gmra.mxu0 %v4120
    %v4191 = vpop.f32.mrf.mxu0
    %v4192 = vadd.f32 %v4118, %v4191
    %v4193 = vpop.f32.mrf.mxu0
    %4194 = vmatprep.mubr.f32.mxu0 0.0
    %4195 = vmatmul.mubr.f32.gmra.mxu0 %v4123
    %v4196 = vpop.f32.mrf.mxu0
    %v4197 = vadd.f32 %v4118, %v4196
    %v4198 = vpop.f32.mrf.mxu0
    %4199 = vdwg.mxu0
    %v4200 = vadd.f32 %v4024, %v4192
    %v4201 = vadd.f32 %v4025, %v4197
    %v4202 = vld [vmem:[#allocation8 + $0x10] sm:$0x1]
    %v4203 = vld [vmem:[#allocation8 + $0x11] sm:$0x1]
    %v4204 = vsel %vm208, %v4200, 0.0
    %4205 = vadd.xlane.f32.xlu0 %v4204
    %v4206 = vpop.xlane.xlu0 %4205
    %v4207 = vsel %vm208, %v4201, 0.0
    %4208 = vadd.xlane.f32.xlu0 %v4207
    %v4209 = vpop.xlane.xlu0 %4208
    %v4210 = vmul.f32 %v4206, %v1964
    %v4211 = vmul.f32 %v4209, %v1964
    %v4212 = vsub.f32 %v4200, %v4210
    %v4213 = vsub.f32 %v4201, %v4211
    %v4214 = vmul.f32 %v4212, %v4212
    %v4215 = vmul.f32 %v4213, %v4213
    %v4216 = vsel %vm208, %v4214, 0.0
    %4217 = vadd.xlane.f32.xlu0 %v4216
    %v4218 = vpop.xlane.xlu0 %4217
    %v4219 = vsel %vm208, %v4215, 0.0
    %4220 = vadd.xlane.f32.xlu0 %v4219
    %v4221 = vpop.xlane.xlu0 %4220
    %v4222 = vmul.f32 %v4218, %v1964
    %v4223 = vmul.f32 %v4221, %v1964
    %v4224 = vadd.f32 %v4222, 1e-05
    %v4225 = vadd.f32 %v4223, 1e-05
    %v4226 = vrsqrt.pop %v4224
    %v4227 = vrsqrt.pop %v4225
    %v4228 = vmul.f32 %v4212, %v4226
    %v4229 = vmul.f32 %v4213, %v4227
    %v4230 = vlaneseq
    %v4231 = vshrl.u32 %v4230, 7
    %v4232 = vsub.s32 0, %v4231
    %v4233 = vrot.slane %v4202, %v4232
    %v4234 = vmul.f32 %v4228, %v4233
    %v4235 = vmul.f32 %v4229, %v4233
    %v4236 = vlaneseq
    %v4237 = vshrl.u32 %v4236, 7
    %v4238 = vsub.s32 0, %v4237
    %v4239 = vrot.slane %v4203, %v4238
    %v4240 = vadd.f32 %v4234, %v4239
    %v4241 = vadd.f32 %v4235, %v4239
    %v4242 = vld [vmem:[%s3] sm:$0xff]
    %v4243 = vld [vmem:[%s3 + $0x8] sm:$0xff]
    %v4244 = vld [vmem:[%s3 + $0x10] sm:$0xff]
    %v4245 = vld [vmem:[%s3 + $0x18] sm:$0xff]
    %v4246 = vld [vmem:[#allocation8 + $0x1] sm:$0x1]
    %v4247 = vlaneseq
    %v4248 = vshrl.u32 %v4247, 7
    %v4249 = vsub.s32 0, %v4248
    %v4250 = vrot.slane %v4246, %v4249
    %v4252 = vsel %vm208, %v4240, 0
    %v4255 = vsel %vm208, %v4241, 0
    %4257 = vmatprep.subr.mxu0 0.0
    %4258 = vmatpush1.msra.mxu0 0.0
    %4259 = vmatprep.subr.mxu0 0.0
    %4260 = vmatpush1.msra.mxu0 0.0
    %4261 = vmatprep.subr.mxu0 0.0
    %4262 = vmatpush1.msra.mxu0 0.0
    %4263 = vmatprep.subr.mxu0 0.0
    %4264 = vmatpush1.msra.mxu0 0.0
    %4265 = vmatprep.subr.mxu0 0.0
    %4266 = vmatpush1.msra.mxu0 0.0
    %4267 = vmatprep.subr.mxu0 0.0
    %4268 = vmatpush1.msra.mxu0 0.0
    %4269 = vmatprep.subr.mxu0 0.0
    %4270 = vmatpush1.msra.mxu0 0.0
    %4271 = vmatprep.subr.mxu0 0.0
    %4272 = vmatpush1.msra.mxu0 0.0
    %4273 = vmatprep.subr.mxu0 0.0
    %4274 = vmatpush1.msra.mxu0 0.0
    %4275 = vmatprep.subr.mxu0 0.0
    %4276 = vmatpush1.msra.mxu0 0.0
    %4277 = vmatprep.subr.mxu0 0.0
    %4278 = vmatpush1.msra.mxu0 0.0
    %4279 = vmatprep.subr.mxu0 0.0
    %4280 = vmatpush1.msra.mxu0 0.0
    %4281 = vmatprep.subr.mxu0 0.0
    %4282 = vmatpush1.msra.mxu0 %v4245
    %4283 = vmatprep.subr.mxu0 0.0
    %4284 = vmatpush1.msra.mxu0 %v4244
    %4285 = vmatprep.subr.mxu0 0.0
    %4286 = vmatpush1.msra.mxu0 %v4243
    %4287 = vmatprep.subr.mxu0 0.0
    %4288 = vmatpush1.msra.mxu0 %v4242
    %4289 = vmatprep.subr.mxu0 0.0
    %4290 = vmatpush2.msra.mxu0 0.0
    %4291 = vmatprep.subr.mxu0 0.0
    %4292 = vmatpush2.msra.mxu0 0.0
    %4293 = vmatprep.subr.mxu0 0.0
    %4294 = vmatpush2.msra.mxu0 0.0
    %4295 = vmatprep.subr.mxu0 0.0
    %4296 = vmatpush2.msra.mxu0 0.0
    %4297 = vmatprep.subr.mxu0 0.0
    %4298 = vmatpush2.msra.mxu0 0.0
    %4299 = vmatprep.subr.mxu0 0.0
    %4300 = vmatpush2.msra.mxu0 0.0
    %4301 = vmatprep.subr.mxu0 0.0
    %4302 = vmatpush2.msra.mxu0 0.0
    %4303 = vmatprep.subr.mxu0 0.0
    %4304 = vmatpush2.msra.mxu0 0.0
    %4305 = vmatprep.subr.mxu0 0.0
    %4306 = vmatpush2.msra.mxu0 0.0
    %4307 = vmatprep.subr.mxu0 0.0
    %4308 = vmatpush2.msra.mxu0 0.0
    %4309 = vmatprep.subr.mxu0 0.0
    %4310 = vmatpush2.msra.mxu0 0.0
    %4311 = vmatprep.subr.mxu0 0.0
    %4312 = vmatpush2.msra.mxu0 0.0
    %4313 = vmatprep.subr.mxu0 0.0
    %4314 = vmatpush2.msra.mxu0 0.0
    %4315 = vmatprep.subr.mxu0 0.0
    %4316 = vmatpush2.msra.mxu0 0.0
    %4317 = vmatprep.subr.mxu0 0.0
    %4318 = vmatpush2.msra.mxu0 0.0
    %4319 = vmatprep.subr.mxu0 0.0
    %4320 = vmatpush2.msra.mxu0 0.0
    %4321 = vmatprep.mubr.f32.mxu0 0.0
    %4322 = vmatmul.mubr.f32.gmra.mxu0 %v4252
    %v4323 = vpop.f32.mrf.mxu0
    %v4324 = vadd.f32 %v4250, %v4323
    %v4325 = vpop.f32.mrf.mxu0
    %4326 = vmatprep.mubr.f32.mxu0 0.0
    %4327 = vmatmul.mubr.f32.gmra.mxu0 %v4255
    %v4328 = vpop.f32.mrf.mxu0
    %v4329 = vadd.f32 %v4250, %v4328
    %v4330 = vpop.f32.mrf.mxu0
    %4331 = vdwg.mxu0
    %v4334 = vrot.slane %v4329, 7
    %vm4337 = vcmask 64519
    %4338 = vst.msk [vmem:[#allocation10 - $0x7] sm:$0x80] %vm4337, %v4324
    %vm4339 = vcmask 57344
    %4340 = vst.msk [vmem:[#allocation10 + $0x1] sm:$0x1] %vm4339, %v4334
    // Predicated region
    $region54: #{tpu_custom_call.1} parent=1 // pred_check
      _
    $region55: #{tpu_custom_call.1} parent=1 // pred_check_branch
      %4342 = sbr.rel (0) target = $region57
    $region56: #{tpu_custom_call.1} parent=1 // pred_region
      %s4344 = ssub.s32 32, 32
      %4345 = vsyncadd [#allocation4], %s4344
      %s4347 = sshll.u32 [#allocation10], 4
      %s4348 = int_to_ptr.vmem [resolvable:$true] %s4347
      %4350 = dma.vmem_to_hbm [thread:$0]  %s4348, 32, %s9, [#allocation4]
    $region57: #{tpu_custom_call.1} parent=1 // pred_fallthru
      _
    // Predicated region
    $region58: #{tpu_custom_call.1} parent=1 // pred_check
      _
    $region59: #{tpu_custom_call.1} parent=1 // pred_check_branch
      %4352 = sbr.rel (0) target = $region61
    $region60: #{tpu_custom_call.1} parent=1 // pred_region
      %4353 = dma.done [#allocation4], 32
    $region61: #{tpu_custom_call.1} parent=1 // pred_fallthru
      _
    %4354 = vsyncpa [#allocation3], 1
    %4355 = vsyncpa [#allocation6], 1
    %4356 = vsyncpa [#allocation9], 1
    %4357 = vsyncpa [#allocation4], 1

</llo_original>
